<compile_context>
chip_gen: v6e
topology: v6e:2x2x1
jax: 0.10.0
libtpu: 0.0.40
codegen_flags: <defaults>
</compile_context>

<pallas_src>
import jax
import jax.numpy as jnp
from jax.experimental import pallas as pl
from jax.experimental.pallas import tpu as pltpu

# Model configuration (mirrors the PyTorch script: latent_dim = input_dim // 2)
INPUT_DIM = 20
LATENT_DIM = INPUT_DIM // 2  # 10

ENC_DIMS = [INPUT_DIM, 130, 120, 110, 100, 90, 80, 70]              # 7 Linear+LeakyReLU
DEC_DIMS = [LATENT_DIM, 70, 80, 90, 100, 110, 120, 130, INPUT_DIM]  # 7 Linear+LeakyReLU, last Linear+Tanh

N_ENC = len(ENC_DIMS) - 1          # 7
N_DEC = len(DEC_DIMS) - 1          # 8
N_FUSED = N_ENC + 1 + N_DEC        # 7 encoder + 1 fused (mu|logvar) head + 8 decoder = 16

KPAD = 256     # padded contraction dim (max real din = 130)
NPAD = 256     # padded output dim (max real dout = 130; head needs mu@0 / logvar@128)
LV_OFF = 128   # lane offset of logvar inside the fused head
OUT_PAD = 3 * 128   # recon | mu | logvar slabs, each 128 lanes
TB = 128       # batch tile (rows per grid step / per matmul M)


def _act(h):
    # LeakyReLU(0.2): maximum(h, 0.2*h) == where(h >= 0, h, 0.2*h) for slope in (0, 1)
    return jnp.maximum(h, 0.2 * h)


def vae_kernel(x_ref, eps_ref, w_ref, b_ref, out_ref):
    """x:(TB,KPAD) f32 (zero-padded), eps:(TB,128) f32 (zero-padded),
    w:(16,KPAD,NPAD) bf16, b:(16,1,NPAD) f32, out:(TB,384) f32."""

    def linear(h_bf16, idx):
        w = w_ref[idx]                      # (KPAD, NPAD) bf16, free leading-axis view
        b = b_ref[idx]                      # (1, NPAD)    f32
        return jnp.dot(h_bf16, w, preferred_element_type=jnp.float32) + b

    # ---- encoder: 7 x (Linear + LeakyReLU(0.2)) ----
    h = x_ref[...].astype(jnp.bfloat16)     # (TB, KPAD); padded lanes are exact zeros
    for i in range(N_ENC):
        h = _act(linear(h, i)).astype(jnp.bfloat16)

    # ---- fused head: one matmul, mu in lanes [0,L), logvar in lanes [128,128+L) ----
    head = linear(h, N_ENC)                 # (TB, NPAD) f32; padded lanes exactly 0

    # ---- reparameterize: z = mu + eps * exp(0.5 * logvar) (lane-offset-0 slices) ----
    mu_slab = head[:, :LV_OFF]              # mu in lanes [0,L), zeros elsewhere
    lv_slab = head[:, LV_OFF:]              # logvar in lanes [0,L), zeros elsewhere
    z_slab = mu_slab + eps_ref[...] * jnp.exp(0.5 * lv_slab)   # padded lanes: 0 + 0*1 = 0

    # ---- decoder: 7 x (Linear + LeakyReLU(0.2)), then Linear + Tanh ----
    h = jnp.concatenate([z_slab, jnp.zeros_like(z_slab)], axis=-1).astype(jnp.bfloat16)
    base = N_ENC + 1
    for i in range(N_DEC - 1):
        h = _act(linear(h, base + i)).astype(jnp.bfloat16)
    recon = jnp.tanh(linear(h, base + N_DEC - 1))   # (TB, NPAD); recon in lanes [0,20)

    # ---- three lane-offset-0, unmasked slab stores ----
    out_ref[:, :128] = recon[:, :128]        # recon slab
    out_ref[:, 128:] = head                  # mu slab (128:256) | logvar slab (256:384)


def _logical_layer_dims():
    dims = []
    for i in range(N_ENC):
        dims.append((ENC_DIMS[i], ENC_DIMS[i + 1]))
    dims.append((ENC_DIMS[-1], LATENT_DIM))   # fc_mu
    dims.append((ENC_DIMS[-1], LATENT_DIM))   # fc_logvar
    for i in range(N_DEC):
        dims.append((DEC_DIMS[i], DEC_DIMS[i + 1]))
    return dims


def init_params(key):
    """Deterministic torch.nn.Linear-style init (uniform(-1/sqrt(in), 1/sqrt(in))).

    Returns a list of 17 (w, b) tuples with w stored transposed as (in, out), f32.
    """
    params = []
    for li, (din, dout) in enumerate(_logical_layer_dims()):
        kw = jax.random.fold_in(key, 2 * li)
        kb = jax.random.fold_in(key, 2 * li + 1)
        bound = 1.0 / jnp.sqrt(jnp.float32(din))
        w = jax.random.uniform(kw, (din, dout), jnp.float32, -bound, bound)
        b = jax.random.uniform(kb, (1, dout), jnp.float32, -bound, bound)
        params.append((w, b))
    return params


def pack_params(params):
    """Pack all layers into one bf16 weight slab and one f32 bias slab.

    Padded rows / lanes are zero-filled so they never contaminate the matmuls.
    The fc_mu / fc_logvar head is fused into one layer with mu at lane 0 and
    logvar at lane 128 (fresh-vreg, offset-0 slices inside the kernel).
    """
    w_slab = jnp.zeros((N_FUSED, KPAD, NPAD), jnp.float32)
    b_slab = jnp.zeros((N_FUSED, 1, NPAD), jnp.float32)

    # encoder layers -> slab indices 0..6
    for i in range(N_ENC):
        w, b = params[i]
        din, dout = w.shape
        w_slab = w_slab.at[i, :din, :dout].set(w)
        b_slab = b_slab.at[i, 0, :dout].set(b.reshape(-1))

    # fused head -> slab index 7
    w_mu, b_mu = params[N_ENC]
    w_lv, b_lv = params[N_ENC + 1]
    w_slab = w_slab.at[N_ENC, :w_mu.shape[0], :LATENT_DIM].set(w_mu)
    w_slab = w_slab.at[N_ENC, :w_lv.shape[0], LV_OFF:LV_OFF + LATENT_DIM].set(w_lv)
    b_slab = b_slab.at[N_ENC, 0, :LATENT_DIM].set(b_mu.reshape(-1))
    b_slab = b_slab.at[N_ENC, 0, LV_OFF:LV_OFF + LATENT_DIM].set(b_lv.reshape(-1))

    # decoder layers -> slab indices 8..15
    for i in range(N_DEC):
        w, b = params[N_ENC + 2 + i]
        din, dout = w.shape
        w_slab = w_slab.at[N_ENC + 1 + i, :din, :dout].set(w)
        b_slab = b_slab.at[N_ENC + 1 + i, 0, :dout].set(b.reshape(-1))

    # TODO(synk): on v7x the weight slab could additionally be stored as fp8 (e4m3);
    # kept bf16 here so the same slab is valid on v5e/v6e.
    return w_slab.astype(jnp.bfloat16), b_slab


def vae_forward(x, eps, w_slab, b_slab):
    batch = x.shape[0]
    b_pad = pl.cdiv(batch, TB) * TB

    # Zero-pad batch to a multiple of TB and features to the padded lane widths.
    x_pad = jnp.zeros((b_pad, KPAD), jnp.float32).at[:batch, :INPUT_DIM].set(x)
    eps_pad = jnp.zeros((b_pad, 128), jnp.float32).at[:batch, :LATENT_DIM].set(eps)

    grid = (b_pad // TB,)

    # Advisory cost hint: 16 padded (TB,256)x(256,256) matmuls per batch tile.
    flops = 2 * b_pad * N_FUSED * KPAD * NPAD
    transcendentals = b_pad * (128 + NPAD)          # exp + tanh (padded widths)
    bytes_accessed = (x_pad.size * 4 + eps_pad.size * 4
                      + w_slab.size * 2 + b_slab.size * 4
                      + b_pad * OUT_PAD * 4)
    ce = pl.CostEstimate(flops=flops, transcendentals=transcendentals,
                         bytes_accessed=bytes_accessed)

    out = pl.pallas_call(
        vae_kernel,
        out_shape=jax.ShapeDtypeStruct((b_pad, OUT_PAD), jnp.float32),
        grid_spec=pltpu.PrefetchScalarGridSpec(
            num_scalar_prefetch=0,
            grid=grid,
            in_specs=[
                pl.BlockSpec((TB, KPAD), lambda i: (i, 0)),                 # x tile
                pl.BlockSpec((TB, 128), lambda i: (i, 0)),                  # eps tile
                pl.BlockSpec((N_FUSED, KPAD, NPAD), lambda i: (0, 0, 0)),   # weights (resident)
                pl.BlockSpec((N_FUSED, 1, NPAD), lambda i: (0, 0, 0)),      # biases  (resident)
            ],
            out_specs=pl.BlockSpec((TB, OUT_PAD), lambda i: (i, 0)),
        ),
        compiler_params=pltpu.CompilerParams(
            dimension_semantics=("parallel",)),
        cost_estimate=ce,
    )(x_pad, eps_pad, w_slab, b_slab)

    recon = out[:batch, :INPUT_DIM]
    mu = out[:batch, 128:128 + LATENT_DIM]
    logvar = out[:batch, 256:256 + LATENT_DIM]
    return recon, mu, logvar


def vae_forward_ref(x, eps, params):
    """Pure-JAX reference on the UNPACKED params, same bf16-MXU / f32-accumulate recipe."""
    def lin(h, w, b):
        return jnp.dot(h.astype(jnp.bfloat16), w.astype(jnp.bfloat16),
                       preferred_element_type=jnp.float32) + b

    h = x
    for i in range(N_ENC):
        w, b = params[i]
        h = _act(lin(h, w, b))
    w_mu, b_mu = params[N_ENC]
    w_lv, b_lv = params[N_ENC + 1]
    mu = lin(h, w_mu, b_mu)
    logvar = lin(h, w_lv, b_lv)
    z = mu + eps * jnp.exp(0.5 * logvar)
    h = z
    for i in range(N_DEC - 1):
        w, b = params[N_ENC + 2 + i]
        h = _act(lin(h, w, b))
    w, b = params[N_ENC + 2 + N_DEC - 1]
    recon = jnp.tanh(lin(h, w, b))
    return recon, mu, logvar


if __name__ == "__main__":
    key = jax.random.PRNGKey(0)
    k_x, k_eps, k_p = jax.random.split(key, 3)

    batch = 8
    x = jax.random.normal(k_x, (batch, INPUT_DIM), jnp.float32)
    # eps is the randn_like() noise from reparameterize(); sampled outside the kernel
    # so the run is deterministic and verifiable against the reference.
    eps = jax.random.normal(k_eps, (batch, LATENT_DIM), jnp.float32)

    params = init_params(k_p)
    w_slab, b_slab = pack_params(params)

    recon, mu, logvar = vae_forward(x, eps, w_slab, b_slab)
    jax.block_until_ready((recon, mu, logvar))

    recon_r, mu_r, logvar_r = vae_forward_ref(x, eps, params)
    assert jnp.allclose(mu, mu_r, atol=2e-2, rtol=2e-2)
    assert jnp.allclose(logvar, logvar_r, atol=2e-2, rtol=2e-2)
    assert jnp.allclose(recon, recon_r, atol=2e-2, rtol=2e-2)

    print("KERNEL_OK")
</pallas_src>

<mosaic_0001>
module attributes {stable_mosaic.version = 11 : i64} {
  func.func @vae_kernel(%arg0: i32, %arg1: memref<128x256xf32, #tpu.memory_space<vmem>>, %arg2: memref<128x128xf32, #tpu.memory_space<vmem>>, %arg3: memref<16x256x256xbf16, #tpu.memory_space<vmem>>, %arg4: memref<16x1x256xf32, #tpu.memory_space<vmem>>, %arg5: memref<128x384xf32, #tpu.memory_space<vmem>>) attributes {dimension_semantics = [#tpu.dimension_semantics<parallel>], iteration_bounds = array<i64: 1>, scalar_prefetch = 0 : i64, scratch_operands = 0 : i64, tpu.core_type = #tpu.core_type<tc>, window_params = [{transform_indices = @transform_0, window_bounds = array<i64: 128, 256>}, {transform_indices = @transform_1, window_bounds = array<i64: 128, 128>}, {pipeline_mode = #tpu.pipeline_mode<synchronous>, transform_indices = @transform_2, window_bounds = array<i64: 16, 256, 256>}, {pipeline_mode = #tpu.pipeline_mode<synchronous>, transform_indices = @transform_3, window_bounds = array<i64: 16, 1, 256>}, {transform_indices = @transform_4, window_bounds = array<i64: 128, 384>}]} {
    %c0 = arith.constant 0 : index
    %c0_0 = arith.constant 0 : index
    %0 = vector.load %arg1[%c0, %c0_0] : memref<128x256xf32, #tpu.memory_space<vmem>>, vector<128x256xf32>
    %1 = arith.truncf %0 : vector<128x256xf32> to vector<128x256xbf16>
    %c0_1 = arith.constant 0 : index
    %c0_2 = arith.constant 0 : index
    %c0_3 = arith.constant 0 : index
    %2 = vector.load %arg3[%c0_1, %c0_2, %c0_3] : memref<16x256x256xbf16, #tpu.memory_space<vmem>>, vector<1x256x256xbf16>
    %3 = vector.shape_cast %2 : vector<1x256x256xbf16> to vector<256x256xbf16>
    %c0_4 = arith.constant 0 : index
    %c0_5 = arith.constant 0 : index
    %c0_6 = arith.constant 0 : index
    %4 = vector.load %arg4[%c0_4, %c0_5, %c0_6] : memref<16x1x256xf32, #tpu.memory_space<vmem>>, vector<1x1x256xf32>
    %5 = vector.shape_cast %4 : vector<1x1x256xf32> to vector<1x256xf32>
    %cst = arith.constant dense<0.000000e+00> : vector<128x256xf32>
    %6 = tpu.matmul %1, %3, %cst {dimension_numbers = #tpu.dot_dimension_numbers<[1], [0], [0], [1], [0, 0, 1, 1], [], []>} : vector<128x256xbf16>, vector<256x256xbf16>, vector<128x256xf32> -> vector<128x256xf32>
    %7 = vector.broadcast %5 : vector<1x256xf32> to vector<128x256xf32>
    %8 = arith.addf %6, %7 : vector<128x256xf32>
    %cst_7 = arith.constant 2.000000e-01 : f32
    %9 = vector.broadcast %cst_7 : f32 to vector<128x256xf32>
    %10 = arith.mulf %9, %8 : vector<128x256xf32>
    %11 = arith.maximumf %8, %10 : vector<128x256xf32>
    %12 = arith.truncf %11 : vector<128x256xf32> to vector<128x256xbf16>
    %c1 = arith.constant 1 : index
    %c0_8 = arith.constant 0 : index
    %c0_9 = arith.constant 0 : index
    %13 = vector.load %arg3[%c1, %c0_8, %c0_9] : memref<16x256x256xbf16, #tpu.memory_space<vmem>>, vector<1x256x256xbf16>
    %14 = vector.shape_cast %13 : vector<1x256x256xbf16> to vector<256x256xbf16>
    %c1_10 = arith.constant 1 : index
    %c0_11 = arith.constant 0 : index
    %c0_12 = arith.constant 0 : index
    %15 = vector.load %arg4[%c1_10, %c0_11, %c0_12] : memref<16x1x256xf32, #tpu.memory_space<vmem>>, vector<1x1x256xf32>
    %16 = vector.shape_cast %15 : vector<1x1x256xf32> to vector<1x256xf32>
    %cst_13 = arith.constant dense<0.000000e+00> : vector<128x256xf32>
    %17 = tpu.matmul %12, %14, %cst_13 {dimension_numbers = #tpu.dot_dimension_numbers<[1], [0], [0], [1], [0, 0, 1, 1], [], []>} : vector<128x256xbf16>, vector<256x256xbf16>, vector<128x256xf32> -> vector<128x256xf32>
    %18 = vector.broadcast %16 : vector<1x256xf32> to vector<128x256xf32>
    %19 = arith.addf %17, %18 : vector<128x256xf32>
    %cst_14 = arith.constant 2.000000e-01 : f32
    %20 = vector.broadcast %cst_14 : f32 to vector<128x256xf32>
    %21 = arith.mulf %20, %19 : vector<128x256xf32>
    %22 = arith.maximumf %19, %21 : vector<128x256xf32>
    %23 = arith.truncf %22 : vector<128x256xf32> to vector<128x256xbf16>
    %c2 = arith.constant 2 : index
    %c0_15 = arith.constant 0 : index
    %c0_16 = arith.constant 0 : index
    %24 = vector.load %arg3[%c2, %c0_15, %c0_16] : memref<16x256x256xbf16, #tpu.memory_space<vmem>>, vector<1x256x256xbf16>
    %25 = vector.shape_cast %24 : vector<1x256x256xbf16> to vector<256x256xbf16>
    %c2_17 = arith.constant 2 : index
    %c0_18 = arith.constant 0 : index
    %c0_19 = arith.constant 0 : index
    %26 = vector.load %arg4[%c2_17, %c0_18, %c0_19] : memref<16x1x256xf32, #tpu.memory_space<vmem>>, vector<1x1x256xf32>
    %27 = vector.shape_cast %26 : vector<1x1x256xf32> to vector<1x256xf32>
    %cst_20 = arith.constant dense<0.000000e+00> : vector<128x256xf32>
    %28 = tpu.matmul %23, %25, %cst_20 {dimension_numbers = #tpu.dot_dimension_numbers<[1], [0], [0], [1], [0, 0, 1, 1], [], []>} : vector<128x256xbf16>, vector<256x256xbf16>, vector<128x256xf32> -> vector<128x256xf32>
    %29 = vector.broadcast %27 : vector<1x256xf32> to vector<128x256xf32>
    %30 = arith.addf %28, %29 : vector<128x256xf32>
    %cst_21 = arith.constant 2.000000e-01 : f32
    %31 = vector.broadcast %cst_21 : f32 to vector<128x256xf32>
    %32 = arith.mulf %31, %30 : vector<128x256xf32>
    %33 = arith.maximumf %30, %32 : vector<128x256xf32>
    %34 = arith.truncf %33 : vector<128x256xf32> to vector<128x256xbf16>
    %c3 = arith.constant 3 : index
    %c0_22 = arith.constant 0 : index
    %c0_23 = arith.constant 0 : index
    %35 = vector.load %arg3[%c3, %c0_22, %c0_23] : memref<16x256x256xbf16, #tpu.memory_space<vmem>>, vector<1x256x256xbf16>
    %36 = vector.shape_cast %35 : vector<1x256x256xbf16> to vector<256x256xbf16>
    %c3_24 = arith.constant 3 : index
    %c0_25 = arith.constant 0 : index
    %c0_26 = arith.constant 0 : index
    %37 = vector.load %arg4[%c3_24, %c0_25, %c0_26] : memref<16x1x256xf32, #tpu.memory_space<vmem>>, vector<1x1x256xf32>
    %38 = vector.shape_cast %37 : vector<1x1x256xf32> to vector<1x256xf32>
    %cst_27 = arith.constant dense<0.000000e+00> : vector<128x256xf32>
    %39 = tpu.matmul %34, %36, %cst_27 {dimension_numbers = #tpu.dot_dimension_numbers<[1], [0], [0], [1], [0, 0, 1, 1], [], []>} : vector<128x256xbf16>, vector<256x256xbf16>, vector<128x256xf32> -> vector<128x256xf32>
    %40 = vector.broadcast %38 : vector<1x256xf32> to vector<128x256xf32>
    %41 = arith.addf %39, %40 : vector<128x256xf32>
    %cst_28 = arith.constant 2.000000e-01 : f32
    %42 = vector.broadcast %cst_28 : f32 to vector<128x256xf32>
    %43 = arith.mulf %42, %41 : vector<128x256xf32>
    %44 = arith.maximumf %41, %43 : vector<128x256xf32>
    %45 = arith.truncf %44 : vector<128x256xf32> to vector<128x256xbf16>
    %c4 = arith.constant 4 : index
    %c0_29 = arith.constant 0 : index
    %c0_30 = arith.constant 0 : index
    %46 = vector.load %arg3[%c4, %c0_29, %c0_30] : memref<16x256x256xbf16, #tpu.memory_space<vmem>>, vector<1x256x256xbf16>
    %47 = vector.shape_cast %46 : vector<1x256x256xbf16> to vector<256x256xbf16>
    %c4_31 = arith.constant 4 : index
    %c0_32 = arith.constant 0 : index
    %c0_33 = arith.constant 0 : index
    %48 = vector.load %arg4[%c4_31, %c0_32, %c0_33] : memref<16x1x256xf32, #tpu.memory_space<vmem>>, vector<1x1x256xf32>
    %49 = vector.shape_cast %48 : vector<1x1x256xf32> to vector<1x256xf32>
    %cst_34 = arith.constant dense<0.000000e+00> : vector<128x256xf32>
    %50 = tpu.matmul %45, %47, %cst_34 {dimension_numbers = #tpu.dot_dimension_numbers<[1], [0], [0], [1], [0, 0, 1, 1], [], []>} : vector<128x256xbf16>, vector<256x256xbf16>, vector<128x256xf32> -> vector<128x256xf32>
    %51 = vector.broadcast %49 : vector<1x256xf32> to vector<128x256xf32>
    %52 = arith.addf %50, %51 : vector<128x256xf32>
    %cst_35 = arith.constant 2.000000e-01 : f32
    %53 = vector.broadcast %cst_35 : f32 to vector<128x256xf32>
    %54 = arith.mulf %53, %52 : vector<128x256xf32>
    %55 = arith.maximumf %52, %54 : vector<128x256xf32>
    %56 = arith.truncf %55 : vector<128x256xf32> to vector<128x256xbf16>
    %c5 = arith.constant 5 : index
    %c0_36 = arith.constant 0 : index
    %c0_37 = arith.constant 0 : index
    %57 = vector.load %arg3[%c5, %c0_36, %c0_37] : memref<16x256x256xbf16, #tpu.memory_space<vmem>>, vector<1x256x256xbf16>
    %58 = vector.shape_cast %57 : vector<1x256x256xbf16> to vector<256x256xbf16>
    %c5_38 = arith.constant 5 : index
    %c0_39 = arith.constant 0 : index
    %c0_40 = arith.constant 0 : index
    %59 = vector.load %arg4[%c5_38, %c0_39, %c0_40] : memref<16x1x256xf32, #tpu.memory_space<vmem>>, vector<1x1x256xf32>
    %60 = vector.shape_cast %59 : vector<1x1x256xf32> to vector<1x256xf32>
    %cst_41 = arith.constant dense<0.000000e+00> : vector<128x256xf32>
    %61 = tpu.matmul %56, %58, %cst_41 {dimension_numbers = #tpu.dot_dimension_numbers<[1], [0], [0], [1], [0, 0, 1, 1], [], []>} : vector<128x256xbf16>, vector<256x256xbf16>, vector<128x256xf32> -> vector<128x256xf32>
    %62 = vector.broadcast %60 : vector<1x256xf32> to vector<128x256xf32>
    %63 = arith.addf %61, %62 : vector<128x256xf32>
    %cst_42 = arith.constant 2.000000e-01 : f32
    %64 = vector.broadcast %cst_42 : f32 to vector<128x256xf32>
    %65 = arith.mulf %64, %63 : vector<128x256xf32>
    %66 = arith.maximumf %63, %65 : vector<128x256xf32>
    %67 = arith.truncf %66 : vector<128x256xf32> to vector<128x256xbf16>
    %c6 = arith.constant 6 : index
    %c0_43 = arith.constant 0 : index
    %c0_44 = arith.constant 0 : index
    %68 = vector.load %arg3[%c6, %c0_43, %c0_44] : memref<16x256x256xbf16, #tpu.memory_space<vmem>>, vector<1x256x256xbf16>
    %69 = vector.shape_cast %68 : vector<1x256x256xbf16> to vector<256x256xbf16>
    %c6_45 = arith.constant 6 : index
    %c0_46 = arith.constant 0 : index
    %c0_47 = arith.constant 0 : index
    %70 = vector.load %arg4[%c6_45, %c0_46, %c0_47] : memref<16x1x256xf32, #tpu.memory_space<vmem>>, vector<1x1x256xf32>
    %71 = vector.shape_cast %70 : vector<1x1x256xf32> to vector<1x256xf32>
    %cst_48 = arith.constant dense<0.000000e+00> : vector<128x256xf32>
    %72 = tpu.matmul %67, %69, %cst_48 {dimension_numbers = #tpu.dot_dimension_numbers<[1], [0], [0], [1], [0, 0, 1, 1], [], []>} : vector<128x256xbf16>, vector<256x256xbf16>, vector<128x256xf32> -> vector<128x256xf32>
    %73 = vector.broadcast %71 : vector<1x256xf32> to vector<128x256xf32>
    %74 = arith.addf %72, %73 : vector<128x256xf32>
    %cst_49 = arith.constant 2.000000e-01 : f32
    %75 = vector.broadcast %cst_49 : f32 to vector<128x256xf32>
    %76 = arith.mulf %75, %74 : vector<128x256xf32>
    %77 = arith.maximumf %74, %76 : vector<128x256xf32>
    %78 = arith.truncf %77 : vector<128x256xf32> to vector<128x256xbf16>
    %c7 = arith.constant 7 : index
    %c0_50 = arith.constant 0 : index
    %c0_51 = arith.constant 0 : index
    %79 = vector.load %arg3[%c7, %c0_50, %c0_51] : memref<16x256x256xbf16, #tpu.memory_space<vmem>>, vector<1x256x256xbf16>
    %80 = vector.shape_cast %79 : vector<1x256x256xbf16> to vector<256x256xbf16>
    %c7_52 = arith.constant 7 : index
    %c0_53 = arith.constant 0 : index
    %c0_54 = arith.constant 0 : index
    %81 = vector.load %arg4[%c7_52, %c0_53, %c0_54] : memref<16x1x256xf32, #tpu.memory_space<vmem>>, vector<1x1x256xf32>
    %82 = vector.shape_cast %81 : vector<1x1x256xf32> to vector<1x256xf32>
    %cst_55 = arith.constant dense<0.000000e+00> : vector<128x256xf32>
    %83 = tpu.matmul %78, %80, %cst_55 {dimension_numbers = #tpu.dot_dimension_numbers<[1], [0], [0], [1], [0, 0, 1, 1], [], []>} : vector<128x256xbf16>, vector<256x256xbf16>, vector<128x256xf32> -> vector<128x256xf32>
    %84 = vector.broadcast %82 : vector<1x256xf32> to vector<128x256xf32>
    %85 = arith.addf %83, %84 : vector<128x256xf32>
    %86 = vector.extract_strided_slice %85 {offsets = [0, 0], sizes = [128, 128], strides = [1, 1]} : vector<128x256xf32> to vector<128x128xf32>
    %87 = vector.extract_strided_slice %85 {offsets = [0, 128], sizes = [128, 128], strides = [1, 1]} : vector<128x256xf32> to vector<128x128xf32>
    %c0_56 = arith.constant 0 : index
    %c0_57 = arith.constant 0 : index
    %88 = vector.load %arg2[%c0_56, %c0_57] : memref<128x128xf32, #tpu.memory_space<vmem>>, vector<128x128xf32>
    %cst_58 = arith.constant 5.000000e-01 : f32
    %89 = vector.broadcast %cst_58 : f32 to vector<128x128xf32>
    %90 = arith.mulf %89, %87 : vector<128x128xf32>
    %91 = math.exp %90 : vector<128x128xf32>
    %92 = arith.mulf %88, %91 : vector<128x128xf32>
    %93 = arith.addf %86, %92 : vector<128x128xf32>
    %cst_59 = arith.constant 0.000000e+00 : f32
    %94 = vector.broadcast %cst_59 : f32 to vector<128x128xf32>
    %95 = tpu.concatenate %93, %94 in 1 : vector<128x128xf32>, vector<128x128xf32> -> vector<128x256xf32>
    %96 = arith.truncf %95 : vector<128x256xf32> to vector<128x256xbf16>
    %c8 = arith.constant 8 : index
    %c0_60 = arith.constant 0 : index
    %c0_61 = arith.constant 0 : index
    %97 = vector.load %arg3[%c8, %c0_60, %c0_61] : memref<16x256x256xbf16, #tpu.memory_space<vmem>>, vector<1x256x256xbf16>
    %98 = vector.shape_cast %97 : vector<1x256x256xbf16> to vector<256x256xbf16>
    %c8_62 = arith.constant 8 : index
    %c0_63 = arith.constant 0 : index
    %c0_64 = arith.constant 0 : index
    %99 = vector.load %arg4[%c8_62, %c0_63, %c0_64] : memref<16x1x256xf32, #tpu.memory_space<vmem>>, vector<1x1x256xf32>
    %100 = vector.shape_cast %99 : vector<1x1x256xf32> to vector<1x256xf32>
    %cst_65 = arith.constant dense<0.000000e+00> : vector<128x256xf32>
    %101 = tpu.matmul %96, %98, %cst_65 {dimension_numbers = #tpu.dot_dimension_numbers<[1], [0], [0], [1], [0, 0, 1, 1], [], []>} : vector<128x256xbf16>, vector<256x256xbf16>, vector<128x256xf32> -> vector<128x256xf32>
    %102 = vector.broadcast %100 : vector<1x256xf32> to vector<128x256xf32>
    %103 = arith.addf %101, %102 : vector<128x256xf32>
    %cst_66 = arith.constant 2.000000e-01 : f32
    %104 = vector.broadcast %cst_66 : f32 to vector<128x256xf32>
    %105 = arith.mulf %104, %103 : vector<128x256xf32>
    %106 = arith.maximumf %103, %105 : vector<128x256xf32>
    %107 = arith.truncf %106 : vector<128x256xf32> to vector<128x256xbf16>
    %c9 = arith.constant 9 : index
    %c0_67 = arith.constant 0 : index
    %c0_68 = arith.constant 0 : index
    %108 = vector.load %arg3[%c9, %c0_67, %c0_68] : memref<16x256x256xbf16, #tpu.memory_space<vmem>>, vector<1x256x256xbf16>
    %109 = vector.shape_cast %108 : vector<1x256x256xbf16> to vector<256x256xbf16>
    %c9_69 = arith.constant 9 : index
    %c0_70 = arith.constant 0 : index
    %c0_71 = arith.constant 0 : index
    %110 = vector.load %arg4[%c9_69, %c0_70, %c0_71] : memref<16x1x256xf32, #tpu.memory_space<vmem>>, vector<1x1x256xf32>
    %111 = vector.shape_cast %110 : vector<1x1x256xf32> to vector<1x256xf32>
    %cst_72 = arith.constant dense<0.000000e+00> : vector<128x256xf32>
    %112 = tpu.matmul %107, %109, %cst_72 {dimension_numbers = #tpu.dot_dimension_numbers<[1], [0], [0], [1], [0, 0, 1, 1], [], []>} : vector<128x256xbf16>, vector<256x256xbf16>, vector<128x256xf32> -> vector<128x256xf32>
    %113 = vector.broadcast %111 : vector<1x256xf32> to vector<128x256xf32>
    %114 = arith.addf %112, %113 : vector<128x256xf32>
    %cst_73 = arith.constant 2.000000e-01 : f32
    %115 = vector.broadcast %cst_73 : f32 to vector<128x256xf32>
    %116 = arith.mulf %115, %114 : vector<128x256xf32>
    %117 = arith.maximumf %114, %116 : vector<128x256xf32>
    %118 = arith.truncf %117 : vector<128x256xf32> to vector<128x256xbf16>
    %c10 = arith.constant 10 : index
    %c0_74 = arith.constant 0 : index
    %c0_75 = arith.constant 0 : index
    %119 = vector.load %arg3[%c10, %c0_74, %c0_75] : memref<16x256x256xbf16, #tpu.memory_space<vmem>>, vector<1x256x256xbf16>
    %120 = vector.shape_cast %119 : vector<1x256x256xbf16> to vector<256x256xbf16>
    %c10_76 = arith.constant 10 : index
    %c0_77 = arith.constant 0 : index
    %c0_78 = arith.constant 0 : index
    %121 = vector.load %arg4[%c10_76, %c0_77, %c0_78] : memref<16x1x256xf32, #tpu.memory_space<vmem>>, vector<1x1x256xf32>
    %122 = vector.shape_cast %121 : vector<1x1x256xf32> to vector<1x256xf32>
    %cst_79 = arith.constant dense<0.000000e+00> : vector<128x256xf32>
    %123 = tpu.matmul %118, %120, %cst_79 {dimension_numbers = #tpu.dot_dimension_numbers<[1], [0], [0], [1], [0, 0, 1, 1], [], []>} : vector<128x256xbf16>, vector<256x256xbf16>, vector<128x256xf32> -> vector<128x256xf32>
    %124 = vector.broadcast %122 : vector<1x256xf32> to vector<128x256xf32>
    %125 = arith.addf %123, %124 : vector<128x256xf32>
    %cst_80 = arith.constant 2.000000e-01 : f32
    %126 = vector.broadcast %cst_80 : f32 to vector<128x256xf32>
    %127 = arith.mulf %126, %125 : vector<128x256xf32>
    %128 = arith.maximumf %125, %127 : vector<128x256xf32>
    %129 = arith.truncf %128 : vector<128x256xf32> to vector<128x256xbf16>
    %c11 = arith.constant 11 : index
    %c0_81 = arith.constant 0 : index
    %c0_82 = arith.constant 0 : index
    %130 = vector.load %arg3[%c11, %c0_81, %c0_82] : memref<16x256x256xbf16, #tpu.memory_space<vmem>>, vector<1x256x256xbf16>
    %131 = vector.shape_cast %130 : vector<1x256x256xbf16> to vector<256x256xbf16>
    %c11_83 = arith.constant 11 : index
    %c0_84 = arith.constant 0 : index
    %c0_85 = arith.constant 0 : index
    %132 = vector.load %arg4[%c11_83, %c0_84, %c0_85] : memref<16x1x256xf32, #tpu.memory_space<vmem>>, vector<1x1x256xf32>
    %133 = vector.shape_cast %132 : vector<1x1x256xf32> to vector<1x256xf32>
    %cst_86 = arith.constant dense<0.000000e+00> : vector<128x256xf32>
    %134 = tpu.matmul %129, %131, %cst_86 {dimension_numbers = #tpu.dot_dimension_numbers<[1], [0], [0], [1], [0, 0, 1, 1], [], []>} : vector<128x256xbf16>, vector<256x256xbf16>, vector<128x256xf32> -> vector<128x256xf32>
    %135 = vector.broadcast %133 : vector<1x256xf32> to vector<128x256xf32>
    %136 = arith.addf %134, %135 : vector<128x256xf32>
    %cst_87 = arith.constant 2.000000e-01 : f32
    %137 = vector.broadcast %cst_87 : f32 to vector<128x256xf32>
    %138 = arith.mulf %137, %136 : vector<128x256xf32>
    %139 = arith.maximumf %136, %138 : vector<128x256xf32>
    %140 = arith.truncf %139 : vector<128x256xf32> to vector<128x256xbf16>
    %c12 = arith.constant 12 : index
    %c0_88 = arith.constant 0 : index
    %c0_89 = arith.constant 0 : index
    %141 = vector.load %arg3[%c12, %c0_88, %c0_89] : memref<16x256x256xbf16, #tpu.memory_space<vmem>>, vector<1x256x256xbf16>
    %142 = vector.shape_cast %141 : vector<1x256x256xbf16> to vector<256x256xbf16>
    %c12_90 = arith.constant 12 : index
    %c0_91 = arith.constant 0 : index
    %c0_92 = arith.constant 0 : index
    %143 = vector.load %arg4[%c12_90, %c0_91, %c0_92] : memref<16x1x256xf32, #tpu.memory_space<vmem>>, vector<1x1x256xf32>
    %144 = vector.shape_cast %143 : vector<1x1x256xf32> to vector<1x256xf32>
    %cst_93 = arith.constant dense<0.000000e+00> : vector<128x256xf32>
    %145 = tpu.matmul %140, %142, %cst_93 {dimension_numbers = #tpu.dot_dimension_numbers<[1], [0], [0], [1], [0, 0, 1, 1], [], []>} : vector<128x256xbf16>, vector<256x256xbf16>, vector<128x256xf32> -> vector<128x256xf32>
    %146 = vector.broadcast %144 : vector<1x256xf32> to vector<128x256xf32>
    %147 = arith.addf %145, %146 : vector<128x256xf32>
    %cst_94 = arith.constant 2.000000e-01 : f32
    %148 = vector.broadcast %cst_94 : f32 to vector<128x256xf32>
    %149 = arith.mulf %148, %147 : vector<128x256xf32>
    %150 = arith.maximumf %147, %149 : vector<128x256xf32>
    %151 = arith.truncf %150 : vector<128x256xf32> to vector<128x256xbf16>
    %c13 = arith.constant 13 : index
    %c0_95 = arith.constant 0 : index
    %c0_96 = arith.constant 0 : index
    %152 = vector.load %arg3[%c13, %c0_95, %c0_96] : memref<16x256x256xbf16, #tpu.memory_space<vmem>>, vector<1x256x256xbf16>
    %153 = vector.shape_cast %152 : vector<1x256x256xbf16> to vector<256x256xbf16>
    %c13_97 = arith.constant 13 : index
    %c0_98 = arith.constant 0 : index
    %c0_99 = arith.constant 0 : index
    %154 = vector.load %arg4[%c13_97, %c0_98, %c0_99] : memref<16x1x256xf32, #tpu.memory_space<vmem>>, vector<1x1x256xf32>
    %155 = vector.shape_cast %154 : vector<1x1x256xf32> to vector<1x256xf32>
    %cst_100 = arith.constant dense<0.000000e+00> : vector<128x256xf32>
    %156 = tpu.matmul %151, %153, %cst_100 {dimension_numbers = #tpu.dot_dimension_numbers<[1], [0], [0], [1], [0, 0, 1, 1], [], []>} : vector<128x256xbf16>, vector<256x256xbf16>, vector<128x256xf32> -> vector<128x256xf32>
    %157 = vector.broadcast %155 : vector<1x256xf32> to vector<128x256xf32>
    %158 = arith.addf %156, %157 : vector<128x256xf32>
    %cst_101 = arith.constant 2.000000e-01 : f32
    %159 = vector.broadcast %cst_101 : f32 to vector<128x256xf32>
    %160 = arith.mulf %159, %158 : vector<128x256xf32>
    %161 = arith.maximumf %158, %160 : vector<128x256xf32>
    %162 = arith.truncf %161 : vector<128x256xf32> to vector<128x256xbf16>
    %c14 = arith.constant 14 : index
    %c0_102 = arith.constant 0 : index
    %c0_103 = arith.constant 0 : index
    %163 = vector.load %arg3[%c14, %c0_102, %c0_103] : memref<16x256x256xbf16, #tpu.memory_space<vmem>>, vector<1x256x256xbf16>
    %164 = vector.shape_cast %163 : vector<1x256x256xbf16> to vector<256x256xbf16>
    %c14_104 = arith.constant 14 : index
    %c0_105 = arith.constant 0 : index
    %c0_106 = arith.constant 0 : index
    %165 = vector.load %arg4[%c14_104, %c0_105, %c0_106] : memref<16x1x256xf32, #tpu.memory_space<vmem>>, vector<1x1x256xf32>
    %166 = vector.shape_cast %165 : vector<1x1x256xf32> to vector<1x256xf32>
    %cst_107 = arith.constant dense<0.000000e+00> : vector<128x256xf32>
    %167 = tpu.matmul %162, %164, %cst_107 {dimension_numbers = #tpu.dot_dimension_numbers<[1], [0], [0], [1], [0, 0, 1, 1], [], []>} : vector<128x256xbf16>, vector<256x256xbf16>, vector<128x256xf32> -> vector<128x256xf32>
    %168 = vector.broadcast %166 : vector<1x256xf32> to vector<128x256xf32>
    %169 = arith.addf %167, %168 : vector<128x256xf32>
    %cst_108 = arith.constant 2.000000e-01 : f32
    %170 = vector.broadcast %cst_108 : f32 to vector<128x256xf32>
    %171 = arith.mulf %170, %169 : vector<128x256xf32>
    %172 = arith.maximumf %169, %171 : vector<128x256xf32>
    %173 = arith.truncf %172 : vector<128x256xf32> to vector<128x256xbf16>
    %c15 = arith.constant 15 : index
    %c0_109 = arith.constant 0 : index
    %c0_110 = arith.constant 0 : index
    %174 = vector.load %arg3[%c15, %c0_109, %c0_110] : memref<16x256x256xbf16, #tpu.memory_space<vmem>>, vector<1x256x256xbf16>
    %175 = vector.shape_cast %174 : vector<1x256x256xbf16> to vector<256x256xbf16>
    %c15_111 = arith.constant 15 : index
    %c0_112 = arith.constant 0 : index
    %c0_113 = arith.constant 0 : index
    %176 = vector.load %arg4[%c15_111, %c0_112, %c0_113] : memref<16x1x256xf32, #tpu.memory_space<vmem>>, vector<1x1x256xf32>
    %177 = vector.shape_cast %176 : vector<1x1x256xf32> to vector<1x256xf32>
    %cst_114 = arith.constant dense<0.000000e+00> : vector<128x256xf32>
    %178 = tpu.matmul %173, %175, %cst_114 {dimension_numbers = #tpu.dot_dimension_numbers<[1], [0], [0], [1], [0, 0, 1, 1], [], []>} : vector<128x256xbf16>, vector<256x256xbf16>, vector<128x256xf32> -> vector<128x256xf32>
    %179 = vector.broadcast %177 : vector<1x256xf32> to vector<128x256xf32>
    %180 = arith.addf %178, %179 : vector<128x256xf32>
    %181 = math.tanh %180 : vector<128x256xf32>
    %182 = vector.extract_strided_slice %181 {offsets = [0, 0], sizes = [128, 128], strides = [1, 1]} : vector<128x256xf32> to vector<128x128xf32>
    %c0_115 = arith.constant 0 : index
    %c0_116 = arith.constant 0 : index
    %183 = vector.load %arg5[%c0_115, %c0_116] : memref<128x384xf32, #tpu.memory_space<vmem>>, vector<128x128xf32>
    tpu.vector_store %arg5[%c0_115, %c0_116], %182 {strides = array<i32>} : memref<128x384xf32, #tpu.memory_space<vmem>>, vector<128x128xf32>,
    %c0_117 = arith.constant 0 : index
    %c128 = arith.constant 128 : index
    %184 = vector.load %arg5[%c0_117, %c128] : memref<128x384xf32, #tpu.memory_space<vmem>>, vector<128x256xf32>
    tpu.vector_store %arg5[%c0_117, %c128], %85 {strides = array<i32>} : memref<128x384xf32, #tpu.memory_space<vmem>>, vector<128x256xf32>,
    return
  }
  func.func @transform_0(%arg0: i32) -> (i32, i32) {
    %c0_i32 = arith.constant 0 : i32
    %c0_i32_0 = arith.constant 0 : i32
    return %arg0, %c0_i32 : i32, i32
  }
  func.func @transform_1(%arg0: i32) -> (i32, i32) {
    %c0_i32 = arith.constant 0 : i32
    %c0_i32_0 = arith.constant 0 : i32
    return %arg0, %c0_i32 : i32, i32
  }
  func.func @transform_2(%arg0: i32) -> (i32, i32, i32) {
    %c0_i32 = arith.constant 0 : i32
    %c0_i32_0 = arith.constant 0 : i32
    %c0_i32_1 = arith.constant 0 : i32
    %c0_i32_2 = arith.constant 0 : i32
    return %c0_i32, %c0_i32_0, %c0_i32_1 : i32, i32, i32
  }
  func.func @transform_3(%arg0: i32) -> (i32, i32, i32) {
    %c0_i32 = arith.constant 0 : i32
    %c0_i32_0 = arith.constant 0 : i32
    %c0_i32_1 = arith.constant 0 : i32
    %c0_i32_2 = arith.constant 0 : i32
    return %c0_i32, %c0_i32_0, %c0_i32_1 : i32, i32, i32
  }
  func.func @transform_4(%arg0: i32) -> (i32, i32) {
    %c0_i32 = arith.constant 0 : i32
    %c0_i32_0 = arith.constant 0 : i32
    return %arg0, %c0_i32 : i32, i32
  }
}

</mosaic_0001>

<llo_original>
// kernel: tpu_custom_call.1
$region0: #{tpu_custom_call.1}
  #allocation0 [shape = 'u32[]', space=smem, size = 0x4, offset = 0x4, fixed_abs, tag = 'smem constant byte address 0x4 - core index']
  #allocation1 [shape = 'u32[144,128]{1,0:T(1,128)}', space=vmem, size = 0x12000, scoped, tag = 'internal scratch']
  %s0 = inlined_call_operand.hbm [shape: f32[128,256], index: 0, kind: input, shape index: {}]
  %s1 = inlined_call_operand.hbm [shape: f32[128,128], index: 1, kind: input, shape index: {}]
  %s2 = inlined_call_operand.hbm [shape: bf16[16,256,256], index: 2, kind: input, shape index: {}]
  %s3 = inlined_call_operand.hbm [shape: f32[16,1,256], index: 3, kind: input, shape index: {}]
  %s4 = inlined_call_operand.hbm [shape: f32[128,384], index: 4, kind: output, shape index: {}]
  %s5 = sld [smem:[#allocation0]]
  $region42: #{tpu_custom_call.1} parent=0
    _
  %s7 = ssub.s32 1, %s5
  %s8 = scalar_select 0, %s7, %s5
  $region1: #{tpu_custom_call.1} parent=0
    #allocation2 [shape = 'u8[131072]{0}', space=vmem, size = 0x20000, scoped, tag = 'input window, operand 0, single buffered']
    #allocation3 [shape = 's32[1]{0}', space=sflag, size = 0x4, scoped, tag = 'scoped memory for tpu_custom_call.1']
    #allocation4 [shape = 's32[1]{0}', space=sflag, size = 0x4, scoped, tag = 'scoped memory for tpu_custom_call.1']
    #allocation5 [shape = 'u8[65536]{0}', space=vmem, size = 0x10000, scoped, tag = 'input window, operand 1, single buffered']
    #allocation6 [shape = 's32[1]{0}', space=sflag, size = 0x4, scoped, tag = 'scoped memory for tpu_custom_call.1']
    #allocation7 [shape = 'u8[2097152]{0}', space=vmem, size = 0x200000, scoped, tag = 'input window, operand 2, single buffered']
    #allocation8 [shape = 'u8[16384]{0}', space=vmem, size = 0x4000, scoped, tag = 'input window, operand 3, single buffered']
    #allocation9 [shape = 's32[1]{0}', space=sflag, size = 0x4, scoped, tag = 'scoped memory for tpu_custom_call.1']
    #allocation10 [shape = 'u8[196608]{0}', space=vmem, size = 0x30000, scoped, tag = 'output window, operand 0, single buffered']
    %9 = vsyncpa [#allocation3], 0
    %10 = vsyncpa [#allocation6], 0
    %11 = vsyncpa [#allocation9], 0
    %12 = vsyncpa [#allocation4], 0
    // Predicated region
    $region2: #{tpu_custom_call.1} parent=1 // pred_check
      _
    $region3: #{tpu_custom_call.1} parent=1 // pred_check_branch
      %14 = sbr.rel (0) target = $region5
    $region4: #{tpu_custom_call.1} parent=1 // pred_region
      %s16 = ssub.s32 4096, 4096
      %17 = vsyncadd [#allocation3], %s16
      %s18 = sshll.u32 [#allocation2], 4
      %s19 = int_to_ptr.vmem [resolvable:$true] %s18
      %24 = dma.hbm_to_vmem [thread:$0]  %s0, 4096, %s19, [#allocation3], 256, 256, 16
    $region5: #{tpu_custom_call.1} parent=1 // pred_fallthru
      _
    // Predicated region
    $region6: #{tpu_custom_call.1} parent=1 // pred_check
      _
    $region7: #{tpu_custom_call.1} parent=1 // pred_check_branch
      %26 = sbr.rel (0) target = $region9
    $region8: #{tpu_custom_call.1} parent=1 // pred_region
      %s28 = ssub.s32 2048, 2048
      %29 = vsyncadd [#allocation6], %s28
      %s30 = sshll.u32 [#allocation5], 4
      %s31 = int_to_ptr.vmem [resolvable:$true] %s30
      %36 = dma.hbm_to_vmem [thread:$0]  %s1, 2048, %s31, [#allocation6], 128, 128, 8
    $region9: #{tpu_custom_call.1} parent=1 // pred_fallthru
      _
    // Predicated region
    $region10: #{tpu_custom_call.1} parent=1 // pred_check
      _
    $region11: #{tpu_custom_call.1} parent=1 // pred_check_branch
      %38 = sbr.rel (0) target = $region13
    $region12: #{tpu_custom_call.1} parent=1 // pred_region
      %s40 = ssub.s32 65536, 65536
      %41 = vsyncadd [#allocation6], %s40
      %s42 = sshll.u32 [#allocation7], 4
      %s43 = int_to_ptr.vmem [resolvable:$true] %s42
      %48 = dma.hbm_to_vmem [thread:$0]  %s2, 65536, %s43, [#allocation6], 128, 128, 8
    $region13: #{tpu_custom_call.1} parent=1 // pred_fallthru
      _
    // Predicated region
    $region14: #{tpu_custom_call.1} parent=1 // pred_check
      _
    $region15: #{tpu_custom_call.1} parent=1 // pred_check_branch
      %50 = sbr.rel (0) target = $region17
    $region16: #{tpu_custom_call.1} parent=1 // pred_region
      %s52 = ssub.s32 512, 512
      %53 = vsyncadd [#allocation9], %s52
      %s54 = sshll.u32 [#allocation8], 4
      %s55 = int_to_ptr.vmem [resolvable:$true] %s54
      %60 = dma.hbm_to_vmem [thread:$0]  %s3, 512, %s55, [#allocation9], 32, 32, 2
    $region17: #{tpu_custom_call.1} parent=1 // pred_fallthru
      _
    // Predicated region
    $region18: #{tpu_custom_call.1} parent=1 // pred_check
      _
    $region19: #{tpu_custom_call.1} parent=1 // pred_check_branch
      %62 = sbr.rel (0) target = $region21
    $region20: #{tpu_custom_call.1} parent=1 // pred_region
      %63 = dma.done [#allocation3], 4096
    $region21: #{tpu_custom_call.1} parent=1 // pred_fallthru
      _
    // Predicated region
    $region22: #{tpu_custom_call.1} parent=1 // pred_check
      _
    $region23: #{tpu_custom_call.1} parent=1 // pred_check_branch
      %65 = sbr.rel (0) target = $region25
    $region24: #{tpu_custom_call.1} parent=1 // pred_region
      %66 = dma.done [#allocation6], 2048
    $region25: #{tpu_custom_call.1} parent=1 // pred_fallthru
      _
    // Predicated region
    $region26: #{tpu_custom_call.1} parent=1 // pred_check
      _
    $region27: #{tpu_custom_call.1} parent=1 // pred_check_branch
      %68 = sbr.rel (0) target = $region29
    $region28: #{tpu_custom_call.1} parent=1 // pred_region
      %69 = dma.done [#allocation6], 65536
    $region29: #{tpu_custom_call.1} parent=1 // pred_fallthru
      _
    // Predicated region
    $region30: #{tpu_custom_call.1} parent=1 // pred_check
      _
    $region31: #{tpu_custom_call.1} parent=1 // pred_check_branch
      %71 = sbr.rel (0) target = $region33
    $region32: #{tpu_custom_call.1} parent=1 // pred_region
      %72 = dma.done [#allocation9], 512
    $region33: #{tpu_custom_call.1} parent=1 // pred_fallthru
      _
    %v73 = vld [vmem:[#allocation2] sm:$0xff]
    %v74 = vld [vmem:[#allocation2 + $0x8] sm:$0xff]
    %v75 = vld [vmem:[#allocation2 + $0x10] sm:$0xff]
    %v76 = vld [vmem:[#allocation2 + $0x18] sm:$0xff]
    %v77 = vld [vmem:[#allocation2 + $0x20] sm:$0xff]
    %v78 = vld [vmem:[#allocation2 + $0x28] sm:$0xff]
    %v79 = vld [vmem:[#allocation2 + $0x30] sm:$0xff]
    %v80 = vld [vmem:[#allocation2 + $0x38] sm:$0xff]
    %v81 = vld [vmem:[#allocation2 + $0x40] sm:$0xff]
    %v82 = vld [vmem:[#allocation2 + $0x48] sm:$0xff]
    %v83 = vld [vmem:[#allocation2 + $0x50] sm:$0xff]
    %v84 = vld [vmem:[#allocation2 + $0x58] sm:$0xff]
    %v85 = vld [vmem:[#allocation2 + $0x60] sm:$0xff]
    %v86 = vld [vmem:[#allocation2 + $0x68] sm:$0xff]
    %v87 = vld [vmem:[#allocation2 + $0x70] sm:$0xff]
    %v88 = vld [vmem:[#allocation2 + $0x78] sm:$0xff]
    %v89 = vld [vmem:[#allocation2 + $0x80] sm:$0xff]
    %v90 = vld [vmem:[#allocation2 + $0x88] sm:$0xff]
    %v91 = vld [vmem:[#allocation2 + $0x90] sm:$0xff]
    %v92 = vld [vmem:[#allocation2 + $0x98] sm:$0xff]
    %v93 = vld [vmem:[#allocation2 + $0xa0] sm:$0xff]
    %v94 = vld [vmem:[#allocation2 + $0xa8] sm:$0xff]
    %v95 = vld [vmem:[#allocation2 + $0xb0] sm:$0xff]
    %v96 = vld [vmem:[#allocation2 + $0xb8] sm:$0xff]
    %v97 = vld [vmem:[#allocation2 + $0xc0] sm:$0xff]
    %v98 = vld [vmem:[#allocation2 + $0xc8] sm:$0xff]
    %v99 = vld [vmem:[#allocation2 + $0xd0] sm:$0xff]
    %v100 = vld [vmem:[#allocation2 + $0xd8] sm:$0xff]
    %v101 = vld [vmem:[#allocation2 + $0xe0] sm:$0xff]
    %v102 = vld [vmem:[#allocation2 + $0xe8] sm:$0xff]
    %v103 = vld [vmem:[#allocation2 + $0xf0] sm:$0xff]
    %v104 = vld [vmem:[#allocation2 + $0xf8] sm:$0xff]
    %v105 = vpack.c.bf16 %v75, %v73
    %v106 = vpack.c.bf16 %v76, %v74
    %v107 = vpack.c.bf16 %v79, %v77
    %v108 = vpack.c.bf16 %v80, %v78
    %v109 = vpack.c.bf16 %v83, %v81
    %v110 = vpack.c.bf16 %v84, %v82
    %v111 = vpack.c.bf16 %v87, %v85
    %v112 = vpack.c.bf16 %v88, %v86
    %v113 = vpack.c.bf16 %v91, %v89
    %v114 = vpack.c.bf16 %v92, %v90
    %v115 = vpack.c.bf16 %v95, %v93
    %v116 = vpack.c.bf16 %v96, %v94
    %v117 = vpack.c.bf16 %v99, %v97
    %v118 = vpack.c.bf16 %v100, %v98
    %v119 = vpack.c.bf16 %v103, %v101
    %v120 = vpack.c.bf16 %v104, %v102
    %v121 = vld [vmem:[#allocation7] sm:$0xff]
    %v122 = vld [vmem:[#allocation7 + $0x8] sm:$0xff]
    %v123 = vld [vmem:[#allocation7 + $0x10] sm:$0xff]
    %v124 = vld [vmem:[#allocation7 + $0x18] sm:$0xff]
    %v125 = vld [vmem:[#allocation7 + $0x20] sm:$0xff]
    %v126 = vld [vmem:[#allocation7 + $0x28] sm:$0xff]
    %v127 = vld [vmem:[#allocation7 + $0x30] sm:$0xff]
    %v128 = vld [vmem:[#allocation7 + $0x38] sm:$0xff]
    %v129 = vld [vmem:[#allocation7 + $0x40] sm:$0xff]
    %v130 = vld [vmem:[#allocation7 + $0x48] sm:$0xff]
    %v131 = vld [vmem:[#allocation7 + $0x50] sm:$0xff]
    %v132 = vld [vmem:[#allocation7 + $0x58] sm:$0xff]
    %v133 = vld [vmem:[#allocation7 + $0x60] sm:$0xff]
    %v134 = vld [vmem:[#allocation7 + $0x68] sm:$0xff]
    %v135 = vld [vmem:[#allocation7 + $0x70] sm:$0xff]
    %v136 = vld [vmem:[#allocation7 + $0x78] sm:$0xff]
    %v137 = vld [vmem:[#allocation7 + $0x80] sm:$0xff]
    %v138 = vld [vmem:[#allocation7 + $0x88] sm:$0xff]
    %v139 = vld [vmem:[#allocation7 + $0x90] sm:$0xff]
    %v140 = vld [vmem:[#allocation7 + $0x98] sm:$0xff]
    %v141 = vld [vmem:[#allocation7 + $0xa0] sm:$0xff]
    %v142 = vld [vmem:[#allocation7 + $0xa8] sm:$0xff]
    %v143 = vld [vmem:[#allocation7 + $0xb0] sm:$0xff]
    %v144 = vld [vmem:[#allocation7 + $0xb8] sm:$0xff]
    %v145 = vld [vmem:[#allocation7 + $0xc0] sm:$0xff]
    %v146 = vld [vmem:[#allocation7 + $0xc8] sm:$0xff]
    %v147 = vld [vmem:[#allocation7 + $0xd0] sm:$0xff]
    %v148 = vld [vmem:[#allocation7 + $0xd8] sm:$0xff]
    %v149 = vld [vmem:[#allocation7 + $0xe0] sm:$0xff]
    %v150 = vld [vmem:[#allocation7 + $0xe8] sm:$0xff]
    %v151 = vld [vmem:[#allocation7 + $0xf0] sm:$0xff]
    %v152 = vld [vmem:[#allocation7 + $0xf8] sm:$0xff]
    %v153 = vld [vmem:[#allocation8] sm:$0x3]
    %v155 = vlaneseq
    %v156 = vshrl.u32 %v155, 7
    %v157 = vsub.s32 0, %v156
    %v158 = vrot.slane %v153, %v157
    %v159 = vlaneseq
    %v160 = vshrl.u32 %v159, 7
    %v161 = vsub.s32 1, %v160
    %v162 = vrot.slane %v153, %v161
    %v197 = vunpack.c.l.b16 %v121
    %v198 = vunpack.c.h.b16 %v121
    %v199 = vunpack.c.l.b16 %v122
    %v200 = vunpack.c.h.b16 %v122
    %v201 = vunpack.c.l.b16 %v123
    %v202 = vunpack.c.h.b16 %v123
    %v203 = vunpack.c.l.b16 %v124
    %v204 = vunpack.c.h.b16 %v124
    %v205 = vunpack.c.l.b16 %v125
    %v206 = vunpack.c.h.b16 %v125
    %v207 = vunpack.c.l.b16 %v126
    %v208 = vunpack.c.h.b16 %v126
    %v209 = vunpack.c.l.b16 %v127
    %v210 = vunpack.c.h.b16 %v127
    %v211 = vunpack.c.l.b16 %v128
    %v212 = vunpack.c.h.b16 %v128
    %v213 = vunpack.c.l.b16 %v129
    %v214 = vunpack.c.h.b16 %v129
    %v215 = vunpack.c.l.b16 %v130
    %v216 = vunpack.c.h.b16 %v130
    %v217 = vunpack.c.l.b16 %v131
    %v218 = vunpack.c.h.b16 %v131
    %v219 = vunpack.c.l.b16 %v132
    %v220 = vunpack.c.h.b16 %v132
    %v221 = vunpack.c.l.b16 %v133
    %v222 = vunpack.c.h.b16 %v133
    %v223 = vunpack.c.l.b16 %v134
    %v224 = vunpack.c.h.b16 %v134
    %v225 = vunpack.c.l.b16 %v135
    %v226 = vunpack.c.h.b16 %v135
    %v227 = vunpack.c.l.b16 %v136
    %v228 = vunpack.c.h.b16 %v136
    %v229 = vunpack.c.l.b16 %v137
    %v230 = vunpack.c.h.b16 %v137
    %v231 = vunpack.c.l.b16 %v138
    %v232 = vunpack.c.h.b16 %v138
    %v233 = vunpack.c.l.b16 %v139
    %v234 = vunpack.c.h.b16 %v139
    %v235 = vunpack.c.l.b16 %v140
    %v236 = vunpack.c.h.b16 %v140
    %v237 = vunpack.c.l.b16 %v141
    %v238 = vunpack.c.h.b16 %v141
    %v239 = vunpack.c.l.b16 %v142
    %v240 = vunpack.c.h.b16 %v142
    %v241 = vunpack.c.l.b16 %v143
    %v242 = vunpack.c.h.b16 %v143
    %v243 = vunpack.c.l.b16 %v144
    %v244 = vunpack.c.h.b16 %v144
    %v245 = vunpack.c.l.b16 %v145
    %v246 = vunpack.c.h.b16 %v145
    %v247 = vunpack.c.l.b16 %v146
    %v248 = vunpack.c.h.b16 %v146
    %v249 = vunpack.c.l.b16 %v147
    %v250 = vunpack.c.h.b16 %v147
    %v251 = vunpack.c.l.b16 %v148
    %v252 = vunpack.c.h.b16 %v148
    %v253 = vunpack.c.l.b16 %v149
    %v254 = vunpack.c.h.b16 %v149
    %v255 = vunpack.c.l.b16 %v150
    %v256 = vunpack.c.h.b16 %v150
    %v257 = vunpack.c.l.b16 %v151
    %v258 = vunpack.c.h.b16 %v151
    %v259 = vunpack.c.l.b16 %v152
    %v260 = vunpack.c.h.b16 %v152
    %v261 = vpack.c.b16 %v199, %v197
    %v262 = vpack.c.b16 %v200, %v198
    %v263 = vpack.c.b16 %v203, %v201
    %v264 = vpack.c.b16 %v204, %v202
    %v265 = vpack.c.b16 %v207, %v205
    %v266 = vpack.c.b16 %v208, %v206
    %v267 = vpack.c.b16 %v211, %v209
    %v268 = vpack.c.b16 %v212, %v210
    %v269 = vpack.c.b16 %v215, %v213
    %v270 = vpack.c.b16 %v216, %v214
    %v271 = vpack.c.b16 %v219, %v217
    %v272 = vpack.c.b16 %v220, %v218
    %v273 = vpack.c.b16 %v223, %v221
    %v274 = vpack.c.b16 %v224, %v222
    %v275 = vpack.c.b16 %v227, %v225
    %v276 = vpack.c.b16 %v228, %v226
    %v277 = vpack.c.b16 %v231, %v229
    %v278 = vpack.c.b16 %v232, %v230
    %v279 = vpack.c.b16 %v235, %v233
    %v280 = vpack.c.b16 %v236, %v234
    %v281 = vpack.c.b16 %v239, %v237
    %v282 = vpack.c.b16 %v240, %v238
    %v283 = vpack.c.b16 %v243, %v241
    %v284 = vpack.c.b16 %v244, %v242
    %v285 = vpack.c.b16 %v247, %v245
    %v286 = vpack.c.b16 %v248, %v246
    %v287 = vpack.c.b16 %v251, %v249
    %v288 = vpack.c.b16 %v252, %v250
    %v289 = vpack.c.b16 %v255, %v253
    %v290 = vpack.c.b16 %v256, %v254
    %v291 = vpack.c.b16 %v259, %v257
    %v292 = vpack.c.b16 %v260, %v258
    %325 = vmatprep.subr.bf16.mxu0 %v276
    %326 = vmatpush1.bf16.msra.mxu0 %v275
    %327 = vmatprep.subr.bf16.mxu0 %v274
    %328 = vmatpush1.bf16.msra.mxu0 %v273
    %329 = vmatprep.subr.bf16.mxu0 %v272
    %330 = vmatpush1.bf16.msra.mxu0 %v271
    %331 = vmatprep.subr.bf16.mxu0 %v270
    %332 = vmatpush1.bf16.msra.mxu0 %v269
    %333 = vmatprep.subr.bf16.mxu0 %v268
    %334 = vmatpush1.bf16.msra.mxu0 %v267
    %335 = vmatprep.subr.bf16.mxu0 %v266
    %336 = vmatpush1.bf16.msra.mxu0 %v265
    %337 = vmatprep.subr.bf16.mxu0 %v264
    %338 = vmatpush1.bf16.msra.mxu0 %v263
    %339 = vmatprep.subr.bf16.mxu0 %v262
    %340 = vmatpush1.bf16.msra.mxu0 %v261
    %341 = vmatprep.subr.bf16.mxu0 %v292
    %342 = vmatpush2.bf16.msra.mxu0 %v291
    %343 = vmatprep.subr.bf16.mxu0 %v290
    %344 = vmatpush2.bf16.msra.mxu0 %v289
    %345 = vmatprep.subr.bf16.mxu0 %v288
    %346 = vmatpush2.bf16.msra.mxu0 %v287
    %347 = vmatprep.subr.bf16.mxu0 %v286
    %348 = vmatpush2.bf16.msra.mxu0 %v285
    %349 = vmatprep.subr.bf16.mxu0 %v284
    %350 = vmatpush2.bf16.msra.mxu0 %v283
    %351 = vmatprep.subr.bf16.mxu0 %v282
    %352 = vmatpush2.bf16.msra.mxu0 %v281
    %353 = vmatprep.subr.bf16.mxu0 %v280
    %354 = vmatpush2.bf16.msra.mxu0 %v279
    %355 = vmatprep.subr.bf16.mxu0 %v278
    %356 = vmatpush2.bf16.msra.mxu0 %v277
    %357 = vmatprep.mubr.bf16.mxu0 %v106
    %358 = vmatmul.mubr.bf16.gmra.mxu0 %v105
    %v359 = vpop.f32.mrf.mxu0
    %v360 = vadd.f32 %v158, %v359
    %v361 = vpop.f32.mrf.mxu0
    %v362 = vadd.f32 %v162, %v361
    %v363 = vpop.f32.mrf.mxu0
    %v364 = vadd.f32 %v158, %v363
    %v365 = vpop.f32.mrf.mxu0
    %v366 = vadd.f32 %v162, %v365
    %367 = vmatprep.mubr.bf16.mxu0 %v108
    %368 = vmatmul.mubr.bf16.gmra.mxu0 %v107
    %v369 = vpop.f32.mrf.mxu0
    %v370 = vadd.f32 %v158, %v369
    %v371 = vpop.f32.mrf.mxu0
    %v372 = vadd.f32 %v162, %v371
    %v373 = vpop.f32.mrf.mxu0
    %v374 = vadd.f32 %v158, %v373
    %v375 = vpop.f32.mrf.mxu0
    %v376 = vadd.f32 %v162, %v375
    %377 = vmatprep.mubr.bf16.mxu0 %v110
    %378 = vmatmul.mubr.bf16.gmra.mxu0 %v109
    %v379 = vpop.f32.mrf.mxu0
    %v380 = vadd.f32 %v158, %v379
    %v381 = vpop.f32.mrf.mxu0
    %v382 = vadd.f32 %v162, %v381
    %v383 = vpop.f32.mrf.mxu0
    %v384 = vadd.f32 %v158, %v383
    %v385 = vpop.f32.mrf.mxu0
    %v386 = vadd.f32 %v162, %v385
    %387 = vmatprep.mubr.bf16.mxu0 %v112
    %388 = vmatmul.mubr.bf16.gmra.mxu0 %v111
    %v389 = vpop.f32.mrf.mxu0
    %v390 = vadd.f32 %v158, %v389
    %v391 = vpop.f32.mrf.mxu0
    %v392 = vadd.f32 %v162, %v391
    %v393 = vpop.f32.mrf.mxu0
    %v394 = vadd.f32 %v158, %v393
    %v395 = vpop.f32.mrf.mxu0
    %v396 = vadd.f32 %v162, %v395
    %397 = vmatprep.mubr.bf16.mxu0 %v114
    %398 = vmatmul.mubr.bf16.gmra.mxu0 %v113
    %v399 = vpop.f32.mrf.mxu0
    %v400 = vadd.f32 %v158, %v399
    %v401 = vpop.f32.mrf.mxu0
    %v402 = vadd.f32 %v162, %v401
    %v403 = vpop.f32.mrf.mxu0
    %v404 = vadd.f32 %v158, %v403
    %v405 = vpop.f32.mrf.mxu0
    %v406 = vadd.f32 %v162, %v405
    %407 = vmatprep.mubr.bf16.mxu0 %v116
    %408 = vmatmul.mubr.bf16.gmra.mxu0 %v115
    %v409 = vpop.f32.mrf.mxu0
    %v410 = vadd.f32 %v158, %v409
    %v411 = vpop.f32.mrf.mxu0
    %v412 = vadd.f32 %v162, %v411
    %v413 = vpop.f32.mrf.mxu0
    %v414 = vadd.f32 %v158, %v413
    %v415 = vpop.f32.mrf.mxu0
    %v416 = vadd.f32 %v162, %v415
    %417 = vmatprep.mubr.bf16.mxu0 %v118
    %418 = vmatmul.mubr.bf16.gmra.mxu0 %v117
    %v419 = vpop.f32.mrf.mxu0
    %v420 = vadd.f32 %v158, %v419
    %v421 = vpop.f32.mrf.mxu0
    %v422 = vadd.f32 %v162, %v421
    %v423 = vpop.f32.mrf.mxu0
    %v424 = vadd.f32 %v158, %v423
    %v425 = vpop.f32.mrf.mxu0
    %v426 = vadd.f32 %v162, %v425
    %427 = vmatprep.mubr.bf16.mxu0 %v120
    %428 = vmatmul.mubr.bf16.gmra.mxu0 %v119
    %v429 = vpop.f32.mrf.mxu0
    %v430 = vadd.f32 %v158, %v429
    %v431 = vpop.f32.mrf.mxu0
    %v432 = vadd.f32 %v162, %v431
    %v433 = vpop.f32.mrf.mxu0
    %v434 = vadd.f32 %v158, %v433
    %v435 = vpop.f32.mrf.mxu0
    %v436 = vadd.f32 %v162, %v435
    %437 = vdwg.mxu0
    %v438 = vmul.f32 %v360, 0.2
    %v439 = vmul.f32 %v362, 0.2
    %v440 = vmul.f32 %v364, 0.2
    %v441 = vmul.f32 %v366, 0.2
    %v442 = vmul.f32 %v370, 0.2
    %v443 = vmul.f32 %v372, 0.2
    %v444 = vmul.f32 %v374, 0.2
    %v445 = vmul.f32 %v376, 0.2
    %v446 = vmul.f32 %v380, 0.2
    %v447 = vmul.f32 %v382, 0.2
    %v448 = vmul.f32 %v384, 0.2
    %v449 = vmul.f32 %v386, 0.2
    %v450 = vmul.f32 %v390, 0.2
    %v451 = vmul.f32 %v392, 0.2
    %v452 = vmul.f32 %v394, 0.2
    %v453 = vmul.f32 %v396, 0.2
    %v454 = vmul.f32 %v400, 0.2
    %v455 = vmul.f32 %v402, 0.2
    %v456 = vmul.f32 %v404, 0.2
    %v457 = vmul.f32 %v406, 0.2
    %v458 = vmul.f32 %v410, 0.2
    %v459 = vmul.f32 %v412, 0.2
    %v460 = vmul.f32 %v414, 0.2
    %v461 = vmul.f32 %v416, 0.2
    %v462 = vmul.f32 %v420, 0.2
    %v463 = vmul.f32 %v422, 0.2
    %v464 = vmul.f32 %v424, 0.2
    %v465 = vmul.f32 %v426, 0.2
    %v466 = vmul.f32 %v430, 0.2
    %v467 = vmul.f32 %v432, 0.2
    %v468 = vmul.f32 %v434, 0.2
    %v469 = vmul.f32 %v436, 0.2
    %v470 = vmax.f32 %v360, %v438
    %v471 = vmax.f32 %v362, %v439
    %v472 = vmax.f32 %v364, %v440
    %v473 = vmax.f32 %v366, %v441
    %v474 = vmax.f32 %v370, %v442
    %v475 = vmax.f32 %v372, %v443
    %v476 = vmax.f32 %v374, %v444
    %v477 = vmax.f32 %v376, %v445
    %v478 = vmax.f32 %v380, %v446
    %v479 = vmax.f32 %v382, %v447
    %v480 = vmax.f32 %v384, %v448
    %v481 = vmax.f32 %v386, %v449
    %v482 = vmax.f32 %v390, %v450
    %v483 = vmax.f32 %v392, %v451
    %v484 = vmax.f32 %v394, %v452
    %v485 = vmax.f32 %v396, %v453
    %v486 = vmax.f32 %v400, %v454
    %v487 = vmax.f32 %v402, %v455
    %v488 = vmax.f32 %v404, %v456
    %v489 = vmax.f32 %v406, %v457
    %v490 = vmax.f32 %v410, %v458
    %v491 = vmax.f32 %v412, %v459
    %v492 = vmax.f32 %v414, %v460
    %v493 = vmax.f32 %v416, %v461
    %v494 = vmax.f32 %v420, %v462
    %v495 = vmax.f32 %v422, %v463
    %v496 = vmax.f32 %v424, %v464
    %v497 = vmax.f32 %v426, %v465
    %v498 = vmax.f32 %v430, %v466
    %v499 = vmax.f32 %v432, %v467
    %v500 = vmax.f32 %v434, %v468
    %v501 = vmax.f32 %v436, %v469
    %v502 = vpack.c.bf16 %v472, %v470
    %v503 = vpack.c.bf16 %v473, %v471
    %v504 = vpack.c.bf16 %v476, %v474
    %v505 = vpack.c.bf16 %v477, %v475
    %v506 = vpack.c.bf16 %v480, %v478
    %v507 = vpack.c.bf16 %v481, %v479
    %v508 = vpack.c.bf16 %v484, %v482
    %v509 = vpack.c.bf16 %v485, %v483
    %v510 = vpack.c.bf16 %v488, %v486
    %v511 = vpack.c.bf16 %v489, %v487
    %v512 = vpack.c.bf16 %v492, %v490
    %v513 = vpack.c.bf16 %v493, %v491
    %v514 = vpack.c.bf16 %v496, %v494
    %v515 = vpack.c.bf16 %v497, %v495
    %v516 = vpack.c.bf16 %v500, %v498
    %v517 = vpack.c.bf16 %v501, %v499
    %s518 = scalar_lea.vmem [#allocation7], 256
    %v519 = vld [vmem:[%s518] sm:$0xff]
    %v520 = vld [vmem:[%s518 + $0x8] sm:$0xff]
    %v521 = vld [vmem:[%s518 + $0x10] sm:$0xff]
    %v522 = vld [vmem:[%s518 + $0x18] sm:$0xff]
    %v523 = vld [vmem:[%s518 + $0x20] sm:$0xff]
    %v524 = vld [vmem:[%s518 + $0x28] sm:$0xff]
    %v525 = vld [vmem:[%s518 + $0x30] sm:$0xff]
    %v526 = vld [vmem:[%s518 + $0x38] sm:$0xff]
    %v527 = vld [vmem:[%s518 + $0x40] sm:$0xff]
    %v528 = vld [vmem:[%s518 + $0x48] sm:$0xff]
    %v529 = vld [vmem:[%s518 + $0x50] sm:$0xff]
    %v530 = vld [vmem:[%s518 + $0x58] sm:$0xff]
    %v531 = vld [vmem:[%s518 + $0x60] sm:$0xff]
    %v532 = vld [vmem:[%s518 + $0x68] sm:$0xff]
    %v533 = vld [vmem:[%s518 + $0x70] sm:$0xff]
    %v534 = vld [vmem:[%s518 + $0x78] sm:$0xff]
    %v535 = vld [vmem:[%s518 + $0x80] sm:$0xff]
    %v536 = vld [vmem:[%s518 + $0x88] sm:$0xff]
    %v537 = vld [vmem:[%s518 + $0x90] sm:$0xff]
    %v538 = vld [vmem:[%s518 + $0x98] sm:$0xff]
    %v539 = vld [vmem:[%s518 + $0xa0] sm:$0xff]
    %v540 = vld [vmem:[%s518 + $0xa8] sm:$0xff]
    %v541 = vld [vmem:[%s518 + $0xb0] sm:$0xff]
    %v542 = vld [vmem:[%s518 + $0xb8] sm:$0xff]
    %v543 = vld [vmem:[%s518 + $0xc0] sm:$0xff]
    %v544 = vld [vmem:[%s518 + $0xc8] sm:$0xff]
    %v545 = vld [vmem:[%s518 + $0xd0] sm:$0xff]
    %v546 = vld [vmem:[%s518 + $0xd8] sm:$0xff]
    %v547 = vld [vmem:[%s518 + $0xe0] sm:$0xff]
    %v548 = vld [vmem:[%s518 + $0xe8] sm:$0xff]
    %v549 = vld [vmem:[%s518 + $0xf0] sm:$0xff]
    %v550 = vld [vmem:[%s518 + $0xf8] sm:$0xff]
    %s551 = scalar_lea.vmem [#allocation8], 2
    %v552 = vld [vmem:[%s551] sm:$0x3]
    %v554 = vlaneseq
    %v555 = vshrl.u32 %v554, 7
    %v556 = vsub.s32 0, %v555
    %v557 = vrot.slane %v552, %v556
    %v558 = vlaneseq
    %v559 = vshrl.u32 %v558, 7
    %v560 = vsub.s32 1, %v559
    %v561 = vrot.slane %v552, %v560
    %v596 = vunpack.c.l.b16 %v519
    %v597 = vunpack.c.h.b16 %v519
    %v598 = vunpack.c.l.b16 %v520
    %v599 = vunpack.c.h.b16 %v520
    %v600 = vunpack.c.l.b16 %v521
    %v601 = vunpack.c.h.b16 %v521
    %v602 = vunpack.c.l.b16 %v522
    %v603 = vunpack.c.h.b16 %v522
    %v604 = vunpack.c.l.b16 %v523
    %v605 = vunpack.c.h.b16 %v523
    %v606 = vunpack.c.l.b16 %v524
    %v607 = vunpack.c.h.b16 %v524
    %v608 = vunpack.c.l.b16 %v525
    %v609 = vunpack.c.h.b16 %v525
    %v610 = vunpack.c.l.b16 %v526
    %v611 = vunpack.c.h.b16 %v526
    %v612 = vunpack.c.l.b16 %v527
    %v613 = vunpack.c.h.b16 %v527
    %v614 = vunpack.c.l.b16 %v528
    %v615 = vunpack.c.h.b16 %v528
    %v616 = vunpack.c.l.b16 %v529
    %v617 = vunpack.c.h.b16 %v529
    %v618 = vunpack.c.l.b16 %v530
    %v619 = vunpack.c.h.b16 %v530
    %v620 = vunpack.c.l.b16 %v531
    %v621 = vunpack.c.h.b16 %v531
    %v622 = vunpack.c.l.b16 %v532
    %v623 = vunpack.c.h.b16 %v532
    %v624 = vunpack.c.l.b16 %v533
    %v625 = vunpack.c.h.b16 %v533
    %v626 = vunpack.c.l.b16 %v534
    %v627 = vunpack.c.h.b16 %v534
    %v628 = vunpack.c.l.b16 %v535
    %v629 = vunpack.c.h.b16 %v535
    %v630 = vunpack.c.l.b16 %v536
    %v631 = vunpack.c.h.b16 %v536
    %v632 = vunpack.c.l.b16 %v537
    %v633 = vunpack.c.h.b16 %v537
    %v634 = vunpack.c.l.b16 %v538
    %v635 = vunpack.c.h.b16 %v538
    %v636 = vunpack.c.l.b16 %v539
    %v637 = vunpack.c.h.b16 %v539
    %v638 = vunpack.c.l.b16 %v540
    %v639 = vunpack.c.h.b16 %v540
    %v640 = vunpack.c.l.b16 %v541
    %v641 = vunpack.c.h.b16 %v541
    %v642 = vunpack.c.l.b16 %v542
    %v643 = vunpack.c.h.b16 %v542
    %v644 = vunpack.c.l.b16 %v543
    %v645 = vunpack.c.h.b16 %v543
    %v646 = vunpack.c.l.b16 %v544
    %v647 = vunpack.c.h.b16 %v544
    %v648 = vunpack.c.l.b16 %v545
    %v649 = vunpack.c.h.b16 %v545
    %v650 = vunpack.c.l.b16 %v546
    %v651 = vunpack.c.h.b16 %v546
    %v652 = vunpack.c.l.b16 %v547
    %v653 = vunpack.c.h.b16 %v547
    %v654 = vunpack.c.l.b16 %v548
    %v655 = vunpack.c.h.b16 %v548
    %v656 = vunpack.c.l.b16 %v549
    %v657 = vunpack.c.h.b16 %v549
    %v658 = vunpack.c.l.b16 %v550
    %v659 = vunpack.c.h.b16 %v550
    %v660 = vpack.c.b16 %v598, %v596
    %v661 = vpack.c.b16 %v599, %v597
    %v662 = vpack.c.b16 %v602, %v600
    %v663 = vpack.c.b16 %v603, %v601
    %v664 = vpack.c.b16 %v606, %v604
    %v665 = vpack.c.b16 %v607, %v605
    %v666 = vpack.c.b16 %v610, %v608
    %v667 = vpack.c.b16 %v611, %v609
    %v668 = vpack.c.b16 %v614, %v612
    %v669 = vpack.c.b16 %v615, %v613
    %v670 = vpack.c.b16 %v618, %v616
    %v671 = vpack.c.b16 %v619, %v617
    %v672 = vpack.c.b16 %v622, %v620
    %v673 = vpack.c.b16 %v623, %v621
    %v674 = vpack.c.b16 %v626, %v624
    %v675 = vpack.c.b16 %v627, %v625
    %v676 = vpack.c.b16 %v630, %v628
    %v677 = vpack.c.b16 %v631, %v629
    %v678 = vpack.c.b16 %v634, %v632
    %v679 = vpack.c.b16 %v635, %v633
    %v680 = vpack.c.b16 %v638, %v636
    %v681 = vpack.c.b16 %v639, %v637
    %v682 = vpack.c.b16 %v642, %v640
    %v683 = vpack.c.b16 %v643, %v641
    %v684 = vpack.c.b16 %v646, %v644
    %v685 = vpack.c.b16 %v647, %v645
    %v686 = vpack.c.b16 %v650, %v648
    %v687 = vpack.c.b16 %v651, %v649
    %v688 = vpack.c.b16 %v654, %v652
    %v689 = vpack.c.b16 %v655, %v653
    %v690 = vpack.c.b16 %v658, %v656
    %v691 = vpack.c.b16 %v659, %v657
    %724 = vmatprep.subr.bf16.mxu0 %v675
    %725 = vmatpush1.bf16.msra.mxu0 %v674
    %726 = vmatprep.subr.bf16.mxu0 %v673
    %727 = vmatpush1.bf16.msra.mxu0 %v672
    %728 = vmatprep.subr.bf16.mxu0 %v671
    %729 = vmatpush1.bf16.msra.mxu0 %v670
    %730 = vmatprep.subr.bf16.mxu0 %v669
    %731 = vmatpush1.bf16.msra.mxu0 %v668
    %732 = vmatprep.subr.bf16.mxu0 %v667
    %733 = vmatpush1.bf16.msra.mxu0 %v666
    %734 = vmatprep.subr.bf16.mxu0 %v665
    %735 = vmatpush1.bf16.msra.mxu0 %v664
    %736 = vmatprep.subr.bf16.mxu0 %v663
    %737 = vmatpush1.bf16.msra.mxu0 %v662
    %738 = vmatprep.subr.bf16.mxu0 %v661
    %739 = vmatpush1.bf16.msra.mxu0 %v660
    %740 = vmatprep.subr.bf16.mxu0 %v691
    %741 = vmatpush2.bf16.msra.mxu0 %v690
    %742 = vmatprep.subr.bf16.mxu0 %v689
    %743 = vmatpush2.bf16.msra.mxu0 %v688
    %744 = vmatprep.subr.bf16.mxu0 %v687
    %745 = vmatpush2.bf16.msra.mxu0 %v686
    %746 = vmatprep.subr.bf16.mxu0 %v685
    %747 = vmatpush2.bf16.msra.mxu0 %v684
    %748 = vmatprep.subr.bf16.mxu0 %v683
    %749 = vmatpush2.bf16.msra.mxu0 %v682
    %750 = vmatprep.subr.bf16.mxu0 %v681
    %751 = vmatpush2.bf16.msra.mxu0 %v680
    %752 = vmatprep.subr.bf16.mxu0 %v679
    %753 = vmatpush2.bf16.msra.mxu0 %v678
    %754 = vmatprep.subr.bf16.mxu0 %v677
    %755 = vmatpush2.bf16.msra.mxu0 %v676
    %756 = vmatprep.mubr.bf16.mxu0 %v503
    %757 = vmatmul.mubr.bf16.gmra.mxu0 %v502
    %v758 = vpop.f32.mrf.mxu0
    %v759 = vadd.f32 %v557, %v758
    %v760 = vpop.f32.mrf.mxu0
    %v761 = vadd.f32 %v561, %v760
    %v762 = vpop.f32.mrf.mxu0
    %v763 = vadd.f32 %v557, %v762
    %v764 = vpop.f32.mrf.mxu0
    %v765 = vadd.f32 %v561, %v764
    %766 = vmatprep.mubr.bf16.mxu0 %v505
    %767 = vmatmul.mubr.bf16.gmra.mxu0 %v504
    %v768 = vpop.f32.mrf.mxu0
    %v769 = vadd.f32 %v557, %v768
    %v770 = vpop.f32.mrf.mxu0
    %v771 = vadd.f32 %v561, %v770
    %v772 = vpop.f32.mrf.mxu0
    %v773 = vadd.f32 %v557, %v772
    %v774 = vpop.f32.mrf.mxu0
    %v775 = vadd.f32 %v561, %v774
    %776 = vmatprep.mubr.bf16.mxu0 %v507
    %777 = vmatmul.mubr.bf16.gmra.mxu0 %v506
    %v778 = vpop.f32.mrf.mxu0
    %v779 = vadd.f32 %v557, %v778
    %v780 = vpop.f32.mrf.mxu0
    %v781 = vadd.f32 %v561, %v780
    %v782 = vpop.f32.mrf.mxu0
    %v783 = vadd.f32 %v557, %v782
    %v784 = vpop.f32.mrf.mxu0
    %v785 = vadd.f32 %v561, %v784
    %786 = vmatprep.mubr.bf16.mxu0 %v509
    %787 = vmatmul.mubr.bf16.gmra.mxu0 %v508
    %v788 = vpop.f32.mrf.mxu0
    %v789 = vadd.f32 %v557, %v788
    %v790 = vpop.f32.mrf.mxu0
    %v791 = vadd.f32 %v561, %v790
    %v792 = vpop.f32.mrf.mxu0
    %v793 = vadd.f32 %v557, %v792
    %v794 = vpop.f32.mrf.mxu0
    %v795 = vadd.f32 %v561, %v794
    %796 = vmatprep.mubr.bf16.mxu0 %v511
    %797 = vmatmul.mubr.bf16.gmra.mxu0 %v510
    %v798 = vpop.f32.mrf.mxu0
    %v799 = vadd.f32 %v557, %v798
    %v800 = vpop.f32.mrf.mxu0
    %v801 = vadd.f32 %v561, %v800
    %v802 = vpop.f32.mrf.mxu0
    %v803 = vadd.f32 %v557, %v802
    %v804 = vpop.f32.mrf.mxu0
    %v805 = vadd.f32 %v561, %v804
    %806 = vmatprep.mubr.bf16.mxu0 %v513
    %807 = vmatmul.mubr.bf16.gmra.mxu0 %v512
    %v808 = vpop.f32.mrf.mxu0
    %v809 = vadd.f32 %v557, %v808
    %v810 = vpop.f32.mrf.mxu0
    %v811 = vadd.f32 %v561, %v810
    %v812 = vpop.f32.mrf.mxu0
    %v813 = vadd.f32 %v557, %v812
    %v814 = vpop.f32.mrf.mxu0
    %v815 = vadd.f32 %v561, %v814
    %816 = vmatprep.mubr.bf16.mxu0 %v515
    %817 = vmatmul.mubr.bf16.gmra.mxu0 %v514
    %v818 = vpop.f32.mrf.mxu0
    %v819 = vadd.f32 %v557, %v818
    %v820 = vpop.f32.mrf.mxu0
    %v821 = vadd.f32 %v561, %v820
    %v822 = vpop.f32.mrf.mxu0
    %v823 = vadd.f32 %v557, %v822
    %v824 = vpop.f32.mrf.mxu0
    %v825 = vadd.f32 %v561, %v824
    %826 = vmatprep.mubr.bf16.mxu0 %v517
    %827 = vmatmul.mubr.bf16.gmra.mxu0 %v516
    %v828 = vpop.f32.mrf.mxu0
    %v829 = vadd.f32 %v557, %v828
    %v830 = vpop.f32.mrf.mxu0
    %v831 = vadd.f32 %v561, %v830
    %v832 = vpop.f32.mrf.mxu0
    %v833 = vadd.f32 %v557, %v832
    %v834 = vpop.f32.mrf.mxu0
    %v835 = vadd.f32 %v561, %v834
    %836 = vdwg.mxu0
    %v837 = vmul.f32 %v759, 0.2
    %v838 = vmul.f32 %v761, 0.2
    %v839 = vmul.f32 %v763, 0.2
    %v840 = vmul.f32 %v765, 0.2
    %v841 = vmul.f32 %v769, 0.2
    %v842 = vmul.f32 %v771, 0.2
    %v843 = vmul.f32 %v773, 0.2
    %v844 = vmul.f32 %v775, 0.2
    %v845 = vmul.f32 %v779, 0.2
    %v846 = vmul.f32 %v781, 0.2
    %v847 = vmul.f32 %v783, 0.2
    %v848 = vmul.f32 %v785, 0.2
    %v849 = vmul.f32 %v789, 0.2
    %v850 = vmul.f32 %v791, 0.2
    %v851 = vmul.f32 %v793, 0.2
    %v852 = vmul.f32 %v795, 0.2
    %v853 = vmul.f32 %v799, 0.2
    %v854 = vmul.f32 %v801, 0.2
    %v855 = vmul.f32 %v803, 0.2
    %v856 = vmul.f32 %v805, 0.2
    %v857 = vmul.f32 %v809, 0.2
    %v858 = vmul.f32 %v811, 0.2
    %v859 = vmul.f32 %v813, 0.2
    %v860 = vmul.f32 %v815, 0.2
    %v861 = vmul.f32 %v819, 0.2
    %v862 = vmul.f32 %v821, 0.2
    %v863 = vmul.f32 %v823, 0.2
    %v864 = vmul.f32 %v825, 0.2
    %v865 = vmul.f32 %v829, 0.2
    %v866 = vmul.f32 %v831, 0.2
    %v867 = vmul.f32 %v833, 0.2
    %v868 = vmul.f32 %v835, 0.2
    %v869 = vmax.f32 %v759, %v837
    %v870 = vmax.f32 %v761, %v838
    %v871 = vmax.f32 %v763, %v839
    %v872 = vmax.f32 %v765, %v840
    %v873 = vmax.f32 %v769, %v841
    %v874 = vmax.f32 %v771, %v842
    %v875 = vmax.f32 %v773, %v843
    %v876 = vmax.f32 %v775, %v844
    %v877 = vmax.f32 %v779, %v845
    %v878 = vmax.f32 %v781, %v846
    %v879 = vmax.f32 %v783, %v847
    %v880 = vmax.f32 %v785, %v848
    %v881 = vmax.f32 %v789, %v849
    %v882 = vmax.f32 %v791, %v850
    %v883 = vmax.f32 %v793, %v851
    %v884 = vmax.f32 %v795, %v852
    %v885 = vmax.f32 %v799, %v853
    %v886 = vmax.f32 %v801, %v854
    %v887 = vmax.f32 %v803, %v855
    %v888 = vmax.f32 %v805, %v856
    %v889 = vmax.f32 %v809, %v857
    %v890 = vmax.f32 %v811, %v858
    %v891 = vmax.f32 %v813, %v859
    %v892 = vmax.f32 %v815, %v860
    %v893 = vmax.f32 %v819, %v861
    %v894 = vmax.f32 %v821, %v862
    %v895 = vmax.f32 %v823, %v863
    %v896 = vmax.f32 %v825, %v864
    %v897 = vmax.f32 %v829, %v865
    %v898 = vmax.f32 %v831, %v866
    %v899 = vmax.f32 %v833, %v867
    %v900 = vmax.f32 %v835, %v868
    %v901 = vpack.c.bf16 %v871, %v869
    %v902 = vpack.c.bf16 %v872, %v870
    %v903 = vpack.c.bf16 %v875, %v873
    %v904 = vpack.c.bf16 %v876, %v874
    %v905 = vpack.c.bf16 %v879, %v877
    %v906 = vpack.c.bf16 %v880, %v878
    %v907 = vpack.c.bf16 %v883, %v881
    %v908 = vpack.c.bf16 %v884, %v882
    %v909 = vpack.c.bf16 %v887, %v885
    %v910 = vpack.c.bf16 %v888, %v886
    %v911 = vpack.c.bf16 %v891, %v889
    %v912 = vpack.c.bf16 %v892, %v890
    %v913 = vpack.c.bf16 %v895, %v893
    %v914 = vpack.c.bf16 %v896, %v894
    %v915 = vpack.c.bf16 %v899, %v897
    %v916 = vpack.c.bf16 %v900, %v898
    %s917 = scalar_lea.vmem [#allocation7], 512
    %v918 = vld [vmem:[%s917] sm:$0xff]
    %v919 = vld [vmem:[%s917 + $0x8] sm:$0xff]
    %v920 = vld [vmem:[%s917 + $0x10] sm:$0xff]
    %v921 = vld [vmem:[%s917 + $0x18] sm:$0xff]
    %v922 = vld [vmem:[%s917 + $0x20] sm:$0xff]
    %v923 = vld [vmem:[%s917 + $0x28] sm:$0xff]
    %v924 = vld [vmem:[%s917 + $0x30] sm:$0xff]
    %v925 = vld [vmem:[%s917 + $0x38] sm:$0xff]
    %v926 = vld [vmem:[%s917 + $0x40] sm:$0xff]
    %v927 = vld [vmem:[%s917 + $0x48] sm:$0xff]
    %v928 = vld [vmem:[%s917 + $0x50] sm:$0xff]
    %v929 = vld [vmem:[%s917 + $0x58] sm:$0xff]
    %v930 = vld [vmem:[%s917 + $0x60] sm:$0xff]
    %v931 = vld [vmem:[%s917 + $0x68] sm:$0xff]
    %v932 = vld [vmem:[%s917 + $0x70] sm:$0xff]
    %v933 = vld [vmem:[%s917 + $0x78] sm:$0xff]
    %v934 = vld [vmem:[%s917 + $0x80] sm:$0xff]
    %v935 = vld [vmem:[%s917 + $0x88] sm:$0xff]
    %v936 = vld [vmem:[%s917 + $0x90] sm:$0xff]
    %v937 = vld [vmem:[%s917 + $0x98] sm:$0xff]
    %v938 = vld [vmem:[%s917 + $0xa0] sm:$0xff]
    %v939 = vld [vmem:[%s917 + $0xa8] sm:$0xff]
    %v940 = vld [vmem:[%s917 + $0xb0] sm:$0xff]
    %v941 = vld [vmem:[%s917 + $0xb8] sm:$0xff]
    %v942 = vld [vmem:[%s917 + $0xc0] sm:$0xff]
    %v943 = vld [vmem:[%s917 + $0xc8] sm:$0xff]
    %v944 = vld [vmem:[%s917 + $0xd0] sm:$0xff]
    %v945 = vld [vmem:[%s917 + $0xd8] sm:$0xff]
    %v946 = vld [vmem:[%s917 + $0xe0] sm:$0xff]
    %v947 = vld [vmem:[%s917 + $0xe8] sm:$0xff]
    %v948 = vld [vmem:[%s917 + $0xf0] sm:$0xff]
    %v949 = vld [vmem:[%s917 + $0xf8] sm:$0xff]
    %s950 = scalar_lea.vmem [#allocation8], 4
    %v951 = vld [vmem:[%s950] sm:$0x3]
    %v953 = vlaneseq
    %v954 = vshrl.u32 %v953, 7
    %v955 = vsub.s32 0, %v954
    %v956 = vrot.slane %v951, %v955
    %v957 = vlaneseq
    %v958 = vshrl.u32 %v957, 7
    %v959 = vsub.s32 1, %v958
    %v960 = vrot.slane %v951, %v959
    %v995 = vunpack.c.l.b16 %v918
    %v996 = vunpack.c.h.b16 %v918
    %v997 = vunpack.c.l.b16 %v919
    %v998 = vunpack.c.h.b16 %v919
    %v999 = vunpack.c.l.b16 %v920
    %v1000 = vunpack.c.h.b16 %v920
    %v1001 = vunpack.c.l.b16 %v921
    %v1002 = vunpack.c.h.b16 %v921
    %v1003 = vunpack.c.l.b16 %v922
    %v1004 = vunpack.c.h.b16 %v922
    %v1005 = vunpack.c.l.b16 %v923
    %v1006 = vunpack.c.h.b16 %v923
    %v1007 = vunpack.c.l.b16 %v924
    %v1008 = vunpack.c.h.b16 %v924
    %v1009 = vunpack.c.l.b16 %v925
    %v1010 = vunpack.c.h.b16 %v925
    %v1011 = vunpack.c.l.b16 %v926
    %v1012 = vunpack.c.h.b16 %v926
    %v1013 = vunpack.c.l.b16 %v927
    %v1014 = vunpack.c.h.b16 %v927
    %v1015 = vunpack.c.l.b16 %v928
    %v1016 = vunpack.c.h.b16 %v928
    %v1017 = vunpack.c.l.b16 %v929
    %v1018 = vunpack.c.h.b16 %v929
    %v1019 = vunpack.c.l.b16 %v930
    %v1020 = vunpack.c.h.b16 %v930
    %v1021 = vunpack.c.l.b16 %v931
    %v1022 = vunpack.c.h.b16 %v931
    %v1023 = vunpack.c.l.b16 %v932
    %v1024 = vunpack.c.h.b16 %v932
    %v1025 = vunpack.c.l.b16 %v933
    %v1026 = vunpack.c.h.b16 %v933
    %v1027 = vunpack.c.l.b16 %v934
    %v1028 = vunpack.c.h.b16 %v934
    %v1029 = vunpack.c.l.b16 %v935
    %v1030 = vunpack.c.h.b16 %v935
    %v1031 = vunpack.c.l.b16 %v936
    %v1032 = vunpack.c.h.b16 %v936
    %v1033 = vunpack.c.l.b16 %v937
    %v1034 = vunpack.c.h.b16 %v937
    %v1035 = vunpack.c.l.b16 %v938
    %v1036 = vunpack.c.h.b16 %v938
    %v1037 = vunpack.c.l.b16 %v939
    %v1038 = vunpack.c.h.b16 %v939
    %v1039 = vunpack.c.l.b16 %v940
    %v1040 = vunpack.c.h.b16 %v940
    %v1041 = vunpack.c.l.b16 %v941
    %v1042 = vunpack.c.h.b16 %v941
    %v1043 = vunpack.c.l.b16 %v942
    %v1044 = vunpack.c.h.b16 %v942
    %v1045 = vunpack.c.l.b16 %v943
    %v1046 = vunpack.c.h.b16 %v943
    %v1047 = vunpack.c.l.b16 %v944
    %v1048 = vunpack.c.h.b16 %v944
    %v1049 = vunpack.c.l.b16 %v945
    %v1050 = vunpack.c.h.b16 %v945
    %v1051 = vunpack.c.l.b16 %v946
    %v1052 = vunpack.c.h.b16 %v946
    %v1053 = vunpack.c.l.b16 %v947
    %v1054 = vunpack.c.h.b16 %v947
    %v1055 = vunpack.c.l.b16 %v948
    %v1056 = vunpack.c.h.b16 %v948
    %v1057 = vunpack.c.l.b16 %v949
    %v1058 = vunpack.c.h.b16 %v949
    %v1059 = vpack.c.b16 %v997, %v995
    %v1060 = vpack.c.b16 %v998, %v996
    %v1061 = vpack.c.b16 %v1001, %v999
    %v1062 = vpack.c.b16 %v1002, %v1000
    %v1063 = vpack.c.b16 %v1005, %v1003
    %v1064 = vpack.c.b16 %v1006, %v1004
    %v1065 = vpack.c.b16 %v1009, %v1007
    %v1066 = vpack.c.b16 %v1010, %v1008
    %v1067 = vpack.c.b16 %v1013, %v1011
    %v1068 = vpack.c.b16 %v1014, %v1012
    %v1069 = vpack.c.b16 %v1017, %v1015
    %v1070 = vpack.c.b16 %v1018, %v1016
    %v1071 = vpack.c.b16 %v1021, %v1019
    %v1072 = vpack.c.b16 %v1022, %v1020
    %v1073 = vpack.c.b16 %v1025, %v1023
    %v1074 = vpack.c.b16 %v1026, %v1024
    %v1075 = vpack.c.b16 %v1029, %v1027
    %v1076 = vpack.c.b16 %v1030, %v1028
    %v1077 = vpack.c.b16 %v1033, %v1031
    %v1078 = vpack.c.b16 %v1034, %v1032
    %v1079 = vpack.c.b16 %v1037, %v1035
    %v1080 = vpack.c.b16 %v1038, %v1036
    %v1081 = vpack.c.b16 %v1041, %v1039
    %v1082 = vpack.c.b16 %v1042, %v1040
    %v1083 = vpack.c.b16 %v1045, %v1043
    %v1084 = vpack.c.b16 %v1046, %v1044
    %v1085 = vpack.c.b16 %v1049, %v1047
    %v1086 = vpack.c.b16 %v1050, %v1048
    %v1087 = vpack.c.b16 %v1053, %v1051
    %v1088 = vpack.c.b16 %v1054, %v1052
    %v1089 = vpack.c.b16 %v1057, %v1055
    %v1090 = vpack.c.b16 %v1058, %v1056
    %1123 = vmatprep.subr.bf16.mxu0 %v1074
    %1124 = vmatpush1.bf16.msra.mxu0 %v1073
    %1125 = vmatprep.subr.bf16.mxu0 %v1072
    %1126 = vmatpush1.bf16.msra.mxu0 %v1071
    %1127 = vmatprep.subr.bf16.mxu0 %v1070
    %1128 = vmatpush1.bf16.msra.mxu0 %v1069
    %1129 = vmatprep.subr.bf16.mxu0 %v1068
    %1130 = vmatpush1.bf16.msra.mxu0 %v1067
    %1131 = vmatprep.subr.bf16.mxu0 %v1066
    %1132 = vmatpush1.bf16.msra.mxu0 %v1065
    %1133 = vmatprep.subr.bf16.mxu0 %v1064
    %1134 = vmatpush1.bf16.msra.mxu0 %v1063
    %1135 = vmatprep.subr.bf16.mxu0 %v1062
    %1136 = vmatpush1.bf16.msra.mxu0 %v1061
    %1137 = vmatprep.subr.bf16.mxu0 %v1060
    %1138 = vmatpush1.bf16.msra.mxu0 %v1059
    %1139 = vmatprep.subr.bf16.mxu0 %v1090
    %1140 = vmatpush2.bf16.msra.mxu0 %v1089
    %1141 = vmatprep.subr.bf16.mxu0 %v1088
    %1142 = vmatpush2.bf16.msra.mxu0 %v1087
    %1143 = vmatprep.subr.bf16.mxu0 %v1086
    %1144 = vmatpush2.bf16.msra.mxu0 %v1085
    %1145 = vmatprep.subr.bf16.mxu0 %v1084
    %1146 = vmatpush2.bf16.msra.mxu0 %v1083
    %1147 = vmatprep.subr.bf16.mxu0 %v1082
    %1148 = vmatpush2.bf16.msra.mxu0 %v1081
    %1149 = vmatprep.subr.bf16.mxu0 %v1080
    %1150 = vmatpush2.bf16.msra.mxu0 %v1079
    %1151 = vmatprep.subr.bf16.mxu0 %v1078
    %1152 = vmatpush2.bf16.msra.mxu0 %v1077
    %1153 = vmatprep.subr.bf16.mxu0 %v1076
    %1154 = vmatpush2.bf16.msra.mxu0 %v1075
    %1155 = vmatprep.mubr.bf16.mxu0 %v902
    %1156 = vmatmul.mubr.bf16.gmra.mxu0 %v901
    %v1157 = vpop.f32.mrf.mxu0
    %v1158 = vadd.f32 %v956, %v1157
    %v1159 = vpop.f32.mrf.mxu0
    %v1160 = vadd.f32 %v960, %v1159
    %v1161 = vpop.f32.mrf.mxu0
    %v1162 = vadd.f32 %v956, %v1161
    %v1163 = vpop.f32.mrf.mxu0
    %v1164 = vadd.f32 %v960, %v1163
    %1165 = vmatprep.mubr.bf16.mxu0 %v904
    %1166 = vmatmul.mubr.bf16.gmra.mxu0 %v903
    %v1167 = vpop.f32.mrf.mxu0
    %v1168 = vadd.f32 %v956, %v1167
    %v1169 = vpop.f32.mrf.mxu0
    %v1170 = vadd.f32 %v960, %v1169
    %v1171 = vpop.f32.mrf.mxu0
    %v1172 = vadd.f32 %v956, %v1171
    %v1173 = vpop.f32.mrf.mxu0
    %v1174 = vadd.f32 %v960, %v1173
    %1175 = vmatprep.mubr.bf16.mxu0 %v906
    %1176 = vmatmul.mubr.bf16.gmra.mxu0 %v905
    %v1177 = vpop.f32.mrf.mxu0
    %v1178 = vadd.f32 %v956, %v1177
    %v1179 = vpop.f32.mrf.mxu0
    %v1180 = vadd.f32 %v960, %v1179
    %v1181 = vpop.f32.mrf.mxu0
    %v1182 = vadd.f32 %v956, %v1181
    %v1183 = vpop.f32.mrf.mxu0
    %v1184 = vadd.f32 %v960, %v1183
    %1185 = vmatprep.mubr.bf16.mxu0 %v908
    %1186 = vmatmul.mubr.bf16.gmra.mxu0 %v907
    %v1187 = vpop.f32.mrf.mxu0
    %v1188 = vadd.f32 %v956, %v1187
    %v1189 = vpop.f32.mrf.mxu0
    %v1190 = vadd.f32 %v960, %v1189
    %v1191 = vpop.f32.mrf.mxu0
    %v1192 = vadd.f32 %v956, %v1191
    %v1193 = vpop.f32.mrf.mxu0
    %v1194 = vadd.f32 %v960, %v1193
    %1195 = vmatprep.mubr.bf16.mxu0 %v910
    %1196 = vmatmul.mubr.bf16.gmra.mxu0 %v909
    %v1197 = vpop.f32.mrf.mxu0
    %v1198 = vadd.f32 %v956, %v1197
    %v1199 = vpop.f32.mrf.mxu0
    %v1200 = vadd.f32 %v960, %v1199
    %v1201 = vpop.f32.mrf.mxu0
    %v1202 = vadd.f32 %v956, %v1201
    %v1203 = vpop.f32.mrf.mxu0
    %v1204 = vadd.f32 %v960, %v1203
    %1205 = vmatprep.mubr.bf16.mxu0 %v912
    %1206 = vmatmul.mubr.bf16.gmra.mxu0 %v911
    %v1207 = vpop.f32.mrf.mxu0
    %v1208 = vadd.f32 %v956, %v1207
    %v1209 = vpop.f32.mrf.mxu0
    %v1210 = vadd.f32 %v960, %v1209
    %v1211 = vpop.f32.mrf.mxu0
    %v1212 = vadd.f32 %v956, %v1211
    %v1213 = vpop.f32.mrf.mxu0
    %v1214 = vadd.f32 %v960, %v1213
    %1215 = vmatprep.mubr.bf16.mxu0 %v914
    %1216 = vmatmul.mubr.bf16.gmra.mxu0 %v913
    %v1217 = vpop.f32.mrf.mxu0
    %v1218 = vadd.f32 %v956, %v1217
    %v1219 = vpop.f32.mrf.mxu0
    %v1220 = vadd.f32 %v960, %v1219
    %v1221 = vpop.f32.mrf.mxu0
    %v1222 = vadd.f32 %v956, %v1221
    %v1223 = vpop.f32.mrf.mxu0
    %v1224 = vadd.f32 %v960, %v1223
    %1225 = vmatprep.mubr.bf16.mxu0 %v916
    %1226 = vmatmul.mubr.bf16.gmra.mxu0 %v915
    %v1227 = vpop.f32.mrf.mxu0
    %v1228 = vadd.f32 %v956, %v1227
    %v1229 = vpop.f32.mrf.mxu0
    %v1230 = vadd.f32 %v960, %v1229
    %v1231 = vpop.f32.mrf.mxu0
    %v1232 = vadd.f32 %v956, %v1231
    %v1233 = vpop.f32.mrf.mxu0
    %v1234 = vadd.f32 %v960, %v1233
    %1235 = vdwg.mxu0
    %v1236 = vmul.f32 %v1158, 0.2
    %v1237 = vmul.f32 %v1160, 0.2
    %v1238 = vmul.f32 %v1162, 0.2
    %v1239 = vmul.f32 %v1164, 0.2
    %v1240 = vmul.f32 %v1168, 0.2
    %v1241 = vmul.f32 %v1170, 0.2
    %v1242 = vmul.f32 %v1172, 0.2
    %v1243 = vmul.f32 %v1174, 0.2
    %v1244 = vmul.f32 %v1178, 0.2
    %v1245 = vmul.f32 %v1180, 0.2
    %v1246 = vmul.f32 %v1182, 0.2
    %v1247 = vmul.f32 %v1184, 0.2
    %v1248 = vmul.f32 %v1188, 0.2
    %v1249 = vmul.f32 %v1190, 0.2
    %v1250 = vmul.f32 %v1192, 0.2
    %v1251 = vmul.f32 %v1194, 0.2
    %v1252 = vmul.f32 %v1198, 0.2
    %v1253 = vmul.f32 %v1200, 0.2
    %v1254 = vmul.f32 %v1202, 0.2
    %v1255 = vmul.f32 %v1204, 0.2
    %v1256 = vmul.f32 %v1208, 0.2
    %v1257 = vmul.f32 %v1210, 0.2
    %v1258 = vmul.f32 %v1212, 0.2
    %v1259 = vmul.f32 %v1214, 0.2
    %v1260 = vmul.f32 %v1218, 0.2
    %v1261 = vmul.f32 %v1220, 0.2
    %v1262 = vmul.f32 %v1222, 0.2
    %v1263 = vmul.f32 %v1224, 0.2
    %v1264 = vmul.f32 %v1228, 0.2
    %v1265 = vmul.f32 %v1230, 0.2
    %v1266 = vmul.f32 %v1232, 0.2
    %v1267 = vmul.f32 %v1234, 0.2
    %v1268 = vmax.f32 %v1158, %v1236
    %v1269 = vmax.f32 %v1160, %v1237
    %v1270 = vmax.f32 %v1162, %v1238
    %v1271 = vmax.f32 %v1164, %v1239
    %v1272 = vmax.f32 %v1168, %v1240
    %v1273 = vmax.f32 %v1170, %v1241
    %v1274 = vmax.f32 %v1172, %v1242
    %v1275 = vmax.f32 %v1174, %v1243
    %v1276 = vmax.f32 %v1178, %v1244
    %v1277 = vmax.f32 %v1180, %v1245
    %v1278 = vmax.f32 %v1182, %v1246
    %v1279 = vmax.f32 %v1184, %v1247
    %v1280 = vmax.f32 %v1188, %v1248
    %v1281 = vmax.f32 %v1190, %v1249
    %v1282 = vmax.f32 %v1192, %v1250
    %v1283 = vmax.f32 %v1194, %v1251
    %v1284 = vmax.f32 %v1198, %v1252
    %v1285 = vmax.f32 %v1200, %v1253
    %v1286 = vmax.f32 %v1202, %v1254
    %v1287 = vmax.f32 %v1204, %v1255
    %v1288 = vmax.f32 %v1208, %v1256
    %v1289 = vmax.f32 %v1210, %v1257
    %v1290 = vmax.f32 %v1212, %v1258
    %v1291 = vmax.f32 %v1214, %v1259
    %v1292 = vmax.f32 %v1218, %v1260
    %v1293 = vmax.f32 %v1220, %v1261
    %v1294 = vmax.f32 %v1222, %v1262
    %v1295 = vmax.f32 %v1224, %v1263
    %v1296 = vmax.f32 %v1228, %v1264
    %v1297 = vmax.f32 %v1230, %v1265
    %v1298 = vmax.f32 %v1232, %v1266
    %v1299 = vmax.f32 %v1234, %v1267
    %v1300 = vpack.c.bf16 %v1270, %v1268
    %v1301 = vpack.c.bf16 %v1271, %v1269
    %v1302 = vpack.c.bf16 %v1274, %v1272
    %v1303 = vpack.c.bf16 %v1275, %v1273
    %v1304 = vpack.c.bf16 %v1278, %v1276
    %v1305 = vpack.c.bf16 %v1279, %v1277
    %v1306 = vpack.c.bf16 %v1282, %v1280
    %v1307 = vpack.c.bf16 %v1283, %v1281
    %v1308 = vpack.c.bf16 %v1286, %v1284
    %v1309 = vpack.c.bf16 %v1287, %v1285
    %v1310 = vpack.c.bf16 %v1290, %v1288
    %v1311 = vpack.c.bf16 %v1291, %v1289
    %v1312 = vpack.c.bf16 %v1294, %v1292
    %v1313 = vpack.c.bf16 %v1295, %v1293
    %v1314 = vpack.c.bf16 %v1298, %v1296
    %v1315 = vpack.c.bf16 %v1299, %v1297
    %s1316 = scalar_lea.vmem [#allocation7], 768
    %v1317 = vld [vmem:[%s1316] sm:$0xff]
    %v1318 = vld [vmem:[%s1316 + $0x8] sm:$0xff]
    %v1319 = vld [vmem:[%s1316 + $0x10] sm:$0xff]
    %v1320 = vld [vmem:[%s1316 + $0x18] sm:$0xff]
    %v1321 = vld [vmem:[%s1316 + $0x20] sm:$0xff]
    %v1322 = vld [vmem:[%s1316 + $0x28] sm:$0xff]
    %v1323 = vld [vmem:[%s1316 + $0x30] sm:$0xff]
    %v1324 = vld [vmem:[%s1316 + $0x38] sm:$0xff]
    %v1325 = vld [vmem:[%s1316 + $0x40] sm:$0xff]
    %v1326 = vld [vmem:[%s1316 + $0x48] sm:$0xff]
    %v1327 = vld [vmem:[%s1316 + $0x50] sm:$0xff]
    %v1328 = vld [vmem:[%s1316 + $0x58] sm:$0xff]
    %v1329 = vld [vmem:[%s1316 + $0x60] sm:$0xff]
    %v1330 = vld [vmem:[%s1316 + $0x68] sm:$0xff]
    %v1331 = vld [vmem:[%s1316 + $0x70] sm:$0xff]
    %v1332 = vld [vmem:[%s1316 + $0x78] sm:$0xff]
    %v1333 = vld [vmem:[%s1316 + $0x80] sm:$0xff]
    %v1334 = vld [vmem:[%s1316 + $0x88] sm:$0xff]
    %v1335 = vld [vmem:[%s1316 + $0x90] sm:$0xff]
    %v1336 = vld [vmem:[%s1316 + $0x98] sm:$0xff]
    %v1337 = vld [vmem:[%s1316 + $0xa0] sm:$0xff]
    %v1338 = vld [vmem:[%s1316 + $0xa8] sm:$0xff]
    %v1339 = vld [vmem:[%s1316 + $0xb0] sm:$0xff]
    %v1340 = vld [vmem:[%s1316 + $0xb8] sm:$0xff]
    %v1341 = vld [vmem:[%s1316 + $0xc0] sm:$0xff]
    %v1342 = vld [vmem:[%s1316 + $0xc8] sm:$0xff]
    %v1343 = vld [vmem:[%s1316 + $0xd0] sm:$0xff]
    %v1344 = vld [vmem:[%s1316 + $0xd8] sm:$0xff]
    %v1345 = vld [vmem:[%s1316 + $0xe0] sm:$0xff]
    %v1346 = vld [vmem:[%s1316 + $0xe8] sm:$0xff]
    %v1347 = vld [vmem:[%s1316 + $0xf0] sm:$0xff]
    %v1348 = vld [vmem:[%s1316 + $0xf8] sm:$0xff]
    %s1349 = scalar_lea.vmem [#allocation8], 6
    %v1350 = vld [vmem:[%s1349] sm:$0x3]
    %v1352 = vlaneseq
    %v1353 = vshrl.u32 %v1352, 7
    %v1354 = vsub.s32 0, %v1353
    %v1355 = vrot.slane %v1350, %v1354
    %v1356 = vlaneseq
    %v1357 = vshrl.u32 %v1356, 7
    %v1358 = vsub.s32 1, %v1357
    %v1359 = vrot.slane %v1350, %v1358
    %v1394 = vunpack.c.l.b16 %v1317
    %v1395 = vunpack.c.h.b16 %v1317
    %v1396 = vunpack.c.l.b16 %v1318
    %v1397 = vunpack.c.h.b16 %v1318
    %v1398 = vunpack.c.l.b16 %v1319
    %v1399 = vunpack.c.h.b16 %v1319
    %v1400 = vunpack.c.l.b16 %v1320
    %v1401 = vunpack.c.h.b16 %v1320
    %v1402 = vunpack.c.l.b16 %v1321
    %v1403 = vunpack.c.h.b16 %v1321
    %v1404 = vunpack.c.l.b16 %v1322
    %v1405 = vunpack.c.h.b16 %v1322
    %v1406 = vunpack.c.l.b16 %v1323
    %v1407 = vunpack.c.h.b16 %v1323
    %v1408 = vunpack.c.l.b16 %v1324
    %v1409 = vunpack.c.h.b16 %v1324
    %v1410 = vunpack.c.l.b16 %v1325
    %v1411 = vunpack.c.h.b16 %v1325
    %v1412 = vunpack.c.l.b16 %v1326
    %v1413 = vunpack.c.h.b16 %v1326
    %v1414 = vunpack.c.l.b16 %v1327
    %v1415 = vunpack.c.h.b16 %v1327
    %v1416 = vunpack.c.l.b16 %v1328
    %v1417 = vunpack.c.h.b16 %v1328
    %v1418 = vunpack.c.l.b16 %v1329
    %v1419 = vunpack.c.h.b16 %v1329
    %v1420 = vunpack.c.l.b16 %v1330
    %v1421 = vunpack.c.h.b16 %v1330
    %v1422 = vunpack.c.l.b16 %v1331
    %v1423 = vunpack.c.h.b16 %v1331
    %v1424 = vunpack.c.l.b16 %v1332
    %v1425 = vunpack.c.h.b16 %v1332
    %v1426 = vunpack.c.l.b16 %v1333
    %v1427 = vunpack.c.h.b16 %v1333
    %v1428 = vunpack.c.l.b16 %v1334
    %v1429 = vunpack.c.h.b16 %v1334
    %v1430 = vunpack.c.l.b16 %v1335
    %v1431 = vunpack.c.h.b16 %v1335
    %v1432 = vunpack.c.l.b16 %v1336
    %v1433 = vunpack.c.h.b16 %v1336
    %v1434 = vunpack.c.l.b16 %v1337
    %v1435 = vunpack.c.h.b16 %v1337
    %v1436 = vunpack.c.l.b16 %v1338
    %v1437 = vunpack.c.h.b16 %v1338
    %v1438 = vunpack.c.l.b16 %v1339
    %v1439 = vunpack.c.h.b16 %v1339
    %v1440 = vunpack.c.l.b16 %v1340
    %v1441 = vunpack.c.h.b16 %v1340
    %v1442 = vunpack.c.l.b16 %v1341
    %v1443 = vunpack.c.h.b16 %v1341
    %v1444 = vunpack.c.l.b16 %v1342
    %v1445 = vunpack.c.h.b16 %v1342
    %v1446 = vunpack.c.l.b16 %v1343
    %v1447 = vunpack.c.h.b16 %v1343
    %v1448 = vunpack.c.l.b16 %v1344
    %v1449 = vunpack.c.h.b16 %v1344
    %v1450 = vunpack.c.l.b16 %v1345
    %v1451 = vunpack.c.h.b16 %v1345
    %v1452 = vunpack.c.l.b16 %v1346
    %v1453 = vunpack.c.h.b16 %v1346
    %v1454 = vunpack.c.l.b16 %v1347
    %v1455 = vunpack.c.h.b16 %v1347
    %v1456 = vunpack.c.l.b16 %v1348
    %v1457 = vunpack.c.h.b16 %v1348
    %v1458 = vpack.c.b16 %v1396, %v1394
    %v1459 = vpack.c.b16 %v1397, %v1395
    %v1460 = vpack.c.b16 %v1400, %v1398
    %v1461 = vpack.c.b16 %v1401, %v1399
    %v1462 = vpack.c.b16 %v1404, %v1402
    %v1463 = vpack.c.b16 %v1405, %v1403
    %v1464 = vpack.c.b16 %v1408, %v1406
    %v1465 = vpack.c.b16 %v1409, %v1407
    %v1466 = vpack.c.b16 %v1412, %v1410
    %v1467 = vpack.c.b16 %v1413, %v1411
    %v1468 = vpack.c.b16 %v1416, %v1414
    %v1469 = vpack.c.b16 %v1417, %v1415
    %v1470 = vpack.c.b16 %v1420, %v1418
    %v1471 = vpack.c.b16 %v1421, %v1419
    %v1472 = vpack.c.b16 %v1424, %v1422
    %v1473 = vpack.c.b16 %v1425, %v1423
    %v1474 = vpack.c.b16 %v1428, %v1426
    %v1475 = vpack.c.b16 %v1429, %v1427
    %v1476 = vpack.c.b16 %v1432, %v1430
    %v1477 = vpack.c.b16 %v1433, %v1431
    %v1478 = vpack.c.b16 %v1436, %v1434
    %v1479 = vpack.c.b16 %v1437, %v1435
    %v1480 = vpack.c.b16 %v1440, %v1438
    %v1481 = vpack.c.b16 %v1441, %v1439
    %v1482 = vpack.c.b16 %v1444, %v1442
    %v1483 = vpack.c.b16 %v1445, %v1443
    %v1484 = vpack.c.b16 %v1448, %v1446
    %v1485 = vpack.c.b16 %v1449, %v1447
    %v1486 = vpack.c.b16 %v1452, %v1450
    %v1487 = vpack.c.b16 %v1453, %v1451
    %v1488 = vpack.c.b16 %v1456, %v1454
    %v1489 = vpack.c.b16 %v1457, %v1455
    %1522 = vmatprep.subr.bf16.mxu0 %v1473
    %1523 = vmatpush1.bf16.msra.mxu0 %v1472
    %1524 = vmatprep.subr.bf16.mxu0 %v1471
    %1525 = vmatpush1.bf16.msra.mxu0 %v1470
    %1526 = vmatprep.subr.bf16.mxu0 %v1469
    %1527 = vmatpush1.bf16.msra.mxu0 %v1468
    %1528 = vmatprep.subr.bf16.mxu0 %v1467
    %1529 = vmatpush1.bf16.msra.mxu0 %v1466
    %1530 = vmatprep.subr.bf16.mxu0 %v1465
    %1531 = vmatpush1.bf16.msra.mxu0 %v1464
    %1532 = vmatprep.subr.bf16.mxu0 %v1463
    %1533 = vmatpush1.bf16.msra.mxu0 %v1462
    %1534 = vmatprep.subr.bf16.mxu0 %v1461
    %1535 = vmatpush1.bf16.msra.mxu0 %v1460
    %1536 = vmatprep.subr.bf16.mxu0 %v1459
    %1537 = vmatpush1.bf16.msra.mxu0 %v1458
    %1538 = vmatprep.subr.bf16.mxu0 %v1489
    %1539 = vmatpush2.bf16.msra.mxu0 %v1488
    %1540 = vmatprep.subr.bf16.mxu0 %v1487
    %1541 = vmatpush2.bf16.msra.mxu0 %v1486
    %1542 = vmatprep.subr.bf16.mxu0 %v1485
    %1543 = vmatpush2.bf16.msra.mxu0 %v1484
    %1544 = vmatprep.subr.bf16.mxu0 %v1483
    %1545 = vmatpush2.bf16.msra.mxu0 %v1482
    %1546 = vmatprep.subr.bf16.mxu0 %v1481
    %1547 = vmatpush2.bf16.msra.mxu0 %v1480
    %1548 = vmatprep.subr.bf16.mxu0 %v1479
    %1549 = vmatpush2.bf16.msra.mxu0 %v1478
    %1550 = vmatprep.subr.bf16.mxu0 %v1477
    %1551 = vmatpush2.bf16.msra.mxu0 %v1476
    %1552 = vmatprep.subr.bf16.mxu0 %v1475
    %1553 = vmatpush2.bf16.msra.mxu0 %v1474
    %1554 = vmatprep.mubr.bf16.mxu0 %v1301
    %1555 = vmatmul.mubr.bf16.gmra.mxu0 %v1300
    %v1556 = vpop.f32.mrf.mxu0
    %v1557 = vadd.f32 %v1355, %v1556
    %v1558 = vpop.f32.mrf.mxu0
    %v1559 = vadd.f32 %v1359, %v1558
    %v1560 = vpop.f32.mrf.mxu0
    %v1561 = vadd.f32 %v1355, %v1560
    %v1562 = vpop.f32.mrf.mxu0
    %v1563 = vadd.f32 %v1359, %v1562
    %1564 = vmatprep.mubr.bf16.mxu0 %v1303
    %1565 = vmatmul.mubr.bf16.gmra.mxu0 %v1302
    %v1566 = vpop.f32.mrf.mxu0
    %v1567 = vadd.f32 %v1355, %v1566
    %v1568 = vpop.f32.mrf.mxu0
    %v1569 = vadd.f32 %v1359, %v1568
    %v1570 = vpop.f32.mrf.mxu0
    %v1571 = vadd.f32 %v1355, %v1570
    %v1572 = vpop.f32.mrf.mxu0
    %v1573 = vadd.f32 %v1359, %v1572
    %1574 = vmatprep.mubr.bf16.mxu0 %v1305
    %1575 = vmatmul.mubr.bf16.gmra.mxu0 %v1304
    %v1576 = vpop.f32.mrf.mxu0
    %v1577 = vadd.f32 %v1355, %v1576
    %v1578 = vpop.f32.mrf.mxu0
    %v1579 = vadd.f32 %v1359, %v1578
    %v1580 = vpop.f32.mrf.mxu0
    %v1581 = vadd.f32 %v1355, %v1580
    %v1582 = vpop.f32.mrf.mxu0
    %v1583 = vadd.f32 %v1359, %v1582
    %1584 = vmatprep.mubr.bf16.mxu0 %v1307
    %1585 = vmatmul.mubr.bf16.gmra.mxu0 %v1306
    %v1586 = vpop.f32.mrf.mxu0
    %v1587 = vadd.f32 %v1355, %v1586
    %v1588 = vpop.f32.mrf.mxu0
    %v1589 = vadd.f32 %v1359, %v1588
    %v1590 = vpop.f32.mrf.mxu0
    %v1591 = vadd.f32 %v1355, %v1590
    %v1592 = vpop.f32.mrf.mxu0
    %v1593 = vadd.f32 %v1359, %v1592
    %1594 = vmatprep.mubr.bf16.mxu0 %v1309
    %1595 = vmatmul.mubr.bf16.gmra.mxu0 %v1308
    %v1596 = vpop.f32.mrf.mxu0
    %v1597 = vadd.f32 %v1355, %v1596
    %v1598 = vpop.f32.mrf.mxu0
    %v1599 = vadd.f32 %v1359, %v1598
    %v1600 = vpop.f32.mrf.mxu0
    %v1601 = vadd.f32 %v1355, %v1600
    %v1602 = vpop.f32.mrf.mxu0
    %v1603 = vadd.f32 %v1359, %v1602
    %1604 = vmatprep.mubr.bf16.mxu0 %v1311
    %1605 = vmatmul.mubr.bf16.gmra.mxu0 %v1310
    %v1606 = vpop.f32.mrf.mxu0
    %v1607 = vadd.f32 %v1355, %v1606
    %v1608 = vpop.f32.mrf.mxu0
    %v1609 = vadd.f32 %v1359, %v1608
    %v1610 = vpop.f32.mrf.mxu0
    %v1611 = vadd.f32 %v1355, %v1610
    %v1612 = vpop.f32.mrf.mxu0
    %v1613 = vadd.f32 %v1359, %v1612
    %1614 = vmatprep.mubr.bf16.mxu0 %v1313
    %1615 = vmatmul.mubr.bf16.gmra.mxu0 %v1312
    %v1616 = vpop.f32.mrf.mxu0
    %v1617 = vadd.f32 %v1355, %v1616
    %v1618 = vpop.f32.mrf.mxu0
    %v1619 = vadd.f32 %v1359, %v1618
    %v1620 = vpop.f32.mrf.mxu0
    %v1621 = vadd.f32 %v1355, %v1620
    %v1622 = vpop.f32.mrf.mxu0
    %v1623 = vadd.f32 %v1359, %v1622
    %1624 = vmatprep.mubr.bf16.mxu0 %v1315
    %1625 = vmatmul.mubr.bf16.gmra.mxu0 %v1314
    %v1626 = vpop.f32.mrf.mxu0
    %v1627 = vadd.f32 %v1355, %v1626
    %v1628 = vpop.f32.mrf.mxu0
    %v1629 = vadd.f32 %v1359, %v1628
    %v1630 = vpop.f32.mrf.mxu0
    %v1631 = vadd.f32 %v1355, %v1630
    %v1632 = vpop.f32.mrf.mxu0
    %v1633 = vadd.f32 %v1359, %v1632
    %1634 = vdwg.mxu0
    %v1635 = vmul.f32 %v1557, 0.2
    %v1636 = vmul.f32 %v1559, 0.2
    %v1637 = vmul.f32 %v1561, 0.2
    %v1638 = vmul.f32 %v1563, 0.2
    %v1639 = vmul.f32 %v1567, 0.2
    %v1640 = vmul.f32 %v1569, 0.2
    %v1641 = vmul.f32 %v1571, 0.2
    %v1642 = vmul.f32 %v1573, 0.2
    %v1643 = vmul.f32 %v1577, 0.2
    %v1644 = vmul.f32 %v1579, 0.2
    %v1645 = vmul.f32 %v1581, 0.2
    %v1646 = vmul.f32 %v1583, 0.2
    %v1647 = vmul.f32 %v1587, 0.2
    %v1648 = vmul.f32 %v1589, 0.2
    %v1649 = vmul.f32 %v1591, 0.2
    %v1650 = vmul.f32 %v1593, 0.2
    %v1651 = vmul.f32 %v1597, 0.2
    %v1652 = vmul.f32 %v1599, 0.2
    %v1653 = vmul.f32 %v1601, 0.2
    %v1654 = vmul.f32 %v1603, 0.2
    %v1655 = vmul.f32 %v1607, 0.2
    %v1656 = vmul.f32 %v1609, 0.2
    %v1657 = vmul.f32 %v1611, 0.2
    %v1658 = vmul.f32 %v1613, 0.2
    %v1659 = vmul.f32 %v1617, 0.2
    %v1660 = vmul.f32 %v1619, 0.2
    %v1661 = vmul.f32 %v1621, 0.2
    %v1662 = vmul.f32 %v1623, 0.2
    %v1663 = vmul.f32 %v1627, 0.2
    %v1664 = vmul.f32 %v1629, 0.2
    %v1665 = vmul.f32 %v1631, 0.2
    %v1666 = vmul.f32 %v1633, 0.2
    %v1667 = vmax.f32 %v1557, %v1635
    %v1668 = vmax.f32 %v1559, %v1636
    %v1669 = vmax.f32 %v1561, %v1637
    %v1670 = vmax.f32 %v1563, %v1638
    %v1671 = vmax.f32 %v1567, %v1639
    %v1672 = vmax.f32 %v1569, %v1640
    %v1673 = vmax.f32 %v1571, %v1641
    %v1674 = vmax.f32 %v1573, %v1642
    %v1675 = vmax.f32 %v1577, %v1643
    %v1676 = vmax.f32 %v1579, %v1644
    %v1677 = vmax.f32 %v1581, %v1645
    %v1678 = vmax.f32 %v1583, %v1646
    %v1679 = vmax.f32 %v1587, %v1647
    %v1680 = vmax.f32 %v1589, %v1648
    %v1681 = vmax.f32 %v1591, %v1649
    %v1682 = vmax.f32 %v1593, %v1650
    %v1683 = vmax.f32 %v1597, %v1651
    %v1684 = vmax.f32 %v1599, %v1652
    %v1685 = vmax.f32 %v1601, %v1653
    %v1686 = vmax.f32 %v1603, %v1654
    %v1687 = vmax.f32 %v1607, %v1655
    %v1688 = vmax.f32 %v1609, %v1656
    %v1689 = vmax.f32 %v1611, %v1657
    %v1690 = vmax.f32 %v1613, %v1658
    %v1691 = vmax.f32 %v1617, %v1659
    %v1692 = vmax.f32 %v1619, %v1660
    %v1693 = vmax.f32 %v1621, %v1661
    %v1694 = vmax.f32 %v1623, %v1662
    %v1695 = vmax.f32 %v1627, %v1663
    %v1696 = vmax.f32 %v1629, %v1664
    %v1697 = vmax.f32 %v1631, %v1665
    %v1698 = vmax.f32 %v1633, %v1666
    %v1699 = vpack.c.bf16 %v1669, %v1667
    %v1700 = vpack.c.bf16 %v1670, %v1668
    %v1701 = vpack.c.bf16 %v1673, %v1671
    %v1702 = vpack.c.bf16 %v1674, %v1672
    %v1703 = vpack.c.bf16 %v1677, %v1675
    %v1704 = vpack.c.bf16 %v1678, %v1676
    %v1705 = vpack.c.bf16 %v1681, %v1679
    %v1706 = vpack.c.bf16 %v1682, %v1680
    %v1707 = vpack.c.bf16 %v1685, %v1683
    %v1708 = vpack.c.bf16 %v1686, %v1684
    %v1709 = vpack.c.bf16 %v1689, %v1687
    %v1710 = vpack.c.bf16 %v1690, %v1688
    %v1711 = vpack.c.bf16 %v1693, %v1691
    %v1712 = vpack.c.bf16 %v1694, %v1692
    %v1713 = vpack.c.bf16 %v1697, %v1695
    %v1714 = vpack.c.bf16 %v1698, %v1696
    %s1715 = scalar_lea.vmem [#allocation7], 1024
    %v1716 = vld [vmem:[%s1715] sm:$0xff]
    %v1717 = vld [vmem:[%s1715 + $0x8] sm:$0xff]
    %v1718 = vld [vmem:[%s1715 + $0x10] sm:$0xff]
    %v1719 = vld [vmem:[%s1715 + $0x18] sm:$0xff]
    %v1720 = vld [vmem:[%s1715 + $0x20] sm:$0xff]
    %v1721 = vld [vmem:[%s1715 + $0x28] sm:$0xff]
    %v1722 = vld [vmem:[%s1715 + $0x30] sm:$0xff]
    %v1723 = vld [vmem:[%s1715 + $0x38] sm:$0xff]
    %v1724 = vld [vmem:[%s1715 + $0x40] sm:$0xff]
    %v1725 = vld [vmem:[%s1715 + $0x48] sm:$0xff]
    %v1726 = vld [vmem:[%s1715 + $0x50] sm:$0xff]
    %v1727 = vld [vmem:[%s1715 + $0x58] sm:$0xff]
    %v1728 = vld [vmem:[%s1715 + $0x60] sm:$0xff]
    %v1729 = vld [vmem:[%s1715 + $0x68] sm:$0xff]
    %v1730 = vld [vmem:[%s1715 + $0x70] sm:$0xff]
    %v1731 = vld [vmem:[%s1715 + $0x78] sm:$0xff]
    %v1732 = vld [vmem:[%s1715 + $0x80] sm:$0xff]
    %v1733 = vld [vmem:[%s1715 + $0x88] sm:$0xff]
    %v1734 = vld [vmem:[%s1715 + $0x90] sm:$0xff]
    %v1735 = vld [vmem:[%s1715 + $0x98] sm:$0xff]
    %v1736 = vld [vmem:[%s1715 + $0xa0] sm:$0xff]
    %v1737 = vld [vmem:[%s1715 + $0xa8] sm:$0xff]
    %v1738 = vld [vmem:[%s1715 + $0xb0] sm:$0xff]
    %v1739 = vld [vmem:[%s1715 + $0xb8] sm:$0xff]
    %v1740 = vld [vmem:[%s1715 + $0xc0] sm:$0xff]
    %v1741 = vld [vmem:[%s1715 + $0xc8] sm:$0xff]
    %v1742 = vld [vmem:[%s1715 + $0xd0] sm:$0xff]
    %v1743 = vld [vmem:[%s1715 + $0xd8] sm:$0xff]
    %v1744 = vld [vmem:[%s1715 + $0xe0] sm:$0xff]
    %v1745 = vld [vmem:[%s1715 + $0xe8] sm:$0xff]
    %v1746 = vld [vmem:[%s1715 + $0xf0] sm:$0xff]
    %v1747 = vld [vmem:[%s1715 + $0xf8] sm:$0xff]
    %s1748 = scalar_lea.vmem [#allocation8], 8
    %v1749 = vld [vmem:[%s1748] sm:$0x3]
    %v1751 = vlaneseq
    %v1752 = vshrl.u32 %v1751, 7
    %v1753 = vsub.s32 0, %v1752
    %v1754 = vrot.slane %v1749, %v1753
    %v1755 = vlaneseq
    %v1756 = vshrl.u32 %v1755, 7
    %v1757 = vsub.s32 1, %v1756
    %v1758 = vrot.slane %v1749, %v1757
    %v1793 = vunpack.c.l.b16 %v1716
    %v1794 = vunpack.c.h.b16 %v1716
    %v1795 = vunpack.c.l.b16 %v1717
    %v1796 = vunpack.c.h.b16 %v1717
    %v1797 = vunpack.c.l.b16 %v1718
    %v1798 = vunpack.c.h.b16 %v1718
    %v1799 = vunpack.c.l.b16 %v1719
    %v1800 = vunpack.c.h.b16 %v1719
    %v1801 = vunpack.c.l.b16 %v1720
    %v1802 = vunpack.c.h.b16 %v1720
    %v1803 = vunpack.c.l.b16 %v1721
    %v1804 = vunpack.c.h.b16 %v1721
    %v1805 = vunpack.c.l.b16 %v1722
    %v1806 = vunpack.c.h.b16 %v1722
    %v1807 = vunpack.c.l.b16 %v1723
    %v1808 = vunpack.c.h.b16 %v1723
    %v1809 = vunpack.c.l.b16 %v1724
    %v1810 = vunpack.c.h.b16 %v1724
    %v1811 = vunpack.c.l.b16 %v1725
    %v1812 = vunpack.c.h.b16 %v1725
    %v1813 = vunpack.c.l.b16 %v1726
    %v1814 = vunpack.c.h.b16 %v1726
    %v1815 = vunpack.c.l.b16 %v1727
    %v1816 = vunpack.c.h.b16 %v1727
    %v1817 = vunpack.c.l.b16 %v1728
    %v1818 = vunpack.c.h.b16 %v1728
    %v1819 = vunpack.c.l.b16 %v1729
    %v1820 = vunpack.c.h.b16 %v1729
    %v1821 = vunpack.c.l.b16 %v1730
    %v1822 = vunpack.c.h.b16 %v1730
    %v1823 = vunpack.c.l.b16 %v1731
    %v1824 = vunpack.c.h.b16 %v1731
    %v1825 = vunpack.c.l.b16 %v1732
    %v1826 = vunpack.c.h.b16 %v1732
    %v1827 = vunpack.c.l.b16 %v1733
    %v1828 = vunpack.c.h.b16 %v1733
    %v1829 = vunpack.c.l.b16 %v1734
    %v1830 = vunpack.c.h.b16 %v1734
    %v1831 = vunpack.c.l.b16 %v1735
    %v1832 = vunpack.c.h.b16 %v1735
    %v1833 = vunpack.c.l.b16 %v1736
    %v1834 = vunpack.c.h.b16 %v1736
    %v1835 = vunpack.c.l.b16 %v1737
    %v1836 = vunpack.c.h.b16 %v1737
    %v1837 = vunpack.c.l.b16 %v1738
    %v1838 = vunpack.c.h.b16 %v1738
    %v1839 = vunpack.c.l.b16 %v1739
    %v1840 = vunpack.c.h.b16 %v1739
    %v1841 = vunpack.c.l.b16 %v1740
    %v1842 = vunpack.c.h.b16 %v1740
    %v1843 = vunpack.c.l.b16 %v1741
    %v1844 = vunpack.c.h.b16 %v1741
    %v1845 = vunpack.c.l.b16 %v1742
    %v1846 = vunpack.c.h.b16 %v1742
    %v1847 = vunpack.c.l.b16 %v1743
    %v1848 = vunpack.c.h.b16 %v1743
    %v1849 = vunpack.c.l.b16 %v1744
    %v1850 = vunpack.c.h.b16 %v1744
    %v1851 = vunpack.c.l.b16 %v1745
    %v1852 = vunpack.c.h.b16 %v1745
    %v1853 = vunpack.c.l.b16 %v1746
    %v1854 = vunpack.c.h.b16 %v1746
    %v1855 = vunpack.c.l.b16 %v1747
    %v1856 = vunpack.c.h.b16 %v1747
    %v1857 = vpack.c.b16 %v1795, %v1793
    %v1858 = vpack.c.b16 %v1796, %v1794
    %v1859 = vpack.c.b16 %v1799, %v1797
    %v1860 = vpack.c.b16 %v1800, %v1798
    %v1861 = vpack.c.b16 %v1803, %v1801
    %v1862 = vpack.c.b16 %v1804, %v1802
    %v1863 = vpack.c.b16 %v1807, %v1805
    %v1864 = vpack.c.b16 %v1808, %v1806
    %v1865 = vpack.c.b16 %v1811, %v1809
    %v1866 = vpack.c.b16 %v1812, %v1810
    %v1867 = vpack.c.b16 %v1815, %v1813
    %v1868 = vpack.c.b16 %v1816, %v1814
    %v1869 = vpack.c.b16 %v1819, %v1817
    %v1870 = vpack.c.b16 %v1820, %v1818
    %v1871 = vpack.c.b16 %v1823, %v1821
    %v1872 = vpack.c.b16 %v1824, %v1822
    %v1873 = vpack.c.b16 %v1827, %v1825
    %v1874 = vpack.c.b16 %v1828, %v1826
    %v1875 = vpack.c.b16 %v1831, %v1829
    %v1876 = vpack.c.b16 %v1832, %v1830
    %v1877 = vpack.c.b16 %v1835, %v1833
    %v1878 = vpack.c.b16 %v1836, %v1834
    %v1879 = vpack.c.b16 %v1839, %v1837
    %v1880 = vpack.c.b16 %v1840, %v1838
    %v1881 = vpack.c.b16 %v1843, %v1841
    %v1882 = vpack.c.b16 %v1844, %v1842
    %v1883 = vpack.c.b16 %v1847, %v1845
    %v1884 = vpack.c.b16 %v1848, %v1846
    %v1885 = vpack.c.b16 %v1851, %v1849
    %v1886 = vpack.c.b16 %v1852, %v1850
    %v1887 = vpack.c.b16 %v1855, %v1853
    %v1888 = vpack.c.b16 %v1856, %v1854
    %1921 = vmatprep.subr.bf16.mxu0 %v1872
    %1922 = vmatpush1.bf16.msra.mxu0 %v1871
    %1923 = vmatprep.subr.bf16.mxu0 %v1870
    %1924 = vmatpush1.bf16.msra.mxu0 %v1869
    %1925 = vmatprep.subr.bf16.mxu0 %v1868
    %1926 = vmatpush1.bf16.msra.mxu0 %v1867
    %1927 = vmatprep.subr.bf16.mxu0 %v1866
    %1928 = vmatpush1.bf16.msra.mxu0 %v1865
    %1929 = vmatprep.subr.bf16.mxu0 %v1864
    %1930 = vmatpush1.bf16.msra.mxu0 %v1863
    %1931 = vmatprep.subr.bf16.mxu0 %v1862
    %1932 = vmatpush1.bf16.msra.mxu0 %v1861
    %1933 = vmatprep.subr.bf16.mxu0 %v1860
    %1934 = vmatpush1.bf16.msra.mxu0 %v1859
    %1935 = vmatprep.subr.bf16.mxu0 %v1858
    %1936 = vmatpush1.bf16.msra.mxu0 %v1857
    %1937 = vmatprep.subr.bf16.mxu0 %v1888
    %1938 = vmatpush2.bf16.msra.mxu0 %v1887
    %1939 = vmatprep.subr.bf16.mxu0 %v1886
    %1940 = vmatpush2.bf16.msra.mxu0 %v1885
    %1941 = vmatprep.subr.bf16.mxu0 %v1884
    %1942 = vmatpush2.bf16.msra.mxu0 %v1883
    %1943 = vmatprep.subr.bf16.mxu0 %v1882
    %1944 = vmatpush2.bf16.msra.mxu0 %v1881
    %1945 = vmatprep.subr.bf16.mxu0 %v1880
    %1946 = vmatpush2.bf16.msra.mxu0 %v1879
    %1947 = vmatprep.subr.bf16.mxu0 %v1878
    %1948 = vmatpush2.bf16.msra.mxu0 %v1877
    %1949 = vmatprep.subr.bf16.mxu0 %v1876
    %1950 = vmatpush2.bf16.msra.mxu0 %v1875
    %1951 = vmatprep.subr.bf16.mxu0 %v1874
    %1952 = vmatpush2.bf16.msra.mxu0 %v1873
    %1953 = vmatprep.mubr.bf16.mxu0 %v1700
    %1954 = vmatmul.mubr.bf16.gmra.mxu0 %v1699
    %v1955 = vpop.f32.mrf.mxu0
    %v1956 = vadd.f32 %v1754, %v1955
    %v1957 = vpop.f32.mrf.mxu0
    %v1958 = vadd.f32 %v1758, %v1957
    %v1959 = vpop.f32.mrf.mxu0
    %v1960 = vadd.f32 %v1754, %v1959
    %v1961 = vpop.f32.mrf.mxu0
    %v1962 = vadd.f32 %v1758, %v1961
    %1963 = vmatprep.mubr.bf16.mxu0 %v1702
    %1964 = vmatmul.mubr.bf16.gmra.mxu0 %v1701
    %v1965 = vpop.f32.mrf.mxu0
    %v1966 = vadd.f32 %v1754, %v1965
    %v1967 = vpop.f32.mrf.mxu0
    %v1968 = vadd.f32 %v1758, %v1967
    %v1969 = vpop.f32.mrf.mxu0
    %v1970 = vadd.f32 %v1754, %v1969
    %v1971 = vpop.f32.mrf.mxu0
    %v1972 = vadd.f32 %v1758, %v1971
    %1973 = vmatprep.mubr.bf16.mxu0 %v1704
    %1974 = vmatmul.mubr.bf16.gmra.mxu0 %v1703
    %v1975 = vpop.f32.mrf.mxu0
    %v1976 = vadd.f32 %v1754, %v1975
    %v1977 = vpop.f32.mrf.mxu0
    %v1978 = vadd.f32 %v1758, %v1977
    %v1979 = vpop.f32.mrf.mxu0
    %v1980 = vadd.f32 %v1754, %v1979
    %v1981 = vpop.f32.mrf.mxu0
    %v1982 = vadd.f32 %v1758, %v1981
    %1983 = vmatprep.mubr.bf16.mxu0 %v1706
    %1984 = vmatmul.mubr.bf16.gmra.mxu0 %v1705
    %v1985 = vpop.f32.mrf.mxu0
    %v1986 = vadd.f32 %v1754, %v1985
    %v1987 = vpop.f32.mrf.mxu0
    %v1988 = vadd.f32 %v1758, %v1987
    %v1989 = vpop.f32.mrf.mxu0
    %v1990 = vadd.f32 %v1754, %v1989
    %v1991 = vpop.f32.mrf.mxu0
    %v1992 = vadd.f32 %v1758, %v1991
    %1993 = vmatprep.mubr.bf16.mxu0 %v1708
    %1994 = vmatmul.mubr.bf16.gmra.mxu0 %v1707
    %v1995 = vpop.f32.mrf.mxu0
    %v1996 = vadd.f32 %v1754, %v1995
    %v1997 = vpop.f32.mrf.mxu0
    %v1998 = vadd.f32 %v1758, %v1997
    %v1999 = vpop.f32.mrf.mxu0
    %v2000 = vadd.f32 %v1754, %v1999
    %v2001 = vpop.f32.mrf.mxu0
    %v2002 = vadd.f32 %v1758, %v2001
    %2003 = vmatprep.mubr.bf16.mxu0 %v1710
    %2004 = vmatmul.mubr.bf16.gmra.mxu0 %v1709
    %v2005 = vpop.f32.mrf.mxu0
    %v2006 = vadd.f32 %v1754, %v2005
    %v2007 = vpop.f32.mrf.mxu0
    %v2008 = vadd.f32 %v1758, %v2007
    %v2009 = vpop.f32.mrf.mxu0
    %v2010 = vadd.f32 %v1754, %v2009
    %v2011 = vpop.f32.mrf.mxu0
    %v2012 = vadd.f32 %v1758, %v2011
    %2013 = vmatprep.mubr.bf16.mxu0 %v1712
    %2014 = vmatmul.mubr.bf16.gmra.mxu0 %v1711
    %v2015 = vpop.f32.mrf.mxu0
    %v2016 = vadd.f32 %v1754, %v2015
    %v2017 = vpop.f32.mrf.mxu0
    %v2018 = vadd.f32 %v1758, %v2017
    %v2019 = vpop.f32.mrf.mxu0
    %v2020 = vadd.f32 %v1754, %v2019
    %v2021 = vpop.f32.mrf.mxu0
    %v2022 = vadd.f32 %v1758, %v2021
    %2023 = vmatprep.mubr.bf16.mxu0 %v1714
    %2024 = vmatmul.mubr.bf16.gmra.mxu0 %v1713
    %v2025 = vpop.f32.mrf.mxu0
    %v2026 = vadd.f32 %v1754, %v2025
    %v2027 = vpop.f32.mrf.mxu0
    %v2028 = vadd.f32 %v1758, %v2027
    %v2029 = vpop.f32.mrf.mxu0
    %v2030 = vadd.f32 %v1754, %v2029
    %v2031 = vpop.f32.mrf.mxu0
    %v2032 = vadd.f32 %v1758, %v2031
    %2033 = vdwg.mxu0
    %v2034 = vmul.f32 %v1956, 0.2
    %v2035 = vmul.f32 %v1958, 0.2
    %v2036 = vmul.f32 %v1960, 0.2
    %v2037 = vmul.f32 %v1962, 0.2
    %v2038 = vmul.f32 %v1966, 0.2
    %v2039 = vmul.f32 %v1968, 0.2
    %v2040 = vmul.f32 %v1970, 0.2
    %v2041 = vmul.f32 %v1972, 0.2
    %v2042 = vmul.f32 %v1976, 0.2
    %v2043 = vmul.f32 %v1978, 0.2
    %v2044 = vmul.f32 %v1980, 0.2
    %v2045 = vmul.f32 %v1982, 0.2
    %v2046 = vmul.f32 %v1986, 0.2
    %v2047 = vmul.f32 %v1988, 0.2
    %v2048 = vmul.f32 %v1990, 0.2
    %v2049 = vmul.f32 %v1992, 0.2
    %v2050 = vmul.f32 %v1996, 0.2
    %v2051 = vmul.f32 %v1998, 0.2
    %v2052 = vmul.f32 %v2000, 0.2
    %v2053 = vmul.f32 %v2002, 0.2
    %v2054 = vmul.f32 %v2006, 0.2
    %v2055 = vmul.f32 %v2008, 0.2
    %v2056 = vmul.f32 %v2010, 0.2
    %v2057 = vmul.f32 %v2012, 0.2
    %v2058 = vmul.f32 %v2016, 0.2
    %v2059 = vmul.f32 %v2018, 0.2
    %v2060 = vmul.f32 %v2020, 0.2
    %v2061 = vmul.f32 %v2022, 0.2
    %v2062 = vmul.f32 %v2026, 0.2
    %v2063 = vmul.f32 %v2028, 0.2
    %v2064 = vmul.f32 %v2030, 0.2
    %v2065 = vmul.f32 %v2032, 0.2
    %v2066 = vmax.f32 %v1956, %v2034
    %v2067 = vmax.f32 %v1958, %v2035
    %v2068 = vmax.f32 %v1960, %v2036
    %v2069 = vmax.f32 %v1962, %v2037
    %v2070 = vmax.f32 %v1966, %v2038
    %v2071 = vmax.f32 %v1968, %v2039
    %v2072 = vmax.f32 %v1970, %v2040
    %v2073 = vmax.f32 %v1972, %v2041
    %v2074 = vmax.f32 %v1976, %v2042
    %v2075 = vmax.f32 %v1978, %v2043
    %v2076 = vmax.f32 %v1980, %v2044
    %v2077 = vmax.f32 %v1982, %v2045
    %v2078 = vmax.f32 %v1986, %v2046
    %v2079 = vmax.f32 %v1988, %v2047
    %v2080 = vmax.f32 %v1990, %v2048
    %v2081 = vmax.f32 %v1992, %v2049
    %v2082 = vmax.f32 %v1996, %v2050
    %v2083 = vmax.f32 %v1998, %v2051
    %v2084 = vmax.f32 %v2000, %v2052
    %v2085 = vmax.f32 %v2002, %v2053
    %v2086 = vmax.f32 %v2006, %v2054
    %v2087 = vmax.f32 %v2008, %v2055
    %v2088 = vmax.f32 %v2010, %v2056
    %v2089 = vmax.f32 %v2012, %v2057
    %v2090 = vmax.f32 %v2016, %v2058
    %v2091 = vmax.f32 %v2018, %v2059
    %v2092 = vmax.f32 %v2020, %v2060
    %v2093 = vmax.f32 %v2022, %v2061
    %v2094 = vmax.f32 %v2026, %v2062
    %v2095 = vmax.f32 %v2028, %v2063
    %v2096 = vmax.f32 %v2030, %v2064
    %v2097 = vmax.f32 %v2032, %v2065
    %v2098 = vpack.c.bf16 %v2068, %v2066
    %v2099 = vpack.c.bf16 %v2069, %v2067
    %v2100 = vpack.c.bf16 %v2072, %v2070
    %v2101 = vpack.c.bf16 %v2073, %v2071
    %v2102 = vpack.c.bf16 %v2076, %v2074
    %v2103 = vpack.c.bf16 %v2077, %v2075
    %v2104 = vpack.c.bf16 %v2080, %v2078
    %v2105 = vpack.c.bf16 %v2081, %v2079
    %v2106 = vpack.c.bf16 %v2084, %v2082
    %v2107 = vpack.c.bf16 %v2085, %v2083
    %v2108 = vpack.c.bf16 %v2088, %v2086
    %v2109 = vpack.c.bf16 %v2089, %v2087
    %v2110 = vpack.c.bf16 %v2092, %v2090
    %v2111 = vpack.c.bf16 %v2093, %v2091
    %v2112 = vpack.c.bf16 %v2096, %v2094
    %v2113 = vpack.c.bf16 %v2097, %v2095
    %s2114 = scalar_lea.vmem [#allocation7], 1280
    %v2115 = vld [vmem:[%s2114] sm:$0xff]
    %v2116 = vld [vmem:[%s2114 + $0x8] sm:$0xff]
    %v2117 = vld [vmem:[%s2114 + $0x10] sm:$0xff]
    %v2118 = vld [vmem:[%s2114 + $0x18] sm:$0xff]
    %v2119 = vld [vmem:[%s2114 + $0x20] sm:$0xff]
    %v2120 = vld [vmem:[%s2114 + $0x28] sm:$0xff]
    %v2121 = vld [vmem:[%s2114 + $0x30] sm:$0xff]
    %v2122 = vld [vmem:[%s2114 + $0x38] sm:$0xff]
    %v2123 = vld [vmem:[%s2114 + $0x40] sm:$0xff]
    %v2124 = vld [vmem:[%s2114 + $0x48] sm:$0xff]
    %v2125 = vld [vmem:[%s2114 + $0x50] sm:$0xff]
    %v2126 = vld [vmem:[%s2114 + $0x58] sm:$0xff]
    %v2127 = vld [vmem:[%s2114 + $0x60] sm:$0xff]
    %v2128 = vld [vmem:[%s2114 + $0x68] sm:$0xff]
    %v2129 = vld [vmem:[%s2114 + $0x70] sm:$0xff]
    %v2130 = vld [vmem:[%s2114 + $0x78] sm:$0xff]
    %v2131 = vld [vmem:[%s2114 + $0x80] sm:$0xff]
    %v2132 = vld [vmem:[%s2114 + $0x88] sm:$0xff]
    %v2133 = vld [vmem:[%s2114 + $0x90] sm:$0xff]
    %v2134 = vld [vmem:[%s2114 + $0x98] sm:$0xff]
    %v2135 = vld [vmem:[%s2114 + $0xa0] sm:$0xff]
    %v2136 = vld [vmem:[%s2114 + $0xa8] sm:$0xff]
    %v2137 = vld [vmem:[%s2114 + $0xb0] sm:$0xff]
    %v2138 = vld [vmem:[%s2114 + $0xb8] sm:$0xff]
    %v2139 = vld [vmem:[%s2114 + $0xc0] sm:$0xff]
    %v2140 = vld [vmem:[%s2114 + $0xc8] sm:$0xff]
    %v2141 = vld [vmem:[%s2114 + $0xd0] sm:$0xff]
    %v2142 = vld [vmem:[%s2114 + $0xd8] sm:$0xff]
    %v2143 = vld [vmem:[%s2114 + $0xe0] sm:$0xff]
    %v2144 = vld [vmem:[%s2114 + $0xe8] sm:$0xff]
    %v2145 = vld [vmem:[%s2114 + $0xf0] sm:$0xff]
    %v2146 = vld [vmem:[%s2114 + $0xf8] sm:$0xff]
    %s2147 = scalar_lea.vmem [#allocation8], 10
    %v2148 = vld [vmem:[%s2147] sm:$0x3]
    %v2150 = vlaneseq
    %v2151 = vshrl.u32 %v2150, 7
    %v2152 = vsub.s32 0, %v2151
    %v2153 = vrot.slane %v2148, %v2152
    %v2154 = vlaneseq
    %v2155 = vshrl.u32 %v2154, 7
    %v2156 = vsub.s32 1, %v2155
    %v2157 = vrot.slane %v2148, %v2156
    %v2192 = vunpack.c.l.b16 %v2115
    %v2193 = vunpack.c.h.b16 %v2115
    %v2194 = vunpack.c.l.b16 %v2116
    %v2195 = vunpack.c.h.b16 %v2116
    %v2196 = vunpack.c.l.b16 %v2117
    %v2197 = vunpack.c.h.b16 %v2117
    %v2198 = vunpack.c.l.b16 %v2118
    %v2199 = vunpack.c.h.b16 %v2118
    %v2200 = vunpack.c.l.b16 %v2119
    %v2201 = vunpack.c.h.b16 %v2119
    %v2202 = vunpack.c.l.b16 %v2120
    %v2203 = vunpack.c.h.b16 %v2120
    %v2204 = vunpack.c.l.b16 %v2121
    %v2205 = vunpack.c.h.b16 %v2121
    %v2206 = vunpack.c.l.b16 %v2122
    %v2207 = vunpack.c.h.b16 %v2122
    %v2208 = vunpack.c.l.b16 %v2123
    %v2209 = vunpack.c.h.b16 %v2123
    %v2210 = vunpack.c.l.b16 %v2124
    %v2211 = vunpack.c.h.b16 %v2124
    %v2212 = vunpack.c.l.b16 %v2125
    %v2213 = vunpack.c.h.b16 %v2125
    %v2214 = vunpack.c.l.b16 %v2126
    %v2215 = vunpack.c.h.b16 %v2126
    %v2216 = vunpack.c.l.b16 %v2127
    %v2217 = vunpack.c.h.b16 %v2127
    %v2218 = vunpack.c.l.b16 %v2128
    %v2219 = vunpack.c.h.b16 %v2128
    %v2220 = vunpack.c.l.b16 %v2129
    %v2221 = vunpack.c.h.b16 %v2129
    %v2222 = vunpack.c.l.b16 %v2130
    %v2223 = vunpack.c.h.b16 %v2130
    %v2224 = vunpack.c.l.b16 %v2131
    %v2225 = vunpack.c.h.b16 %v2131
    %v2226 = vunpack.c.l.b16 %v2132
    %v2227 = vunpack.c.h.b16 %v2132
    %v2228 = vunpack.c.l.b16 %v2133
    %v2229 = vunpack.c.h.b16 %v2133
    %v2230 = vunpack.c.l.b16 %v2134
    %v2231 = vunpack.c.h.b16 %v2134
    %v2232 = vunpack.c.l.b16 %v2135
    %v2233 = vunpack.c.h.b16 %v2135
    %v2234 = vunpack.c.l.b16 %v2136
    %v2235 = vunpack.c.h.b16 %v2136
    %v2236 = vunpack.c.l.b16 %v2137
    %v2237 = vunpack.c.h.b16 %v2137
    %v2238 = vunpack.c.l.b16 %v2138
    %v2239 = vunpack.c.h.b16 %v2138
    %v2240 = vunpack.c.l.b16 %v2139
    %v2241 = vunpack.c.h.b16 %v2139
    %v2242 = vunpack.c.l.b16 %v2140
    %v2243 = vunpack.c.h.b16 %v2140
    %v2244 = vunpack.c.l.b16 %v2141
    %v2245 = vunpack.c.h.b16 %v2141
    %v2246 = vunpack.c.l.b16 %v2142
    %v2247 = vunpack.c.h.b16 %v2142
    %v2248 = vunpack.c.l.b16 %v2143
    %v2249 = vunpack.c.h.b16 %v2143
    %v2250 = vunpack.c.l.b16 %v2144
    %v2251 = vunpack.c.h.b16 %v2144
    %v2252 = vunpack.c.l.b16 %v2145
    %v2253 = vunpack.c.h.b16 %v2145
    %v2254 = vunpack.c.l.b16 %v2146
    %v2255 = vunpack.c.h.b16 %v2146
    %v2256 = vpack.c.b16 %v2194, %v2192
    %v2257 = vpack.c.b16 %v2195, %v2193
    %v2258 = vpack.c.b16 %v2198, %v2196
    %v2259 = vpack.c.b16 %v2199, %v2197
    %v2260 = vpack.c.b16 %v2202, %v2200
    %v2261 = vpack.c.b16 %v2203, %v2201
    %v2262 = vpack.c.b16 %v2206, %v2204
    %v2263 = vpack.c.b16 %v2207, %v2205
    %v2264 = vpack.c.b16 %v2210, %v2208
    %v2265 = vpack.c.b16 %v2211, %v2209
    %v2266 = vpack.c.b16 %v2214, %v2212
    %v2267 = vpack.c.b16 %v2215, %v2213
    %v2268 = vpack.c.b16 %v2218, %v2216
    %v2269 = vpack.c.b16 %v2219, %v2217
    %v2270 = vpack.c.b16 %v2222, %v2220
    %v2271 = vpack.c.b16 %v2223, %v2221
    %v2272 = vpack.c.b16 %v2226, %v2224
    %v2273 = vpack.c.b16 %v2227, %v2225
    %v2274 = vpack.c.b16 %v2230, %v2228
    %v2275 = vpack.c.b16 %v2231, %v2229
    %v2276 = vpack.c.b16 %v2234, %v2232
    %v2277 = vpack.c.b16 %v2235, %v2233
    %v2278 = vpack.c.b16 %v2238, %v2236
    %v2279 = vpack.c.b16 %v2239, %v2237
    %v2280 = vpack.c.b16 %v2242, %v2240
    %v2281 = vpack.c.b16 %v2243, %v2241
    %v2282 = vpack.c.b16 %v2246, %v2244
    %v2283 = vpack.c.b16 %v2247, %v2245
    %v2284 = vpack.c.b16 %v2250, %v2248
    %v2285 = vpack.c.b16 %v2251, %v2249
    %v2286 = vpack.c.b16 %v2254, %v2252
    %v2287 = vpack.c.b16 %v2255, %v2253
    %2320 = vmatprep.subr.bf16.mxu0 %v2271
    %2321 = vmatpush1.bf16.msra.mxu0 %v2270
    %2322 = vmatprep.subr.bf16.mxu0 %v2269
    %2323 = vmatpush1.bf16.msra.mxu0 %v2268
    %2324 = vmatprep.subr.bf16.mxu0 %v2267
    %2325 = vmatpush1.bf16.msra.mxu0 %v2266
    %2326 = vmatprep.subr.bf16.mxu0 %v2265
    %2327 = vmatpush1.bf16.msra.mxu0 %v2264
    %2328 = vmatprep.subr.bf16.mxu0 %v2263
    %2329 = vmatpush1.bf16.msra.mxu0 %v2262
    %2330 = vmatprep.subr.bf16.mxu0 %v2261
    %2331 = vmatpush1.bf16.msra.mxu0 %v2260
    %2332 = vmatprep.subr.bf16.mxu0 %v2259
    %2333 = vmatpush1.bf16.msra.mxu0 %v2258
    %2334 = vmatprep.subr.bf16.mxu0 %v2257
    %2335 = vmatpush1.bf16.msra.mxu0 %v2256
    %2336 = vmatprep.subr.bf16.mxu0 %v2287
    %2337 = vmatpush2.bf16.msra.mxu0 %v2286
    %2338 = vmatprep.subr.bf16.mxu0 %v2285
    %2339 = vmatpush2.bf16.msra.mxu0 %v2284
    %2340 = vmatprep.subr.bf16.mxu0 %v2283
    %2341 = vmatpush2.bf16.msra.mxu0 %v2282
    %2342 = vmatprep.subr.bf16.mxu0 %v2281
    %2343 = vmatpush2.bf16.msra.mxu0 %v2280
    %2344 = vmatprep.subr.bf16.mxu0 %v2279
    %2345 = vmatpush2.bf16.msra.mxu0 %v2278
    %2346 = vmatprep.subr.bf16.mxu0 %v2277
    %2347 = vmatpush2.bf16.msra.mxu0 %v2276
    %2348 = vmatprep.subr.bf16.mxu0 %v2275
    %2349 = vmatpush2.bf16.msra.mxu0 %v2274
    %2350 = vmatprep.subr.bf16.mxu0 %v2273
    %2351 = vmatpush2.bf16.msra.mxu0 %v2272
    %2352 = vmatprep.mubr.bf16.mxu0 %v2099
    %2353 = vmatmul.mubr.bf16.gmra.mxu0 %v2098
    %v2354 = vpop.f32.mrf.mxu0
    %v2355 = vadd.f32 %v2153, %v2354
    %v2356 = vpop.f32.mrf.mxu0
    %v2357 = vadd.f32 %v2157, %v2356
    %v2358 = vpop.f32.mrf.mxu0
    %v2359 = vadd.f32 %v2153, %v2358
    %v2360 = vpop.f32.mrf.mxu0
    %v2361 = vadd.f32 %v2157, %v2360
    %2362 = vmatprep.mubr.bf16.mxu0 %v2101
    %2363 = vmatmul.mubr.bf16.gmra.mxu0 %v2100
    %v2364 = vpop.f32.mrf.mxu0
    %v2365 = vadd.f32 %v2153, %v2364
    %v2366 = vpop.f32.mrf.mxu0
    %v2367 = vadd.f32 %v2157, %v2366
    %v2368 = vpop.f32.mrf.mxu0
    %v2369 = vadd.f32 %v2153, %v2368
    %v2370 = vpop.f32.mrf.mxu0
    %v2371 = vadd.f32 %v2157, %v2370
    %2372 = vmatprep.mubr.bf16.mxu0 %v2103
    %2373 = vmatmul.mubr.bf16.gmra.mxu0 %v2102
    %v2374 = vpop.f32.mrf.mxu0
    %v2375 = vadd.f32 %v2153, %v2374
    %v2376 = vpop.f32.mrf.mxu0
    %v2377 = vadd.f32 %v2157, %v2376
    %v2378 = vpop.f32.mrf.mxu0
    %v2379 = vadd.f32 %v2153, %v2378
    %v2380 = vpop.f32.mrf.mxu0
    %v2381 = vadd.f32 %v2157, %v2380
    %2382 = vmatprep.mubr.bf16.mxu0 %v2105
    %2383 = vmatmul.mubr.bf16.gmra.mxu0 %v2104
    %v2384 = vpop.f32.mrf.mxu0
    %v2385 = vadd.f32 %v2153, %v2384
    %v2386 = vpop.f32.mrf.mxu0
    %v2387 = vadd.f32 %v2157, %v2386
    %v2388 = vpop.f32.mrf.mxu0
    %v2389 = vadd.f32 %v2153, %v2388
    %v2390 = vpop.f32.mrf.mxu0
    %v2391 = vadd.f32 %v2157, %v2390
    %2392 = vmatprep.mubr.bf16.mxu0 %v2107
    %2393 = vmatmul.mubr.bf16.gmra.mxu0 %v2106
    %v2394 = vpop.f32.mrf.mxu0
    %v2395 = vadd.f32 %v2153, %v2394
    %v2396 = vpop.f32.mrf.mxu0
    %v2397 = vadd.f32 %v2157, %v2396
    %v2398 = vpop.f32.mrf.mxu0
    %v2399 = vadd.f32 %v2153, %v2398
    %v2400 = vpop.f32.mrf.mxu0
    %v2401 = vadd.f32 %v2157, %v2400
    %2402 = vmatprep.mubr.bf16.mxu0 %v2109
    %2403 = vmatmul.mubr.bf16.gmra.mxu0 %v2108
    %v2404 = vpop.f32.mrf.mxu0
    %v2405 = vadd.f32 %v2153, %v2404
    %v2406 = vpop.f32.mrf.mxu0
    %v2407 = vadd.f32 %v2157, %v2406
    %v2408 = vpop.f32.mrf.mxu0
    %v2409 = vadd.f32 %v2153, %v2408
    %v2410 = vpop.f32.mrf.mxu0
    %v2411 = vadd.f32 %v2157, %v2410
    %2412 = vmatprep.mubr.bf16.mxu0 %v2111
    %2413 = vmatmul.mubr.bf16.gmra.mxu0 %v2110
    %v2414 = vpop.f32.mrf.mxu0
    %v2415 = vadd.f32 %v2153, %v2414
    %v2416 = vpop.f32.mrf.mxu0
    %v2417 = vadd.f32 %v2157, %v2416
    %v2418 = vpop.f32.mrf.mxu0
    %v2419 = vadd.f32 %v2153, %v2418
    %v2420 = vpop.f32.mrf.mxu0
    %v2421 = vadd.f32 %v2157, %v2420
    %2422 = vmatprep.mubr.bf16.mxu0 %v2113
    %2423 = vmatmul.mubr.bf16.gmra.mxu0 %v2112
    %v2424 = vpop.f32.mrf.mxu0
    %v2425 = vadd.f32 %v2153, %v2424
    %v2426 = vpop.f32.mrf.mxu0
    %v2427 = vadd.f32 %v2157, %v2426
    %v2428 = vpop.f32.mrf.mxu0
    %v2429 = vadd.f32 %v2153, %v2428
    %v2430 = vpop.f32.mrf.mxu0
    %v2431 = vadd.f32 %v2157, %v2430
    %2432 = vdwg.mxu0
    %v2433 = vmul.f32 %v2355, 0.2
    %v2434 = vmul.f32 %v2357, 0.2
    %v2435 = vmul.f32 %v2359, 0.2
    %v2436 = vmul.f32 %v2361, 0.2
    %v2437 = vmul.f32 %v2365, 0.2
    %v2438 = vmul.f32 %v2367, 0.2
    %v2439 = vmul.f32 %v2369, 0.2
    %v2440 = vmul.f32 %v2371, 0.2
    %v2441 = vmul.f32 %v2375, 0.2
    %v2442 = vmul.f32 %v2377, 0.2
    %v2443 = vmul.f32 %v2379, 0.2
    %v2444 = vmul.f32 %v2381, 0.2
    %v2445 = vmul.f32 %v2385, 0.2
    %v2446 = vmul.f32 %v2387, 0.2
    %v2447 = vmul.f32 %v2389, 0.2
    %v2448 = vmul.f32 %v2391, 0.2
    %v2449 = vmul.f32 %v2395, 0.2
    %v2450 = vmul.f32 %v2397, 0.2
    %v2451 = vmul.f32 %v2399, 0.2
    %v2452 = vmul.f32 %v2401, 0.2
    %v2453 = vmul.f32 %v2405, 0.2
    %v2454 = vmul.f32 %v2407, 0.2
    %v2455 = vmul.f32 %v2409, 0.2
    %v2456 = vmul.f32 %v2411, 0.2
    %v2457 = vmul.f32 %v2415, 0.2
    %v2458 = vmul.f32 %v2417, 0.2
    %v2459 = vmul.f32 %v2419, 0.2
    %v2460 = vmul.f32 %v2421, 0.2
    %v2461 = vmul.f32 %v2425, 0.2
    %v2462 = vmul.f32 %v2427, 0.2
    %v2463 = vmul.f32 %v2429, 0.2
    %v2464 = vmul.f32 %v2431, 0.2
    %v2465 = vmax.f32 %v2355, %v2433
    %v2466 = vmax.f32 %v2357, %v2434
    %v2467 = vmax.f32 %v2359, %v2435
    %v2468 = vmax.f32 %v2361, %v2436
    %v2469 = vmax.f32 %v2365, %v2437
    %v2470 = vmax.f32 %v2367, %v2438
    %v2471 = vmax.f32 %v2369, %v2439
    %v2472 = vmax.f32 %v2371, %v2440
    %v2473 = vmax.f32 %v2375, %v2441
    %v2474 = vmax.f32 %v2377, %v2442
    %v2475 = vmax.f32 %v2379, %v2443
    %v2476 = vmax.f32 %v2381, %v2444
    %v2477 = vmax.f32 %v2385, %v2445
    %v2478 = vmax.f32 %v2387, %v2446
    %v2479 = vmax.f32 %v2389, %v2447
    %v2480 = vmax.f32 %v2391, %v2448
    %v2481 = vmax.f32 %v2395, %v2449
    %v2482 = vmax.f32 %v2397, %v2450
    %v2483 = vmax.f32 %v2399, %v2451
    %v2484 = vmax.f32 %v2401, %v2452
    %v2485 = vmax.f32 %v2405, %v2453
    %v2486 = vmax.f32 %v2407, %v2454
    %v2487 = vmax.f32 %v2409, %v2455
    %v2488 = vmax.f32 %v2411, %v2456
    %v2489 = vmax.f32 %v2415, %v2457
    %v2490 = vmax.f32 %v2417, %v2458
    %v2491 = vmax.f32 %v2419, %v2459
    %v2492 = vmax.f32 %v2421, %v2460
    %v2493 = vmax.f32 %v2425, %v2461
    %v2494 = vmax.f32 %v2427, %v2462
    %v2495 = vmax.f32 %v2429, %v2463
    %v2496 = vmax.f32 %v2431, %v2464
    %v2497 = vpack.c.bf16 %v2467, %v2465
    %v2498 = vpack.c.bf16 %v2468, %v2466
    %v2499 = vpack.c.bf16 %v2471, %v2469
    %v2500 = vpack.c.bf16 %v2472, %v2470
    %v2501 = vpack.c.bf16 %v2475, %v2473
    %v2502 = vpack.c.bf16 %v2476, %v2474
    %v2503 = vpack.c.bf16 %v2479, %v2477
    %v2504 = vpack.c.bf16 %v2480, %v2478
    %v2505 = vpack.c.bf16 %v2483, %v2481
    %v2506 = vpack.c.bf16 %v2484, %v2482
    %v2507 = vpack.c.bf16 %v2487, %v2485
    %v2508 = vpack.c.bf16 %v2488, %v2486
    %v2509 = vpack.c.bf16 %v2491, %v2489
    %v2510 = vpack.c.bf16 %v2492, %v2490
    %v2511 = vpack.c.bf16 %v2495, %v2493
    %v2512 = vpack.c.bf16 %v2496, %v2494
    %s2513 = scalar_lea.vmem [#allocation7], 1536
    %v2514 = vld [vmem:[%s2513] sm:$0xff]
    %v2515 = vld [vmem:[%s2513 + $0x8] sm:$0xff]
    %v2516 = vld [vmem:[%s2513 + $0x10] sm:$0xff]
    %v2517 = vld [vmem:[%s2513 + $0x18] sm:$0xff]
    %v2518 = vld [vmem:[%s2513 + $0x20] sm:$0xff]
    %v2519 = vld [vmem:[%s2513 + $0x28] sm:$0xff]
    %v2520 = vld [vmem:[%s2513 + $0x30] sm:$0xff]
    %v2521 = vld [vmem:[%s2513 + $0x38] sm:$0xff]
    %v2522 = vld [vmem:[%s2513 + $0x40] sm:$0xff]
    %v2523 = vld [vmem:[%s2513 + $0x48] sm:$0xff]
    %v2524 = vld [vmem:[%s2513 + $0x50] sm:$0xff]
    %v2525 = vld [vmem:[%s2513 + $0x58] sm:$0xff]
    %v2526 = vld [vmem:[%s2513 + $0x60] sm:$0xff]
    %v2527 = vld [vmem:[%s2513 + $0x68] sm:$0xff]
    %v2528 = vld [vmem:[%s2513 + $0x70] sm:$0xff]
    %v2529 = vld [vmem:[%s2513 + $0x78] sm:$0xff]
    %v2530 = vld [vmem:[%s2513 + $0x80] sm:$0xff]
    %v2531 = vld [vmem:[%s2513 + $0x88] sm:$0xff]
    %v2532 = vld [vmem:[%s2513 + $0x90] sm:$0xff]
    %v2533 = vld [vmem:[%s2513 + $0x98] sm:$0xff]
    %v2534 = vld [vmem:[%s2513 + $0xa0] sm:$0xff]
    %v2535 = vld [vmem:[%s2513 + $0xa8] sm:$0xff]
    %v2536 = vld [vmem:[%s2513 + $0xb0] sm:$0xff]
    %v2537 = vld [vmem:[%s2513 + $0xb8] sm:$0xff]
    %v2538 = vld [vmem:[%s2513 + $0xc0] sm:$0xff]
    %v2539 = vld [vmem:[%s2513 + $0xc8] sm:$0xff]
    %v2540 = vld [vmem:[%s2513 + $0xd0] sm:$0xff]
    %v2541 = vld [vmem:[%s2513 + $0xd8] sm:$0xff]
    %v2542 = vld [vmem:[%s2513 + $0xe0] sm:$0xff]
    %v2543 = vld [vmem:[%s2513 + $0xe8] sm:$0xff]
    %v2544 = vld [vmem:[%s2513 + $0xf0] sm:$0xff]
    %v2545 = vld [vmem:[%s2513 + $0xf8] sm:$0xff]
    %s2546 = scalar_lea.vmem [#allocation8], 12
    %v2547 = vld [vmem:[%s2546] sm:$0x3]
    %v2549 = vlaneseq
    %v2550 = vshrl.u32 %v2549, 7
    %v2551 = vsub.s32 0, %v2550
    %v2552 = vrot.slane %v2547, %v2551
    %v2553 = vlaneseq
    %v2554 = vshrl.u32 %v2553, 7
    %v2555 = vsub.s32 1, %v2554
    %v2556 = vrot.slane %v2547, %v2555
    %v2591 = vunpack.c.l.b16 %v2514
    %v2592 = vunpack.c.h.b16 %v2514
    %v2593 = vunpack.c.l.b16 %v2515
    %v2594 = vunpack.c.h.b16 %v2515
    %v2595 = vunpack.c.l.b16 %v2516
    %v2596 = vunpack.c.h.b16 %v2516
    %v2597 = vunpack.c.l.b16 %v2517
    %v2598 = vunpack.c.h.b16 %v2517
    %v2599 = vunpack.c.l.b16 %v2518
    %v2600 = vunpack.c.h.b16 %v2518
    %v2601 = vunpack.c.l.b16 %v2519
    %v2602 = vunpack.c.h.b16 %v2519
    %v2603 = vunpack.c.l.b16 %v2520
    %v2604 = vunpack.c.h.b16 %v2520
    %v2605 = vunpack.c.l.b16 %v2521
    %v2606 = vunpack.c.h.b16 %v2521
    %v2607 = vunpack.c.l.b16 %v2522
    %v2608 = vunpack.c.h.b16 %v2522
    %v2609 = vunpack.c.l.b16 %v2523
    %v2610 = vunpack.c.h.b16 %v2523
    %v2611 = vunpack.c.l.b16 %v2524
    %v2612 = vunpack.c.h.b16 %v2524
    %v2613 = vunpack.c.l.b16 %v2525
    %v2614 = vunpack.c.h.b16 %v2525
    %v2615 = vunpack.c.l.b16 %v2526
    %v2616 = vunpack.c.h.b16 %v2526
    %v2617 = vunpack.c.l.b16 %v2527
    %v2618 = vunpack.c.h.b16 %v2527
    %v2619 = vunpack.c.l.b16 %v2528
    %v2620 = vunpack.c.h.b16 %v2528
    %v2621 = vunpack.c.l.b16 %v2529
    %v2622 = vunpack.c.h.b16 %v2529
    %v2623 = vunpack.c.l.b16 %v2530
    %v2624 = vunpack.c.h.b16 %v2530
    %v2625 = vunpack.c.l.b16 %v2531
    %v2626 = vunpack.c.h.b16 %v2531
    %v2627 = vunpack.c.l.b16 %v2532
    %v2628 = vunpack.c.h.b16 %v2532
    %v2629 = vunpack.c.l.b16 %v2533
    %v2630 = vunpack.c.h.b16 %v2533
    %v2631 = vunpack.c.l.b16 %v2534
    %v2632 = vunpack.c.h.b16 %v2534
    %v2633 = vunpack.c.l.b16 %v2535
    %v2634 = vunpack.c.h.b16 %v2535
    %v2635 = vunpack.c.l.b16 %v2536
    %v2636 = vunpack.c.h.b16 %v2536
    %v2637 = vunpack.c.l.b16 %v2537
    %v2638 = vunpack.c.h.b16 %v2537
    %v2639 = vunpack.c.l.b16 %v2538
    %v2640 = vunpack.c.h.b16 %v2538
    %v2641 = vunpack.c.l.b16 %v2539
    %v2642 = vunpack.c.h.b16 %v2539
    %v2643 = vunpack.c.l.b16 %v2540
    %v2644 = vunpack.c.h.b16 %v2540
    %v2645 = vunpack.c.l.b16 %v2541
    %v2646 = vunpack.c.h.b16 %v2541
    %v2647 = vunpack.c.l.b16 %v2542
    %v2648 = vunpack.c.h.b16 %v2542
    %v2649 = vunpack.c.l.b16 %v2543
    %v2650 = vunpack.c.h.b16 %v2543
    %v2651 = vunpack.c.l.b16 %v2544
    %v2652 = vunpack.c.h.b16 %v2544
    %v2653 = vunpack.c.l.b16 %v2545
    %v2654 = vunpack.c.h.b16 %v2545
    %v2655 = vpack.c.b16 %v2593, %v2591
    %v2656 = vpack.c.b16 %v2594, %v2592
    %v2657 = vpack.c.b16 %v2597, %v2595
    %v2658 = vpack.c.b16 %v2598, %v2596
    %v2659 = vpack.c.b16 %v2601, %v2599
    %v2660 = vpack.c.b16 %v2602, %v2600
    %v2661 = vpack.c.b16 %v2605, %v2603
    %v2662 = vpack.c.b16 %v2606, %v2604
    %v2663 = vpack.c.b16 %v2609, %v2607
    %v2664 = vpack.c.b16 %v2610, %v2608
    %v2665 = vpack.c.b16 %v2613, %v2611
    %v2666 = vpack.c.b16 %v2614, %v2612
    %v2667 = vpack.c.b16 %v2617, %v2615
    %v2668 = vpack.c.b16 %v2618, %v2616
    %v2669 = vpack.c.b16 %v2621, %v2619
    %v2670 = vpack.c.b16 %v2622, %v2620
    %v2671 = vpack.c.b16 %v2625, %v2623
    %v2672 = vpack.c.b16 %v2626, %v2624
    %v2673 = vpack.c.b16 %v2629, %v2627
    %v2674 = vpack.c.b16 %v2630, %v2628
    %v2675 = vpack.c.b16 %v2633, %v2631
    %v2676 = vpack.c.b16 %v2634, %v2632
    %v2677 = vpack.c.b16 %v2637, %v2635
    %v2678 = vpack.c.b16 %v2638, %v2636
    %v2679 = vpack.c.b16 %v2641, %v2639
    %v2680 = vpack.c.b16 %v2642, %v2640
    %v2681 = vpack.c.b16 %v2645, %v2643
    %v2682 = vpack.c.b16 %v2646, %v2644
    %v2683 = vpack.c.b16 %v2649, %v2647
    %v2684 = vpack.c.b16 %v2650, %v2648
    %v2685 = vpack.c.b16 %v2653, %v2651
    %v2686 = vpack.c.b16 %v2654, %v2652
    %2719 = vmatprep.subr.bf16.mxu0 %v2670
    %2720 = vmatpush1.bf16.msra.mxu0 %v2669
    %2721 = vmatprep.subr.bf16.mxu0 %v2668
    %2722 = vmatpush1.bf16.msra.mxu0 %v2667
    %2723 = vmatprep.subr.bf16.mxu0 %v2666
    %2724 = vmatpush1.bf16.msra.mxu0 %v2665
    %2725 = vmatprep.subr.bf16.mxu0 %v2664
    %2726 = vmatpush1.bf16.msra.mxu0 %v2663
    %2727 = vmatprep.subr.bf16.mxu0 %v2662
    %2728 = vmatpush1.bf16.msra.mxu0 %v2661
    %2729 = vmatprep.subr.bf16.mxu0 %v2660
    %2730 = vmatpush1.bf16.msra.mxu0 %v2659
    %2731 = vmatprep.subr.bf16.mxu0 %v2658
    %2732 = vmatpush1.bf16.msra.mxu0 %v2657
    %2733 = vmatprep.subr.bf16.mxu0 %v2656
    %2734 = vmatpush1.bf16.msra.mxu0 %v2655
    %2735 = vmatprep.subr.bf16.mxu0 %v2686
    %2736 = vmatpush2.bf16.msra.mxu0 %v2685
    %2737 = vmatprep.subr.bf16.mxu0 %v2684
    %2738 = vmatpush2.bf16.msra.mxu0 %v2683
    %2739 = vmatprep.subr.bf16.mxu0 %v2682
    %2740 = vmatpush2.bf16.msra.mxu0 %v2681
    %2741 = vmatprep.subr.bf16.mxu0 %v2680
    %2742 = vmatpush2.bf16.msra.mxu0 %v2679
    %2743 = vmatprep.subr.bf16.mxu0 %v2678
    %2744 = vmatpush2.bf16.msra.mxu0 %v2677
    %2745 = vmatprep.subr.bf16.mxu0 %v2676
    %2746 = vmatpush2.bf16.msra.mxu0 %v2675
    %2747 = vmatprep.subr.bf16.mxu0 %v2674
    %2748 = vmatpush2.bf16.msra.mxu0 %v2673
    %2749 = vmatprep.subr.bf16.mxu0 %v2672
    %2750 = vmatpush2.bf16.msra.mxu0 %v2671
    %2751 = vmatprep.mubr.bf16.mxu0 %v2498
    %2752 = vmatmul.mubr.bf16.gmra.mxu0 %v2497
    %v2753 = vpop.f32.mrf.mxu0
    %v2754 = vadd.f32 %v2552, %v2753
    %v2755 = vpop.f32.mrf.mxu0
    %v2756 = vadd.f32 %v2556, %v2755
    %v2757 = vpop.f32.mrf.mxu0
    %v2758 = vadd.f32 %v2552, %v2757
    %v2759 = vpop.f32.mrf.mxu0
    %v2760 = vadd.f32 %v2556, %v2759
    %2761 = vmatprep.mubr.bf16.mxu0 %v2500
    %2762 = vmatmul.mubr.bf16.gmra.mxu0 %v2499
    %v2763 = vpop.f32.mrf.mxu0
    %v2764 = vadd.f32 %v2552, %v2763
    %v2765 = vpop.f32.mrf.mxu0
    %v2766 = vadd.f32 %v2556, %v2765
    %v2767 = vpop.f32.mrf.mxu0
    %v2768 = vadd.f32 %v2552, %v2767
    %v2769 = vpop.f32.mrf.mxu0
    %v2770 = vadd.f32 %v2556, %v2769
    %2771 = vmatprep.mubr.bf16.mxu0 %v2502
    %2772 = vmatmul.mubr.bf16.gmra.mxu0 %v2501
    %v2773 = vpop.f32.mrf.mxu0
    %v2774 = vadd.f32 %v2552, %v2773
    %v2775 = vpop.f32.mrf.mxu0
    %v2776 = vadd.f32 %v2556, %v2775
    %v2777 = vpop.f32.mrf.mxu0
    %v2778 = vadd.f32 %v2552, %v2777
    %v2779 = vpop.f32.mrf.mxu0
    %v2780 = vadd.f32 %v2556, %v2779
    %2781 = vmatprep.mubr.bf16.mxu0 %v2504
    %2782 = vmatmul.mubr.bf16.gmra.mxu0 %v2503
    %v2783 = vpop.f32.mrf.mxu0
    %v2784 = vadd.f32 %v2552, %v2783
    %v2785 = vpop.f32.mrf.mxu0
    %v2786 = vadd.f32 %v2556, %v2785
    %v2787 = vpop.f32.mrf.mxu0
    %v2788 = vadd.f32 %v2552, %v2787
    %v2789 = vpop.f32.mrf.mxu0
    %v2790 = vadd.f32 %v2556, %v2789
    %2791 = vmatprep.mubr.bf16.mxu0 %v2506
    %2792 = vmatmul.mubr.bf16.gmra.mxu0 %v2505
    %v2793 = vpop.f32.mrf.mxu0
    %v2794 = vadd.f32 %v2552, %v2793
    %v2795 = vpop.f32.mrf.mxu0
    %v2796 = vadd.f32 %v2556, %v2795
    %v2797 = vpop.f32.mrf.mxu0
    %v2798 = vadd.f32 %v2552, %v2797
    %v2799 = vpop.f32.mrf.mxu0
    %v2800 = vadd.f32 %v2556, %v2799
    %2801 = vmatprep.mubr.bf16.mxu0 %v2508
    %2802 = vmatmul.mubr.bf16.gmra.mxu0 %v2507
    %v2803 = vpop.f32.mrf.mxu0
    %v2804 = vadd.f32 %v2552, %v2803
    %v2805 = vpop.f32.mrf.mxu0
    %v2806 = vadd.f32 %v2556, %v2805
    %v2807 = vpop.f32.mrf.mxu0
    %v2808 = vadd.f32 %v2552, %v2807
    %v2809 = vpop.f32.mrf.mxu0
    %v2810 = vadd.f32 %v2556, %v2809
    %2811 = vmatprep.mubr.bf16.mxu0 %v2510
    %2812 = vmatmul.mubr.bf16.gmra.mxu0 %v2509
    %v2813 = vpop.f32.mrf.mxu0
    %v2814 = vadd.f32 %v2552, %v2813
    %v2815 = vpop.f32.mrf.mxu0
    %v2816 = vadd.f32 %v2556, %v2815
    %v2817 = vpop.f32.mrf.mxu0
    %v2818 = vadd.f32 %v2552, %v2817
    %v2819 = vpop.f32.mrf.mxu0
    %v2820 = vadd.f32 %v2556, %v2819
    %2821 = vmatprep.mubr.bf16.mxu0 %v2512
    %2822 = vmatmul.mubr.bf16.gmra.mxu0 %v2511
    %v2823 = vpop.f32.mrf.mxu0
    %v2824 = vadd.f32 %v2552, %v2823
    %v2825 = vpop.f32.mrf.mxu0
    %v2826 = vadd.f32 %v2556, %v2825
    %v2827 = vpop.f32.mrf.mxu0
    %v2828 = vadd.f32 %v2552, %v2827
    %v2829 = vpop.f32.mrf.mxu0
    %v2830 = vadd.f32 %v2556, %v2829
    %2831 = vdwg.mxu0
    %v2832 = vmul.f32 %v2754, 0.2
    %v2833 = vmul.f32 %v2756, 0.2
    %v2834 = vmul.f32 %v2758, 0.2
    %v2835 = vmul.f32 %v2760, 0.2
    %v2836 = vmul.f32 %v2764, 0.2
    %v2837 = vmul.f32 %v2766, 0.2
    %v2838 = vmul.f32 %v2768, 0.2
    %v2839 = vmul.f32 %v2770, 0.2
    %v2840 = vmul.f32 %v2774, 0.2
    %v2841 = vmul.f32 %v2776, 0.2
    %v2842 = vmul.f32 %v2778, 0.2
    %v2843 = vmul.f32 %v2780, 0.2
    %v2844 = vmul.f32 %v2784, 0.2
    %v2845 = vmul.f32 %v2786, 0.2
    %v2846 = vmul.f32 %v2788, 0.2
    %v2847 = vmul.f32 %v2790, 0.2
    %v2848 = vmul.f32 %v2794, 0.2
    %v2849 = vmul.f32 %v2796, 0.2
    %v2850 = vmul.f32 %v2798, 0.2
    %v2851 = vmul.f32 %v2800, 0.2
    %v2852 = vmul.f32 %v2804, 0.2
    %v2853 = vmul.f32 %v2806, 0.2
    %v2854 = vmul.f32 %v2808, 0.2
    %v2855 = vmul.f32 %v2810, 0.2
    %v2856 = vmul.f32 %v2814, 0.2
    %v2857 = vmul.f32 %v2816, 0.2
    %v2858 = vmul.f32 %v2818, 0.2
    %v2859 = vmul.f32 %v2820, 0.2
    %v2860 = vmul.f32 %v2824, 0.2
    %v2861 = vmul.f32 %v2826, 0.2
    %v2862 = vmul.f32 %v2828, 0.2
    %v2863 = vmul.f32 %v2830, 0.2
    %v2864 = vmax.f32 %v2754, %v2832
    %v2865 = vmax.f32 %v2756, %v2833
    %v2866 = vmax.f32 %v2758, %v2834
    %v2867 = vmax.f32 %v2760, %v2835
    %v2868 = vmax.f32 %v2764, %v2836
    %v2869 = vmax.f32 %v2766, %v2837
    %v2870 = vmax.f32 %v2768, %v2838
    %v2871 = vmax.f32 %v2770, %v2839
    %v2872 = vmax.f32 %v2774, %v2840
    %v2873 = vmax.f32 %v2776, %v2841
    %v2874 = vmax.f32 %v2778, %v2842
    %v2875 = vmax.f32 %v2780, %v2843
    %v2876 = vmax.f32 %v2784, %v2844
    %v2877 = vmax.f32 %v2786, %v2845
    %v2878 = vmax.f32 %v2788, %v2846
    %v2879 = vmax.f32 %v2790, %v2847
    %v2880 = vmax.f32 %v2794, %v2848
    %v2881 = vmax.f32 %v2796, %v2849
    %v2882 = vmax.f32 %v2798, %v2850
    %v2883 = vmax.f32 %v2800, %v2851
    %v2884 = vmax.f32 %v2804, %v2852
    %v2885 = vmax.f32 %v2806, %v2853
    %v2886 = vmax.f32 %v2808, %v2854
    %v2887 = vmax.f32 %v2810, %v2855
    %v2888 = vmax.f32 %v2814, %v2856
    %v2889 = vmax.f32 %v2816, %v2857
    %v2890 = vmax.f32 %v2818, %v2858
    %v2891 = vmax.f32 %v2820, %v2859
    %v2892 = vmax.f32 %v2824, %v2860
    %v2893 = vmax.f32 %v2826, %v2861
    %v2894 = vmax.f32 %v2828, %v2862
    %v2895 = vmax.f32 %v2830, %v2863
    %v2896 = vpack.c.bf16 %v2866, %v2864
    %v2897 = vpack.c.bf16 %v2867, %v2865
    %v2898 = vpack.c.bf16 %v2870, %v2868
    %v2899 = vpack.c.bf16 %v2871, %v2869
    %v2900 = vpack.c.bf16 %v2874, %v2872
    %v2901 = vpack.c.bf16 %v2875, %v2873
    %v2902 = vpack.c.bf16 %v2878, %v2876
    %v2903 = vpack.c.bf16 %v2879, %v2877
    %v2904 = vpack.c.bf16 %v2882, %v2880
    %v2905 = vpack.c.bf16 %v2883, %v2881
    %v2906 = vpack.c.bf16 %v2886, %v2884
    %v2907 = vpack.c.bf16 %v2887, %v2885
    %v2908 = vpack.c.bf16 %v2890, %v2888
    %v2909 = vpack.c.bf16 %v2891, %v2889
    %v2910 = vpack.c.bf16 %v2894, %v2892
    %v2911 = vpack.c.bf16 %v2895, %v2893
    %s2912 = scalar_lea.vmem [#allocation7], 1792
    %v2913 = vld [vmem:[%s2912] sm:$0xff]
    %v2914 = vld [vmem:[%s2912 + $0x8] sm:$0xff]
    %v2915 = vld [vmem:[%s2912 + $0x10] sm:$0xff]
    %v2916 = vld [vmem:[%s2912 + $0x18] sm:$0xff]
    %v2917 = vld [vmem:[%s2912 + $0x20] sm:$0xff]
    %v2918 = vld [vmem:[%s2912 + $0x28] sm:$0xff]
    %v2919 = vld [vmem:[%s2912 + $0x30] sm:$0xff]
    %v2920 = vld [vmem:[%s2912 + $0x38] sm:$0xff]
    %v2921 = vld [vmem:[%s2912 + $0x40] sm:$0xff]
    %v2922 = vld [vmem:[%s2912 + $0x48] sm:$0xff]
    %v2923 = vld [vmem:[%s2912 + $0x50] sm:$0xff]
    %v2924 = vld [vmem:[%s2912 + $0x58] sm:$0xff]
    %v2925 = vld [vmem:[%s2912 + $0x60] sm:$0xff]
    %v2926 = vld [vmem:[%s2912 + $0x68] sm:$0xff]
    %v2927 = vld [vmem:[%s2912 + $0x70] sm:$0xff]
    %v2928 = vld [vmem:[%s2912 + $0x78] sm:$0xff]
    %v2929 = vld [vmem:[%s2912 + $0x80] sm:$0xff]
    %v2930 = vld [vmem:[%s2912 + $0x88] sm:$0xff]
    %v2931 = vld [vmem:[%s2912 + $0x90] sm:$0xff]
    %v2932 = vld [vmem:[%s2912 + $0x98] sm:$0xff]
    %v2933 = vld [vmem:[%s2912 + $0xa0] sm:$0xff]
    %v2934 = vld [vmem:[%s2912 + $0xa8] sm:$0xff]
    %v2935 = vld [vmem:[%s2912 + $0xb0] sm:$0xff]
    %v2936 = vld [vmem:[%s2912 + $0xb8] sm:$0xff]
    %v2937 = vld [vmem:[%s2912 + $0xc0] sm:$0xff]
    %v2938 = vld [vmem:[%s2912 + $0xc8] sm:$0xff]
    %v2939 = vld [vmem:[%s2912 + $0xd0] sm:$0xff]
    %v2940 = vld [vmem:[%s2912 + $0xd8] sm:$0xff]
    %v2941 = vld [vmem:[%s2912 + $0xe0] sm:$0xff]
    %v2942 = vld [vmem:[%s2912 + $0xe8] sm:$0xff]
    %v2943 = vld [vmem:[%s2912 + $0xf0] sm:$0xff]
    %v2944 = vld [vmem:[%s2912 + $0xf8] sm:$0xff]
    %s2945 = scalar_lea.vmem [#allocation8], 14
    %v2946 = vld [vmem:[%s2945] sm:$0x3]
    %v2948 = vlaneseq
    %v2949 = vshrl.u32 %v2948, 7
    %v2950 = vsub.s32 0, %v2949
    %v2951 = vrot.slane %v2946, %v2950
    %v2952 = vlaneseq
    %v2953 = vshrl.u32 %v2952, 7
    %v2954 = vsub.s32 1, %v2953
    %v2955 = vrot.slane %v2946, %v2954
    %v2990 = vunpack.c.l.b16 %v2913
    %v2991 = vunpack.c.h.b16 %v2913
    %v2992 = vunpack.c.l.b16 %v2914
    %v2993 = vunpack.c.h.b16 %v2914
    %v2994 = vunpack.c.l.b16 %v2915
    %v2995 = vunpack.c.h.b16 %v2915
    %v2996 = vunpack.c.l.b16 %v2916
    %v2997 = vunpack.c.h.b16 %v2916
    %v2998 = vunpack.c.l.b16 %v2917
    %v2999 = vunpack.c.h.b16 %v2917
    %v3000 = vunpack.c.l.b16 %v2918
    %v3001 = vunpack.c.h.b16 %v2918
    %v3002 = vunpack.c.l.b16 %v2919
    %v3003 = vunpack.c.h.b16 %v2919
    %v3004 = vunpack.c.l.b16 %v2920
    %v3005 = vunpack.c.h.b16 %v2920
    %v3006 = vunpack.c.l.b16 %v2921
    %v3007 = vunpack.c.h.b16 %v2921
    %v3008 = vunpack.c.l.b16 %v2922
    %v3009 = vunpack.c.h.b16 %v2922
    %v3010 = vunpack.c.l.b16 %v2923
    %v3011 = vunpack.c.h.b16 %v2923
    %v3012 = vunpack.c.l.b16 %v2924
    %v3013 = vunpack.c.h.b16 %v2924
    %v3014 = vunpack.c.l.b16 %v2925
    %v3015 = vunpack.c.h.b16 %v2925
    %v3016 = vunpack.c.l.b16 %v2926
    %v3017 = vunpack.c.h.b16 %v2926
    %v3018 = vunpack.c.l.b16 %v2927
    %v3019 = vunpack.c.h.b16 %v2927
    %v3020 = vunpack.c.l.b16 %v2928
    %v3021 = vunpack.c.h.b16 %v2928
    %v3022 = vunpack.c.l.b16 %v2929
    %v3023 = vunpack.c.h.b16 %v2929
    %v3024 = vunpack.c.l.b16 %v2930
    %v3025 = vunpack.c.h.b16 %v2930
    %v3026 = vunpack.c.l.b16 %v2931
    %v3027 = vunpack.c.h.b16 %v2931
    %v3028 = vunpack.c.l.b16 %v2932
    %v3029 = vunpack.c.h.b16 %v2932
    %v3030 = vunpack.c.l.b16 %v2933
    %v3031 = vunpack.c.h.b16 %v2933
    %v3032 = vunpack.c.l.b16 %v2934
    %v3033 = vunpack.c.h.b16 %v2934
    %v3034 = vunpack.c.l.b16 %v2935
    %v3035 = vunpack.c.h.b16 %v2935
    %v3036 = vunpack.c.l.b16 %v2936
    %v3037 = vunpack.c.h.b16 %v2936
    %v3038 = vunpack.c.l.b16 %v2937
    %v3039 = vunpack.c.h.b16 %v2937
    %v3040 = vunpack.c.l.b16 %v2938
    %v3041 = vunpack.c.h.b16 %v2938
    %v3042 = vunpack.c.l.b16 %v2939
    %v3043 = vunpack.c.h.b16 %v2939
    %v3044 = vunpack.c.l.b16 %v2940
    %v3045 = vunpack.c.h.b16 %v2940
    %v3046 = vunpack.c.l.b16 %v2941
    %v3047 = vunpack.c.h.b16 %v2941
    %v3048 = vunpack.c.l.b16 %v2942
    %v3049 = vunpack.c.h.b16 %v2942
    %v3050 = vunpack.c.l.b16 %v2943
    %v3051 = vunpack.c.h.b16 %v2943
    %v3052 = vunpack.c.l.b16 %v2944
    %v3053 = vunpack.c.h.b16 %v2944
    %v3054 = vpack.c.b16 %v2992, %v2990
    %v3055 = vpack.c.b16 %v2993, %v2991
    %v3056 = vpack.c.b16 %v2996, %v2994
    %v3057 = vpack.c.b16 %v2997, %v2995
    %v3058 = vpack.c.b16 %v3000, %v2998
    %v3059 = vpack.c.b16 %v3001, %v2999
    %v3060 = vpack.c.b16 %v3004, %v3002
    %v3061 = vpack.c.b16 %v3005, %v3003
    %v3062 = vpack.c.b16 %v3008, %v3006
    %v3063 = vpack.c.b16 %v3009, %v3007
    %v3064 = vpack.c.b16 %v3012, %v3010
    %v3065 = vpack.c.b16 %v3013, %v3011
    %v3066 = vpack.c.b16 %v3016, %v3014
    %v3067 = vpack.c.b16 %v3017, %v3015
    %v3068 = vpack.c.b16 %v3020, %v3018
    %v3069 = vpack.c.b16 %v3021, %v3019
    %v3070 = vpack.c.b16 %v3024, %v3022
    %v3071 = vpack.c.b16 %v3025, %v3023
    %v3072 = vpack.c.b16 %v3028, %v3026
    %v3073 = vpack.c.b16 %v3029, %v3027
    %v3074 = vpack.c.b16 %v3032, %v3030
    %v3075 = vpack.c.b16 %v3033, %v3031
    %v3076 = vpack.c.b16 %v3036, %v3034
    %v3077 = vpack.c.b16 %v3037, %v3035
    %v3078 = vpack.c.b16 %v3040, %v3038
    %v3079 = vpack.c.b16 %v3041, %v3039
    %v3080 = vpack.c.b16 %v3044, %v3042
    %v3081 = vpack.c.b16 %v3045, %v3043
    %v3082 = vpack.c.b16 %v3048, %v3046
    %v3083 = vpack.c.b16 %v3049, %v3047
    %v3084 = vpack.c.b16 %v3052, %v3050
    %v3085 = vpack.c.b16 %v3053, %v3051
    %3118 = vmatprep.subr.bf16.mxu0 %v3069
    %3119 = vmatpush1.bf16.msra.mxu0 %v3068
    %3120 = vmatprep.subr.bf16.mxu0 %v3067
    %3121 = vmatpush1.bf16.msra.mxu0 %v3066
    %3122 = vmatprep.subr.bf16.mxu0 %v3065
    %3123 = vmatpush1.bf16.msra.mxu0 %v3064
    %3124 = vmatprep.subr.bf16.mxu0 %v3063
    %3125 = vmatpush1.bf16.msra.mxu0 %v3062
    %3126 = vmatprep.subr.bf16.mxu0 %v3061
    %3127 = vmatpush1.bf16.msra.mxu0 %v3060
    %3128 = vmatprep.subr.bf16.mxu0 %v3059
    %3129 = vmatpush1.bf16.msra.mxu0 %v3058
    %3130 = vmatprep.subr.bf16.mxu0 %v3057
    %3131 = vmatpush1.bf16.msra.mxu0 %v3056
    %3132 = vmatprep.subr.bf16.mxu0 %v3055
    %3133 = vmatpush1.bf16.msra.mxu0 %v3054
    %3134 = vmatprep.subr.bf16.mxu0 %v3085
    %3135 = vmatpush2.bf16.msra.mxu0 %v3084
    %3136 = vmatprep.subr.bf16.mxu0 %v3083
    %3137 = vmatpush2.bf16.msra.mxu0 %v3082
    %3138 = vmatprep.subr.bf16.mxu0 %v3081
    %3139 = vmatpush2.bf16.msra.mxu0 %v3080
    %3140 = vmatprep.subr.bf16.mxu0 %v3079
    %3141 = vmatpush2.bf16.msra.mxu0 %v3078
    %3142 = vmatprep.subr.bf16.mxu0 %v3077
    %3143 = vmatpush2.bf16.msra.mxu0 %v3076
    %3144 = vmatprep.subr.bf16.mxu0 %v3075
    %3145 = vmatpush2.bf16.msra.mxu0 %v3074
    %3146 = vmatprep.subr.bf16.mxu0 %v3073
    %3147 = vmatpush2.bf16.msra.mxu0 %v3072
    %3148 = vmatprep.subr.bf16.mxu0 %v3071
    %3149 = vmatpush2.bf16.msra.mxu0 %v3070
    %3150 = vmatprep.mubr.bf16.mxu0 %v2897
    %3151 = vmatmul.mubr.bf16.gmra.mxu0 %v2896
    %v3152 = vpop.f32.mrf.mxu0
    %v3153 = vadd.f32 %v2951, %v3152
    %v3154 = vpop.f32.mrf.mxu0
    %v3155 = vadd.f32 %v2955, %v3154
    %v3156 = vpop.f32.mrf.mxu0
    %v3157 = vadd.f32 %v2951, %v3156
    %v3158 = vpop.f32.mrf.mxu0
    %v3159 = vadd.f32 %v2955, %v3158
    %3160 = vmatprep.mubr.bf16.mxu0 %v2899
    %3161 = vmatmul.mubr.bf16.gmra.mxu0 %v2898
    %v3162 = vpop.f32.mrf.mxu0
    %v3163 = vadd.f32 %v2951, %v3162
    %v3164 = vpop.f32.mrf.mxu0
    %v3165 = vadd.f32 %v2955, %v3164
    %v3166 = vpop.f32.mrf.mxu0
    %v3167 = vadd.f32 %v2951, %v3166
    %v3168 = vpop.f32.mrf.mxu0
    %v3169 = vadd.f32 %v2955, %v3168
    %3170 = vmatprep.mubr.bf16.mxu0 %v2901
    %3171 = vmatmul.mubr.bf16.gmra.mxu0 %v2900
    %v3172 = vpop.f32.mrf.mxu0
    %v3173 = vadd.f32 %v2951, %v3172
    %v3174 = vpop.f32.mrf.mxu0
    %v3175 = vadd.f32 %v2955, %v3174
    %v3176 = vpop.f32.mrf.mxu0
    %v3177 = vadd.f32 %v2951, %v3176
    %v3178 = vpop.f32.mrf.mxu0
    %v3179 = vadd.f32 %v2955, %v3178
    %3180 = vmatprep.mubr.bf16.mxu0 %v2903
    %3181 = vmatmul.mubr.bf16.gmra.mxu0 %v2902
    %v3182 = vpop.f32.mrf.mxu0
    %v3183 = vadd.f32 %v2951, %v3182
    %v3184 = vpop.f32.mrf.mxu0
    %v3185 = vadd.f32 %v2955, %v3184
    %v3186 = vpop.f32.mrf.mxu0
    %v3187 = vadd.f32 %v2951, %v3186
    %v3188 = vpop.f32.mrf.mxu0
    %v3189 = vadd.f32 %v2955, %v3188
    %3190 = vmatprep.mubr.bf16.mxu0 %v2905
    %3191 = vmatmul.mubr.bf16.gmra.mxu0 %v2904
    %v3192 = vpop.f32.mrf.mxu0
    %v3193 = vadd.f32 %v2951, %v3192
    %v3194 = vpop.f32.mrf.mxu0
    %v3195 = vadd.f32 %v2955, %v3194
    %v3196 = vpop.f32.mrf.mxu0
    %v3197 = vadd.f32 %v2951, %v3196
    %v3198 = vpop.f32.mrf.mxu0
    %v3199 = vadd.f32 %v2955, %v3198
    %3200 = vmatprep.mubr.bf16.mxu0 %v2907
    %3201 = vmatmul.mubr.bf16.gmra.mxu0 %v2906
    %v3202 = vpop.f32.mrf.mxu0
    %v3203 = vadd.f32 %v2951, %v3202
    %v3204 = vpop.f32.mrf.mxu0
    %v3205 = vadd.f32 %v2955, %v3204
    %v3206 = vpop.f32.mrf.mxu0
    %v3207 = vadd.f32 %v2951, %v3206
    %v3208 = vpop.f32.mrf.mxu0
    %v3209 = vadd.f32 %v2955, %v3208
    %3210 = vmatprep.mubr.bf16.mxu0 %v2909
    %3211 = vmatmul.mubr.bf16.gmra.mxu0 %v2908
    %v3212 = vpop.f32.mrf.mxu0
    %v3213 = vadd.f32 %v2951, %v3212
    %v3214 = vpop.f32.mrf.mxu0
    %v3215 = vadd.f32 %v2955, %v3214
    %v3216 = vpop.f32.mrf.mxu0
    %v3217 = vadd.f32 %v2951, %v3216
    %v3218 = vpop.f32.mrf.mxu0
    %v3219 = vadd.f32 %v2955, %v3218
    %3220 = vmatprep.mubr.bf16.mxu0 %v2911
    %3221 = vmatmul.mubr.bf16.gmra.mxu0 %v2910
    %v3222 = vpop.f32.mrf.mxu0
    %v3223 = vadd.f32 %v2951, %v3222
    %v3224 = vpop.f32.mrf.mxu0
    %v3225 = vadd.f32 %v2955, %v3224
    %v3226 = vpop.f32.mrf.mxu0
    %v3227 = vadd.f32 %v2951, %v3226
    %v3228 = vpop.f32.mrf.mxu0
    %v3229 = vadd.f32 %v2955, %v3228
    %3230 = vdwg.mxu0
    %v3231 = vld [vmem:[#allocation5] sm:$0xff]
    %v3232 = vld [vmem:[#allocation5 + $0x8] sm:$0xff]
    %v3233 = vld [vmem:[#allocation5 + $0x10] sm:$0xff]
    %v3234 = vld [vmem:[#allocation5 + $0x18] sm:$0xff]
    %v3235 = vld [vmem:[#allocation5 + $0x20] sm:$0xff]
    %v3236 = vld [vmem:[#allocation5 + $0x28] sm:$0xff]
    %v3237 = vld [vmem:[#allocation5 + $0x30] sm:$0xff]
    %v3238 = vld [vmem:[#allocation5 + $0x38] sm:$0xff]
    %v3239 = vld [vmem:[#allocation5 + $0x40] sm:$0xff]
    %v3240 = vld [vmem:[#allocation5 + $0x48] sm:$0xff]
    %v3241 = vld [vmem:[#allocation5 + $0x50] sm:$0xff]
    %v3242 = vld [vmem:[#allocation5 + $0x58] sm:$0xff]
    %v3243 = vld [vmem:[#allocation5 + $0x60] sm:$0xff]
    %v3244 = vld [vmem:[#allocation5 + $0x68] sm:$0xff]
    %v3245 = vld [vmem:[#allocation5 + $0x70] sm:$0xff]
    %v3246 = vld [vmem:[#allocation5 + $0x78] sm:$0xff]
    %v3247 = vmul.f32 %v3155, 0.5
    %v3248 = vmul.f32 %v3159, 0.5
    %v3249 = vmul.f32 %v3165, 0.5
    %v3250 = vmul.f32 %v3169, 0.5
    %v3251 = vmul.f32 %v3175, 0.5
    %v3252 = vmul.f32 %v3179, 0.5
    %v3253 = vmul.f32 %v3185, 0.5
    %v3254 = vmul.f32 %v3189, 0.5
    %v3255 = vmul.f32 %v3195, 0.5
    %v3256 = vmul.f32 %v3199, 0.5
    %v3257 = vmul.f32 %v3205, 0.5
    %v3258 = vmul.f32 %v3209, 0.5
    %v3259 = vmul.f32 %v3215, 0.5
    %v3260 = vmul.f32 %v3219, 0.5
    %v3261 = vmul.f32 %v3225, 0.5
    %v3262 = vmul.f32 %v3229, 0.5
    %v3263 = vmul.f32 %v3247, 1.442695
    %v3264 = vpow.pop %v3263
    %v3265 = vmul.f32 %v3248, 1.442695
    %v3266 = vpow.pop %v3265
    %v3267 = vmul.f32 %v3249, 1.442695
    %v3268 = vpow.pop %v3267
    %v3269 = vmul.f32 %v3250, 1.442695
    %v3270 = vpow.pop %v3269
    %v3271 = vmul.f32 %v3251, 1.442695
    %v3272 = vpow.pop %v3271
    %v3273 = vmul.f32 %v3252, 1.442695
    %v3274 = vpow.pop %v3273
    %v3275 = vmul.f32 %v3253, 1.442695
    %v3276 = vpow.pop %v3275
    %v3277 = vmul.f32 %v3254, 1.442695
    %v3278 = vpow.pop %v3277
    %v3279 = vmul.f32 %v3255, 1.442695
    %v3280 = vpow.pop %v3279
    %v3281 = vmul.f32 %v3256, 1.442695
    %v3282 = vpow.pop %v3281
    %v3283 = vmul.f32 %v3257, 1.442695
    %v3284 = vpow.pop %v3283
    %v3285 = vmul.f32 %v3258, 1.442695
    %v3286 = vpow.pop %v3285
    %v3287 = vmul.f32 %v3259, 1.442695
    %v3288 = vpow.pop %v3287
    %v3289 = vmul.f32 %v3260, 1.442695
    %v3290 = vpow.pop %v3289
    %v3291 = vmul.f32 %v3261, 1.442695
    %v3292 = vpow.pop %v3291
    %v3293 = vmul.f32 %v3262, 1.442695
    %v3294 = vpow.pop %v3293
    %v3295 = vmul.f32 %v3231, %v3264
    %v3296 = vmul.f32 %v3232, %v3266
    %v3297 = vmul.f32 %v3233, %v3268
    %v3298 = vmul.f32 %v3234, %v3270
    %v3299 = vmul.f32 %v3235, %v3272
    %v3300 = vmul.f32 %v3236, %v3274
    %v3301 = vmul.f32 %v3237, %v3276
    %v3302 = vmul.f32 %v3238, %v3278
    %v3303 = vmul.f32 %v3239, %v3280
    %v3304 = vmul.f32 %v3240, %v3282
    %v3305 = vmul.f32 %v3241, %v3284
    %v3306 = vmul.f32 %v3242, %v3286
    %v3307 = vmul.f32 %v3243, %v3288
    %v3308 = vmul.f32 %v3244, %v3290
    %v3309 = vmul.f32 %v3245, %v3292
    %v3310 = vmul.f32 %v3246, %v3294
    %v3311 = vadd.f32 %v3153, %v3295
    %v3312 = vadd.f32 %v3157, %v3296
    %v3313 = vadd.f32 %v3163, %v3297
    %v3314 = vadd.f32 %v3167, %v3298
    %v3315 = vadd.f32 %v3173, %v3299
    %v3316 = vadd.f32 %v3177, %v3300
    %v3317 = vadd.f32 %v3183, %v3301
    %v3318 = vadd.f32 %v3187, %v3302
    %v3319 = vadd.f32 %v3193, %v3303
    %v3320 = vadd.f32 %v3197, %v3304
    %v3321 = vadd.f32 %v3203, %v3305
    %v3322 = vadd.f32 %v3207, %v3306
    %v3323 = vadd.f32 %v3213, %v3307
    %v3324 = vadd.f32 %v3217, %v3308
    %v3325 = vadd.f32 %v3223, %v3309
    %v3326 = vadd.f32 %v3227, %v3310
    %v3327 = vpack.c.bf16 %v3312, %v3311
    %v3328 = vpack.c.bf16 0.0, 0.0
    %v3329 = vpack.c.bf16 %v3314, %v3313
    %v3330 = vpack.c.bf16 %v3316, %v3315
    %v3331 = vpack.c.bf16 %v3318, %v3317
    %v3332 = vpack.c.bf16 %v3320, %v3319
    %v3333 = vpack.c.bf16 %v3322, %v3321
    %v3334 = vpack.c.bf16 %v3324, %v3323
    %v3335 = vpack.c.bf16 %v3326, %v3325
    %s3336 = scalar_lea.vmem [#allocation7], 2048
    %v3337 = vld [vmem:[%s3336] sm:$0xff]
    %v3338 = vld [vmem:[%s3336 + $0x8] sm:$0xff]
    %v3339 = vld [vmem:[%s3336 + $0x10] sm:$0xff]
    %v3340 = vld [vmem:[%s3336 + $0x18] sm:$0xff]
    %v3341 = vld [vmem:[%s3336 + $0x20] sm:$0xff]
    %v3342 = vld [vmem:[%s3336 + $0x28] sm:$0xff]
    %v3343 = vld [vmem:[%s3336 + $0x30] sm:$0xff]
    %v3344 = vld [vmem:[%s3336 + $0x38] sm:$0xff]
    %v3345 = vld [vmem:[%s3336 + $0x40] sm:$0xff]
    %v3346 = vld [vmem:[%s3336 + $0x48] sm:$0xff]
    %v3347 = vld [vmem:[%s3336 + $0x50] sm:$0xff]
    %v3348 = vld [vmem:[%s3336 + $0x58] sm:$0xff]
    %v3349 = vld [vmem:[%s3336 + $0x60] sm:$0xff]
    %v3350 = vld [vmem:[%s3336 + $0x68] sm:$0xff]
    %v3351 = vld [vmem:[%s3336 + $0x70] sm:$0xff]
    %v3352 = vld [vmem:[%s3336 + $0x78] sm:$0xff]
    %v3353 = vld [vmem:[%s3336 + $0x80] sm:$0xff]
    %v3354 = vld [vmem:[%s3336 + $0x88] sm:$0xff]
    %v3355 = vld [vmem:[%s3336 + $0x90] sm:$0xff]
    %v3356 = vld [vmem:[%s3336 + $0x98] sm:$0xff]
    %v3357 = vld [vmem:[%s3336 + $0xa0] sm:$0xff]
    %v3358 = vld [vmem:[%s3336 + $0xa8] sm:$0xff]
    %v3359 = vld [vmem:[%s3336 + $0xb0] sm:$0xff]
    %v3360 = vld [vmem:[%s3336 + $0xb8] sm:$0xff]
    %v3361 = vld [vmem:[%s3336 + $0xc0] sm:$0xff]
    %v3362 = vld [vmem:[%s3336 + $0xc8] sm:$0xff]
    %v3363 = vld [vmem:[%s3336 + $0xd0] sm:$0xff]
    %v3364 = vld [vmem:[%s3336 + $0xd8] sm:$0xff]
    %v3365 = vld [vmem:[%s3336 + $0xe0] sm:$0xff]
    %v3366 = vld [vmem:[%s3336 + $0xe8] sm:$0xff]
    %v3367 = vld [vmem:[%s3336 + $0xf0] sm:$0xff]
    %v3368 = vld [vmem:[%s3336 + $0xf8] sm:$0xff]
    %s3369 = scalar_lea.vmem [#allocation8], 16
    %v3370 = vld [vmem:[%s3369] sm:$0x3]
    %v3372 = vlaneseq
    %v3373 = vshrl.u32 %v3372, 7
    %v3374 = vsub.s32 0, %v3373
    %v3375 = vrot.slane %v3370, %v3374
    %v3376 = vlaneseq
    %v3377 = vshrl.u32 %v3376, 7
    %v3378 = vsub.s32 1, %v3377
    %v3379 = vrot.slane %v3370, %v3378
    %v3414 = vunpack.c.l.b16 %v3337
    %v3415 = vunpack.c.h.b16 %v3337
    %v3416 = vunpack.c.l.b16 %v3338
    %v3417 = vunpack.c.h.b16 %v3338
    %v3418 = vunpack.c.l.b16 %v3339
    %v3419 = vunpack.c.h.b16 %v3339
    %v3420 = vunpack.c.l.b16 %v3340
    %v3421 = vunpack.c.h.b16 %v3340
    %v3422 = vunpack.c.l.b16 %v3341
    %v3423 = vunpack.c.h.b16 %v3341
    %v3424 = vunpack.c.l.b16 %v3342
    %v3425 = vunpack.c.h.b16 %v3342
    %v3426 = vunpack.c.l.b16 %v3343
    %v3427 = vunpack.c.h.b16 %v3343
    %v3428 = vunpack.c.l.b16 %v3344
    %v3429 = vunpack.c.h.b16 %v3344
    %v3430 = vunpack.c.l.b16 %v3345
    %v3431 = vunpack.c.h.b16 %v3345
    %v3432 = vunpack.c.l.b16 %v3346
    %v3433 = vunpack.c.h.b16 %v3346
    %v3434 = vunpack.c.l.b16 %v3347
    %v3435 = vunpack.c.h.b16 %v3347
    %v3436 = vunpack.c.l.b16 %v3348
    %v3437 = vunpack.c.h.b16 %v3348
    %v3438 = vunpack.c.l.b16 %v3349
    %v3439 = vunpack.c.h.b16 %v3349
    %v3440 = vunpack.c.l.b16 %v3350
    %v3441 = vunpack.c.h.b16 %v3350
    %v3442 = vunpack.c.l.b16 %v3351
    %v3443 = vunpack.c.h.b16 %v3351
    %v3444 = vunpack.c.l.b16 %v3352
    %v3445 = vunpack.c.h.b16 %v3352
    %v3446 = vunpack.c.l.b16 %v3353
    %v3447 = vunpack.c.h.b16 %v3353
    %v3448 = vunpack.c.l.b16 %v3354
    %v3449 = vunpack.c.h.b16 %v3354
    %v3450 = vunpack.c.l.b16 %v3355
    %v3451 = vunpack.c.h.b16 %v3355
    %v3452 = vunpack.c.l.b16 %v3356
    %v3453 = vunpack.c.h.b16 %v3356
    %v3454 = vunpack.c.l.b16 %v3357
    %v3455 = vunpack.c.h.b16 %v3357
    %v3456 = vunpack.c.l.b16 %v3358
    %v3457 = vunpack.c.h.b16 %v3358
    %v3458 = vunpack.c.l.b16 %v3359
    %v3459 = vunpack.c.h.b16 %v3359
    %v3460 = vunpack.c.l.b16 %v3360
    %v3461 = vunpack.c.h.b16 %v3360
    %v3462 = vunpack.c.l.b16 %v3361
    %v3463 = vunpack.c.h.b16 %v3361
    %v3464 = vunpack.c.l.b16 %v3362
    %v3465 = vunpack.c.h.b16 %v3362
    %v3466 = vunpack.c.l.b16 %v3363
    %v3467 = vunpack.c.h.b16 %v3363
    %v3468 = vunpack.c.l.b16 %v3364
    %v3469 = vunpack.c.h.b16 %v3364
    %v3470 = vunpack.c.l.b16 %v3365
    %v3471 = vunpack.c.h.b16 %v3365
    %v3472 = vunpack.c.l.b16 %v3366
    %v3473 = vunpack.c.h.b16 %v3366
    %v3474 = vunpack.c.l.b16 %v3367
    %v3475 = vunpack.c.h.b16 %v3367
    %v3476 = vunpack.c.l.b16 %v3368
    %v3477 = vunpack.c.h.b16 %v3368
    %v3478 = vpack.c.b16 %v3416, %v3414
    %v3479 = vpack.c.b16 %v3417, %v3415
    %v3480 = vpack.c.b16 %v3420, %v3418
    %v3481 = vpack.c.b16 %v3421, %v3419
    %v3482 = vpack.c.b16 %v3424, %v3422
    %v3483 = vpack.c.b16 %v3425, %v3423
    %v3484 = vpack.c.b16 %v3428, %v3426
    %v3485 = vpack.c.b16 %v3429, %v3427
    %v3486 = vpack.c.b16 %v3432, %v3430
    %v3487 = vpack.c.b16 %v3433, %v3431
    %v3488 = vpack.c.b16 %v3436, %v3434
    %v3489 = vpack.c.b16 %v3437, %v3435
    %v3490 = vpack.c.b16 %v3440, %v3438
    %v3491 = vpack.c.b16 %v3441, %v3439
    %v3492 = vpack.c.b16 %v3444, %v3442
    %v3493 = vpack.c.b16 %v3445, %v3443
    %v3494 = vpack.c.b16 %v3448, %v3446
    %v3495 = vpack.c.b16 %v3449, %v3447
    %v3496 = vpack.c.b16 %v3452, %v3450
    %v3497 = vpack.c.b16 %v3453, %v3451
    %v3498 = vpack.c.b16 %v3456, %v3454
    %v3499 = vpack.c.b16 %v3457, %v3455
    %v3500 = vpack.c.b16 %v3460, %v3458
    %v3501 = vpack.c.b16 %v3461, %v3459
    %v3502 = vpack.c.b16 %v3464, %v3462
    %v3503 = vpack.c.b16 %v3465, %v3463
    %v3504 = vpack.c.b16 %v3468, %v3466
    %v3505 = vpack.c.b16 %v3469, %v3467
    %v3506 = vpack.c.b16 %v3472, %v3470
    %v3507 = vpack.c.b16 %v3473, %v3471
    %v3508 = vpack.c.b16 %v3476, %v3474
    %v3509 = vpack.c.b16 %v3477, %v3475
    %3542 = vmatprep.subr.bf16.mxu0 %v3493
    %3543 = vmatpush1.bf16.msra.mxu0 %v3492
    %3544 = vmatprep.subr.bf16.mxu0 %v3491
    %3545 = vmatpush1.bf16.msra.mxu0 %v3490
    %3546 = vmatprep.subr.bf16.mxu0 %v3489
    %3547 = vmatpush1.bf16.msra.mxu0 %v3488
    %3548 = vmatprep.subr.bf16.mxu0 %v3487
    %3549 = vmatpush1.bf16.msra.mxu0 %v3486
    %3550 = vmatprep.subr.bf16.mxu0 %v3485
    %3551 = vmatpush1.bf16.msra.mxu0 %v3484
    %3552 = vmatprep.subr.bf16.mxu0 %v3483
    %3553 = vmatpush1.bf16.msra.mxu0 %v3482
    %3554 = vmatprep.subr.bf16.mxu0 %v3481
    %3555 = vmatpush1.bf16.msra.mxu0 %v3480
    %3556 = vmatprep.subr.bf16.mxu0 %v3479
    %3557 = vmatpush1.bf16.msra.mxu0 %v3478
    %3558 = vmatprep.subr.bf16.mxu0 %v3509
    %3559 = vmatpush2.bf16.msra.mxu0 %v3508
    %3560 = vmatprep.subr.bf16.mxu0 %v3507
    %3561 = vmatpush2.bf16.msra.mxu0 %v3506
    %3562 = vmatprep.subr.bf16.mxu0 %v3505
    %3563 = vmatpush2.bf16.msra.mxu0 %v3504
    %3564 = vmatprep.subr.bf16.mxu0 %v3503
    %3565 = vmatpush2.bf16.msra.mxu0 %v3502
    %3566 = vmatprep.subr.bf16.mxu0 %v3501
    %3567 = vmatpush2.bf16.msra.mxu0 %v3500
    %3568 = vmatprep.subr.bf16.mxu0 %v3499
    %3569 = vmatpush2.bf16.msra.mxu0 %v3498
    %3570 = vmatprep.subr.bf16.mxu0 %v3497
    %3571 = vmatpush2.bf16.msra.mxu0 %v3496
    %3572 = vmatprep.subr.bf16.mxu0 %v3495
    %3573 = vmatpush2.bf16.msra.mxu0 %v3494
    %3574 = vmatprep.mubr.bf16.mxu0 %v3328
    %3575 = vmatmul.mubr.bf16.gmra.mxu0 %v3327
    %v3576 = vpop.f32.mrf.mxu0
    %v3577 = vadd.f32 %v3375, %v3576
    %v3578 = vpop.f32.mrf.mxu0
    %v3579 = vadd.f32 %v3379, %v3578
    %v3580 = vpop.f32.mrf.mxu0
    %v3581 = vadd.f32 %v3375, %v3580
    %v3582 = vpop.f32.mrf.mxu0
    %v3583 = vadd.f32 %v3379, %v3582
    %3584 = vmatprep.mubr.bf16.mxu0 %v3328
    %3585 = vmatmul.mubr.bf16.gmra.mxu0 %v3329
    %v3586 = vpop.f32.mrf.mxu0
    %v3587 = vadd.f32 %v3375, %v3586
    %v3588 = vpop.f32.mrf.mxu0
    %v3589 = vadd.f32 %v3379, %v3588
    %v3590 = vpop.f32.mrf.mxu0
    %v3591 = vadd.f32 %v3375, %v3590
    %v3592 = vpop.f32.mrf.mxu0
    %v3593 = vadd.f32 %v3379, %v3592
    %3594 = vmatprep.mubr.bf16.mxu0 %v3328
    %3595 = vmatmul.mubr.bf16.gmra.mxu0 %v3330
    %v3596 = vpop.f32.mrf.mxu0
    %v3597 = vadd.f32 %v3375, %v3596
    %v3598 = vpop.f32.mrf.mxu0
    %v3599 = vadd.f32 %v3379, %v3598
    %v3600 = vpop.f32.mrf.mxu0
    %v3601 = vadd.f32 %v3375, %v3600
    %v3602 = vpop.f32.mrf.mxu0
    %v3603 = vadd.f32 %v3379, %v3602
    %3604 = vmatprep.mubr.bf16.mxu0 %v3328
    %3605 = vmatmul.mubr.bf16.gmra.mxu0 %v3331
    %v3606 = vpop.f32.mrf.mxu0
    %v3607 = vadd.f32 %v3375, %v3606
    %v3608 = vpop.f32.mrf.mxu0
    %v3609 = vadd.f32 %v3379, %v3608
    %v3610 = vpop.f32.mrf.mxu0
    %v3611 = vadd.f32 %v3375, %v3610
    %v3612 = vpop.f32.mrf.mxu0
    %v3613 = vadd.f32 %v3379, %v3612
    %3614 = vmatprep.mubr.bf16.mxu0 %v3328
    %3615 = vmatmul.mubr.bf16.gmra.mxu0 %v3332
    %v3616 = vpop.f32.mrf.mxu0
    %v3617 = vadd.f32 %v3375, %v3616
    %v3618 = vpop.f32.mrf.mxu0
    %v3619 = vadd.f32 %v3379, %v3618
    %v3620 = vpop.f32.mrf.mxu0
    %v3621 = vadd.f32 %v3375, %v3620
    %v3622 = vpop.f32.mrf.mxu0
    %v3623 = vadd.f32 %v3379, %v3622
    %3624 = vmatprep.mubr.bf16.mxu0 %v3328
    %3625 = vmatmul.mubr.bf16.gmra.mxu0 %v3333
    %v3626 = vpop.f32.mrf.mxu0
    %v3627 = vadd.f32 %v3375, %v3626
    %v3628 = vpop.f32.mrf.mxu0
    %v3629 = vadd.f32 %v3379, %v3628
    %v3630 = vpop.f32.mrf.mxu0
    %v3631 = vadd.f32 %v3375, %v3630
    %v3632 = vpop.f32.mrf.mxu0
    %v3633 = vadd.f32 %v3379, %v3632
    %3634 = vmatprep.mubr.bf16.mxu0 %v3328
    %3635 = vmatmul.mubr.bf16.gmra.mxu0 %v3334
    %v3636 = vpop.f32.mrf.mxu0
    %v3637 = vadd.f32 %v3375, %v3636
    %v3638 = vpop.f32.mrf.mxu0
    %v3639 = vadd.f32 %v3379, %v3638
    %v3640 = vpop.f32.mrf.mxu0
    %v3641 = vadd.f32 %v3375, %v3640
    %v3642 = vpop.f32.mrf.mxu0
    %v3643 = vadd.f32 %v3379, %v3642
    %3644 = vmatprep.mubr.bf16.mxu0 %v3328
    %3645 = vmatmul.mubr.bf16.gmra.mxu0 %v3335
    %v3646 = vpop.f32.mrf.mxu0
    %v3647 = vadd.f32 %v3375, %v3646
    %v3648 = vpop.f32.mrf.mxu0
    %v3649 = vadd.f32 %v3379, %v3648
    %v3650 = vpop.f32.mrf.mxu0
    %v3651 = vadd.f32 %v3375, %v3650
    %v3652 = vpop.f32.mrf.mxu0
    %v3653 = vadd.f32 %v3379, %v3652
    %3654 = vdwg.mxu0
    %v3655 = vmul.f32 %v3577, 0.2
    %v3656 = vmul.f32 %v3579, 0.2
    %v3657 = vmul.f32 %v3581, 0.2
    %v3658 = vmul.f32 %v3583, 0.2
    %v3659 = vmul.f32 %v3587, 0.2
    %v3660 = vmul.f32 %v3589, 0.2
    %v3661 = vmul.f32 %v3591, 0.2
    %v3662 = vmul.f32 %v3593, 0.2
    %v3663 = vmul.f32 %v3597, 0.2
    %v3664 = vmul.f32 %v3599, 0.2
    %v3665 = vmul.f32 %v3601, 0.2
    %v3666 = vmul.f32 %v3603, 0.2
    %v3667 = vmul.f32 %v3607, 0.2
    %v3668 = vmul.f32 %v3609, 0.2
    %v3669 = vmul.f32 %v3611, 0.2
    %v3670 = vmul.f32 %v3613, 0.2
    %v3671 = vmul.f32 %v3617, 0.2
    %v3672 = vmul.f32 %v3619, 0.2
    %v3673 = vmul.f32 %v3621, 0.2
    %v3674 = vmul.f32 %v3623, 0.2
    %v3675 = vmul.f32 %v3627, 0.2
    %v3676 = vmul.f32 %v3629, 0.2
    %v3677 = vmul.f32 %v3631, 0.2
    %v3678 = vmul.f32 %v3633, 0.2
    %v3679 = vmul.f32 %v3637, 0.2
    %v3680 = vmul.f32 %v3639, 0.2
    %v3681 = vmul.f32 %v3641, 0.2
    %v3682 = vmul.f32 %v3643, 0.2
    %v3683 = vmul.f32 %v3647, 0.2
    %v3684 = vmul.f32 %v3649, 0.2
    %v3685 = vmul.f32 %v3651, 0.2
    %v3686 = vmul.f32 %v3653, 0.2
    %v3687 = vmax.f32 %v3577, %v3655
    %v3688 = vmax.f32 %v3579, %v3656
    %v3689 = vmax.f32 %v3581, %v3657
    %v3690 = vmax.f32 %v3583, %v3658
    %v3691 = vmax.f32 %v3587, %v3659
    %v3692 = vmax.f32 %v3589, %v3660
    %v3693 = vmax.f32 %v3591, %v3661
    %v3694 = vmax.f32 %v3593, %v3662
    %v3695 = vmax.f32 %v3597, %v3663
    %v3696 = vmax.f32 %v3599, %v3664
    %v3697 = vmax.f32 %v3601, %v3665
    %v3698 = vmax.f32 %v3603, %v3666
    %v3699 = vmax.f32 %v3607, %v3667
    %v3700 = vmax.f32 %v3609, %v3668
    %v3701 = vmax.f32 %v3611, %v3669
    %v3702 = vmax.f32 %v3613, %v3670
    %v3703 = vmax.f32 %v3617, %v3671
    %v3704 = vmax.f32 %v3619, %v3672
    %v3705 = vmax.f32 %v3621, %v3673
    %v3706 = vmax.f32 %v3623, %v3674
    %v3707 = vmax.f32 %v3627, %v3675
    %v3708 = vmax.f32 %v3629, %v3676
    %v3709 = vmax.f32 %v3631, %v3677
    %v3710 = vmax.f32 %v3633, %v3678
    %v3711 = vmax.f32 %v3637, %v3679
    %v3712 = vmax.f32 %v3639, %v3680
    %v3713 = vmax.f32 %v3641, %v3681
    %v3714 = vmax.f32 %v3643, %v3682
    %v3715 = vmax.f32 %v3647, %v3683
    %v3716 = vmax.f32 %v3649, %v3684
    %v3717 = vmax.f32 %v3651, %v3685
    %v3718 = vmax.f32 %v3653, %v3686
    %v3719 = vpack.c.bf16 %v3689, %v3687
    %v3720 = vpack.c.bf16 %v3690, %v3688
    %v3721 = vpack.c.bf16 %v3693, %v3691
    %v3722 = vpack.c.bf16 %v3694, %v3692
    %v3723 = vpack.c.bf16 %v3697, %v3695
    %v3724 = vpack.c.bf16 %v3698, %v3696
    %v3725 = vpack.c.bf16 %v3701, %v3699
    %v3726 = vpack.c.bf16 %v3702, %v3700
    %v3727 = vpack.c.bf16 %v3705, %v3703
    %v3728 = vpack.c.bf16 %v3706, %v3704
    %v3729 = vpack.c.bf16 %v3709, %v3707
    %v3730 = vpack.c.bf16 %v3710, %v3708
    %v3731 = vpack.c.bf16 %v3713, %v3711
    %v3732 = vpack.c.bf16 %v3714, %v3712
    %v3733 = vpack.c.bf16 %v3717, %v3715
    %v3734 = vpack.c.bf16 %v3718, %v3716
    %s3735 = scalar_lea.vmem [#allocation7], 2304
    %v3736 = vld [vmem:[%s3735] sm:$0xff]
    %v3737 = vld [vmem:[%s3735 + $0x8] sm:$0xff]
    %v3738 = vld [vmem:[%s3735 + $0x10] sm:$0xff]
    %v3739 = vld [vmem:[%s3735 + $0x18] sm:$0xff]
    %v3740 = vld [vmem:[%s3735 + $0x20] sm:$0xff]
    %v3741 = vld [vmem:[%s3735 + $0x28] sm:$0xff]
    %v3742 = vld [vmem:[%s3735 + $0x30] sm:$0xff]
    %v3743 = vld [vmem:[%s3735 + $0x38] sm:$0xff]
    %v3744 = vld [vmem:[%s3735 + $0x40] sm:$0xff]
    %v3745 = vld [vmem:[%s3735 + $0x48] sm:$0xff]
    %v3746 = vld [vmem:[%s3735 + $0x50] sm:$0xff]
    %v3747 = vld [vmem:[%s3735 + $0x58] sm:$0xff]
    %v3748 = vld [vmem:[%s3735 + $0x60] sm:$0xff]
    %v3749 = vld [vmem:[%s3735 + $0x68] sm:$0xff]
    %v3750 = vld [vmem:[%s3735 + $0x70] sm:$0xff]
    %v3751 = vld [vmem:[%s3735 + $0x78] sm:$0xff]
    %v3752 = vld [vmem:[%s3735 + $0x80] sm:$0xff]
    %v3753 = vld [vmem:[%s3735 + $0x88] sm:$0xff]
    %v3754 = vld [vmem:[%s3735 + $0x90] sm:$0xff]
    %v3755 = vld [vmem:[%s3735 + $0x98] sm:$0xff]
    %v3756 = vld [vmem:[%s3735 + $0xa0] sm:$0xff]
    %v3757 = vld [vmem:[%s3735 + $0xa8] sm:$0xff]
    %v3758 = vld [vmem:[%s3735 + $0xb0] sm:$0xff]
    %v3759 = vld [vmem:[%s3735 + $0xb8] sm:$0xff]
    %v3760 = vld [vmem:[%s3735 + $0xc0] sm:$0xff]
    %v3761 = vld [vmem:[%s3735 + $0xc8] sm:$0xff]
    %v3762 = vld [vmem:[%s3735 + $0xd0] sm:$0xff]
    %v3763 = vld [vmem:[%s3735 + $0xd8] sm:$0xff]
    %v3764 = vld [vmem:[%s3735 + $0xe0] sm:$0xff]
    %v3765 = vld [vmem:[%s3735 + $0xe8] sm:$0xff]
    %v3766 = vld [vmem:[%s3735 + $0xf0] sm:$0xff]
    %v3767 = vld [vmem:[%s3735 + $0xf8] sm:$0xff]
    %s3768 = scalar_lea.vmem [#allocation8], 18
    %v3769 = vld [vmem:[%s3768] sm:$0x3]
    %v3771 = vlaneseq
    %v3772 = vshrl.u32 %v3771, 7
    %v3773 = vsub.s32 0, %v3772
    %v3774 = vrot.slane %v3769, %v3773
    %v3775 = vlaneseq
    %v3776 = vshrl.u32 %v3775, 7
    %v3777 = vsub.s32 1, %v3776
    %v3778 = vrot.slane %v3769, %v3777
    %v3813 = vunpack.c.l.b16 %v3736
    %v3814 = vunpack.c.h.b16 %v3736
    %v3815 = vunpack.c.l.b16 %v3737
    %v3816 = vunpack.c.h.b16 %v3737
    %v3817 = vunpack.c.l.b16 %v3738
    %v3818 = vunpack.c.h.b16 %v3738
    %v3819 = vunpack.c.l.b16 %v3739
    %v3820 = vunpack.c.h.b16 %v3739
    %v3821 = vunpack.c.l.b16 %v3740
    %v3822 = vunpack.c.h.b16 %v3740
    %v3823 = vunpack.c.l.b16 %v3741
    %v3824 = vunpack.c.h.b16 %v3741
    %v3825 = vunpack.c.l.b16 %v3742
    %v3826 = vunpack.c.h.b16 %v3742
    %v3827 = vunpack.c.l.b16 %v3743
    %v3828 = vunpack.c.h.b16 %v3743
    %v3829 = vunpack.c.l.b16 %v3744
    %v3830 = vunpack.c.h.b16 %v3744
    %v3831 = vunpack.c.l.b16 %v3745
    %v3832 = vunpack.c.h.b16 %v3745
    %v3833 = vunpack.c.l.b16 %v3746
    %v3834 = vunpack.c.h.b16 %v3746
    %v3835 = vunpack.c.l.b16 %v3747
    %v3836 = vunpack.c.h.b16 %v3747
    %v3837 = vunpack.c.l.b16 %v3748
    %v3838 = vunpack.c.h.b16 %v3748
    %v3839 = vunpack.c.l.b16 %v3749
    %v3840 = vunpack.c.h.b16 %v3749
    %v3841 = vunpack.c.l.b16 %v3750
    %v3842 = vunpack.c.h.b16 %v3750
    %v3843 = vunpack.c.l.b16 %v3751
    %v3844 = vunpack.c.h.b16 %v3751
    %v3845 = vunpack.c.l.b16 %v3752
    %v3846 = vunpack.c.h.b16 %v3752
    %v3847 = vunpack.c.l.b16 %v3753
    %v3848 = vunpack.c.h.b16 %v3753
    %v3849 = vunpack.c.l.b16 %v3754
    %v3850 = vunpack.c.h.b16 %v3754
    %v3851 = vunpack.c.l.b16 %v3755
    %v3852 = vunpack.c.h.b16 %v3755
    %v3853 = vunpack.c.l.b16 %v3756
    %v3854 = vunpack.c.h.b16 %v3756
    %v3855 = vunpack.c.l.b16 %v3757
    %v3856 = vunpack.c.h.b16 %v3757
    %v3857 = vunpack.c.l.b16 %v3758
    %v3858 = vunpack.c.h.b16 %v3758
    %v3859 = vunpack.c.l.b16 %v3759
    %v3860 = vunpack.c.h.b16 %v3759
    %v3861 = vunpack.c.l.b16 %v3760
    %v3862 = vunpack.c.h.b16 %v3760
    %v3863 = vunpack.c.l.b16 %v3761
    %v3864 = vunpack.c.h.b16 %v3761
    %v3865 = vunpack.c.l.b16 %v3762
    %v3866 = vunpack.c.h.b16 %v3762
    %v3867 = vunpack.c.l.b16 %v3763
    %v3868 = vunpack.c.h.b16 %v3763
    %v3869 = vunpack.c.l.b16 %v3764
    %v3870 = vunpack.c.h.b16 %v3764
    %v3871 = vunpack.c.l.b16 %v3765
    %v3872 = vunpack.c.h.b16 %v3765
    %v3873 = vunpack.c.l.b16 %v3766
    %v3874 = vunpack.c.h.b16 %v3766
    %v3875 = vunpack.c.l.b16 %v3767
    %v3876 = vunpack.c.h.b16 %v3767
    %v3877 = vpack.c.b16 %v3815, %v3813
    %v3878 = vpack.c.b16 %v3816, %v3814
    %v3879 = vpack.c.b16 %v3819, %v3817
    %v3880 = vpack.c.b16 %v3820, %v3818
    %v3881 = vpack.c.b16 %v3823, %v3821
    %v3882 = vpack.c.b16 %v3824, %v3822
    %v3883 = vpack.c.b16 %v3827, %v3825
    %v3884 = vpack.c.b16 %v3828, %v3826
    %v3885 = vpack.c.b16 %v3831, %v3829
    %v3886 = vpack.c.b16 %v3832, %v3830
    %v3887 = vpack.c.b16 %v3835, %v3833
    %v3888 = vpack.c.b16 %v3836, %v3834
    %v3889 = vpack.c.b16 %v3839, %v3837
    %v3890 = vpack.c.b16 %v3840, %v3838
    %v3891 = vpack.c.b16 %v3843, %v3841
    %v3892 = vpack.c.b16 %v3844, %v3842
    %v3893 = vpack.c.b16 %v3847, %v3845
    %v3894 = vpack.c.b16 %v3848, %v3846
    %v3895 = vpack.c.b16 %v3851, %v3849
    %v3896 = vpack.c.b16 %v3852, %v3850
    %v3897 = vpack.c.b16 %v3855, %v3853
    %v3898 = vpack.c.b16 %v3856, %v3854
    %v3899 = vpack.c.b16 %v3859, %v3857
    %v3900 = vpack.c.b16 %v3860, %v3858
    %v3901 = vpack.c.b16 %v3863, %v3861
    %v3902 = vpack.c.b16 %v3864, %v3862
    %v3903 = vpack.c.b16 %v3867, %v3865
    %v3904 = vpack.c.b16 %v3868, %v3866
    %v3905 = vpack.c.b16 %v3871, %v3869
    %v3906 = vpack.c.b16 %v3872, %v3870
    %v3907 = vpack.c.b16 %v3875, %v3873
    %v3908 = vpack.c.b16 %v3876, %v3874
    %3941 = vmatprep.subr.bf16.mxu0 %v3892
    %3942 = vmatpush1.bf16.msra.mxu0 %v3891
    %3943 = vmatprep.subr.bf16.mxu0 %v3890
    %3944 = vmatpush1.bf16.msra.mxu0 %v3889
    %3945 = vmatprep.subr.bf16.mxu0 %v3888
    %3946 = vmatpush1.bf16.msra.mxu0 %v3887
    %3947 = vmatprep.subr.bf16.mxu0 %v3886
    %3948 = vmatpush1.bf16.msra.mxu0 %v3885
    %3949 = vmatprep.subr.bf16.mxu0 %v3884
    %3950 = vmatpush1.bf16.msra.mxu0 %v3883
    %3951 = vmatprep.subr.bf16.mxu0 %v3882
    %3952 = vmatpush1.bf16.msra.mxu0 %v3881
    %3953 = vmatprep.subr.bf16.mxu0 %v3880
    %3954 = vmatpush1.bf16.msra.mxu0 %v3879
    %3955 = vmatprep.subr.bf16.mxu0 %v3878
    %3956 = vmatpush1.bf16.msra.mxu0 %v3877
    %3957 = vmatprep.subr.bf16.mxu0 %v3908
    %3958 = vmatpush2.bf16.msra.mxu0 %v3907
    %3959 = vmatprep.subr.bf16.mxu0 %v3906
    %3960 = vmatpush2.bf16.msra.mxu0 %v3905
    %3961 = vmatprep.subr.bf16.mxu0 %v3904
    %3962 = vmatpush2.bf16.msra.mxu0 %v3903
    %3963 = vmatprep.subr.bf16.mxu0 %v3902
    %3964 = vmatpush2.bf16.msra.mxu0 %v3901
    %3965 = vmatprep.subr.bf16.mxu0 %v3900
    %3966 = vmatpush2.bf16.msra.mxu0 %v3899
    %3967 = vmatprep.subr.bf16.mxu0 %v3898
    %3968 = vmatpush2.bf16.msra.mxu0 %v3897
    %3969 = vmatprep.subr.bf16.mxu0 %v3896
    %3970 = vmatpush2.bf16.msra.mxu0 %v3895
    %3971 = vmatprep.subr.bf16.mxu0 %v3894
    %3972 = vmatpush2.bf16.msra.mxu0 %v3893
    %3973 = vmatprep.mubr.bf16.mxu0 %v3720
    %3974 = vmatmul.mubr.bf16.gmra.mxu0 %v3719
    %v3975 = vpop.f32.mrf.mxu0
    %v3976 = vadd.f32 %v3774, %v3975
    %v3977 = vpop.f32.mrf.mxu0
    %v3978 = vadd.f32 %v3778, %v3977
    %v3979 = vpop.f32.mrf.mxu0
    %v3980 = vadd.f32 %v3774, %v3979
    %v3981 = vpop.f32.mrf.mxu0
    %v3982 = vadd.f32 %v3778, %v3981
    %3983 = vmatprep.mubr.bf16.mxu0 %v3722
    %3984 = vmatmul.mubr.bf16.gmra.mxu0 %v3721
    %v3985 = vpop.f32.mrf.mxu0
    %v3986 = vadd.f32 %v3774, %v3985
    %v3987 = vpop.f32.mrf.mxu0
    %v3988 = vadd.f32 %v3778, %v3987
    %v3989 = vpop.f32.mrf.mxu0
    %v3990 = vadd.f32 %v3774, %v3989
    %v3991 = vpop.f32.mrf.mxu0
    %v3992 = vadd.f32 %v3778, %v3991
    %3993 = vmatprep.mubr.bf16.mxu0 %v3724
    %3994 = vmatmul.mubr.bf16.gmra.mxu0 %v3723
    %v3995 = vpop.f32.mrf.mxu0
    %v3996 = vadd.f32 %v3774, %v3995
    %v3997 = vpop.f32.mrf.mxu0
    %v3998 = vadd.f32 %v3778, %v3997
    %v3999 = vpop.f32.mrf.mxu0
    %v4000 = vadd.f32 %v3774, %v3999
    %v4001 = vpop.f32.mrf.mxu0
    %v4002 = vadd.f32 %v3778, %v4001
    %4003 = vmatprep.mubr.bf16.mxu0 %v3726
    %4004 = vmatmul.mubr.bf16.gmra.mxu0 %v3725
    %v4005 = vpop.f32.mrf.mxu0
    %v4006 = vadd.f32 %v3774, %v4005
    %v4007 = vpop.f32.mrf.mxu0
    %v4008 = vadd.f32 %v3778, %v4007
    %v4009 = vpop.f32.mrf.mxu0
    %v4010 = vadd.f32 %v3774, %v4009
    %v4011 = vpop.f32.mrf.mxu0
    %v4012 = vadd.f32 %v3778, %v4011
    %4013 = vmatprep.mubr.bf16.mxu0 %v3728
    %4014 = vmatmul.mubr.bf16.gmra.mxu0 %v3727
    %v4015 = vpop.f32.mrf.mxu0
    %v4016 = vadd.f32 %v3774, %v4015
    %v4017 = vpop.f32.mrf.mxu0
    %v4018 = vadd.f32 %v3778, %v4017
    %v4019 = vpop.f32.mrf.mxu0
    %v4020 = vadd.f32 %v3774, %v4019
    %v4021 = vpop.f32.mrf.mxu0
    %v4022 = vadd.f32 %v3778, %v4021
    %4023 = vmatprep.mubr.bf16.mxu0 %v3730
    %4024 = vmatmul.mubr.bf16.gmra.mxu0 %v3729
    %v4025 = vpop.f32.mrf.mxu0
    %v4026 = vadd.f32 %v3774, %v4025
    %v4027 = vpop.f32.mrf.mxu0
    %v4028 = vadd.f32 %v3778, %v4027
    %v4029 = vpop.f32.mrf.mxu0
    %v4030 = vadd.f32 %v3774, %v4029
    %v4031 = vpop.f32.mrf.mxu0
    %v4032 = vadd.f32 %v3778, %v4031
    %4033 = vmatprep.mubr.bf16.mxu0 %v3732
    %4034 = vmatmul.mubr.bf16.gmra.mxu0 %v3731
    %v4035 = vpop.f32.mrf.mxu0
    %v4036 = vadd.f32 %v3774, %v4035
    %v4037 = vpop.f32.mrf.mxu0
    %v4038 = vadd.f32 %v3778, %v4037
    %v4039 = vpop.f32.mrf.mxu0
    %v4040 = vadd.f32 %v3774, %v4039
    %v4041 = vpop.f32.mrf.mxu0
    %v4042 = vadd.f32 %v3778, %v4041
    %4043 = vmatprep.mubr.bf16.mxu0 %v3734
    %4044 = vmatmul.mubr.bf16.gmra.mxu0 %v3733
    %v4045 = vpop.f32.mrf.mxu0
    %v4046 = vadd.f32 %v3774, %v4045
    %v4047 = vpop.f32.mrf.mxu0
    %v4048 = vadd.f32 %v3778, %v4047
    %v4049 = vpop.f32.mrf.mxu0
    %v4050 = vadd.f32 %v3774, %v4049
    %v4051 = vpop.f32.mrf.mxu0
    %v4052 = vadd.f32 %v3778, %v4051
    %4053 = vdwg.mxu0
    %v4054 = vmul.f32 %v3976, 0.2
    %v4055 = vmul.f32 %v3978, 0.2
    %v4056 = vmul.f32 %v3980, 0.2
    %v4057 = vmul.f32 %v3982, 0.2
    %v4058 = vmul.f32 %v3986, 0.2
    %v4059 = vmul.f32 %v3988, 0.2
    %v4060 = vmul.f32 %v3990, 0.2
    %v4061 = vmul.f32 %v3992, 0.2
    %v4062 = vmul.f32 %v3996, 0.2
    %v4063 = vmul.f32 %v3998, 0.2
    %v4064 = vmul.f32 %v4000, 0.2
    %v4065 = vmul.f32 %v4002, 0.2
    %v4066 = vmul.f32 %v4006, 0.2
    %v4067 = vmul.f32 %v4008, 0.2
    %v4068 = vmul.f32 %v4010, 0.2
    %v4069 = vmul.f32 %v4012, 0.2
    %v4070 = vmul.f32 %v4016, 0.2
    %v4071 = vmul.f32 %v4018, 0.2
    %v4072 = vmul.f32 %v4020, 0.2
    %v4073 = vmul.f32 %v4022, 0.2
    %v4074 = vmul.f32 %v4026, 0.2
    %v4075 = vmul.f32 %v4028, 0.2
    %v4076 = vmul.f32 %v4030, 0.2
    %v4077 = vmul.f32 %v4032, 0.2
    %v4078 = vmul.f32 %v4036, 0.2
    %v4079 = vmul.f32 %v4038, 0.2
    %v4080 = vmul.f32 %v4040, 0.2
    %v4081 = vmul.f32 %v4042, 0.2
    %v4082 = vmul.f32 %v4046, 0.2
    %v4083 = vmul.f32 %v4048, 0.2
    %v4084 = vmul.f32 %v4050, 0.2
    %v4085 = vmul.f32 %v4052, 0.2
    %v4086 = vmax.f32 %v3976, %v4054
    %v4087 = vmax.f32 %v3978, %v4055
    %v4088 = vmax.f32 %v3980, %v4056
    %v4089 = vmax.f32 %v3982, %v4057
    %v4090 = vmax.f32 %v3986, %v4058
    %v4091 = vmax.f32 %v3988, %v4059
    %v4092 = vmax.f32 %v3990, %v4060
    %v4093 = vmax.f32 %v3992, %v4061
    %v4094 = vmax.f32 %v3996, %v4062
    %v4095 = vmax.f32 %v3998, %v4063
    %v4096 = vmax.f32 %v4000, %v4064
    %v4097 = vmax.f32 %v4002, %v4065
    %v4098 = vmax.f32 %v4006, %v4066
    %v4099 = vmax.f32 %v4008, %v4067
    %v4100 = vmax.f32 %v4010, %v4068
    %v4101 = vmax.f32 %v4012, %v4069
    %v4102 = vmax.f32 %v4016, %v4070
    %v4103 = vmax.f32 %v4018, %v4071
    %v4104 = vmax.f32 %v4020, %v4072
    %v4105 = vmax.f32 %v4022, %v4073
    %v4106 = vmax.f32 %v4026, %v4074
    %v4107 = vmax.f32 %v4028, %v4075
    %v4108 = vmax.f32 %v4030, %v4076
    %v4109 = vmax.f32 %v4032, %v4077
    %v4110 = vmax.f32 %v4036, %v4078
    %v4111 = vmax.f32 %v4038, %v4079
    %v4112 = vmax.f32 %v4040, %v4080
    %v4113 = vmax.f32 %v4042, %v4081
    %v4114 = vmax.f32 %v4046, %v4082
    %v4115 = vmax.f32 %v4048, %v4083
    %v4116 = vmax.f32 %v4050, %v4084
    %v4117 = vmax.f32 %v4052, %v4085
    %v4118 = vpack.c.bf16 %v4088, %v4086
    %v4119 = vpack.c.bf16 %v4089, %v4087
    %v4120 = vpack.c.bf16 %v4092, %v4090
    %v4121 = vpack.c.bf16 %v4093, %v4091
    %v4122 = vpack.c.bf16 %v4096, %v4094
    %v4123 = vpack.c.bf16 %v4097, %v4095
    %v4124 = vpack.c.bf16 %v4100, %v4098
    %v4125 = vpack.c.bf16 %v4101, %v4099
    %v4126 = vpack.c.bf16 %v4104, %v4102
    %v4127 = vpack.c.bf16 %v4105, %v4103
    %v4128 = vpack.c.bf16 %v4108, %v4106
    %v4129 = vpack.c.bf16 %v4109, %v4107
    %v4130 = vpack.c.bf16 %v4112, %v4110
    %v4131 = vpack.c.bf16 %v4113, %v4111
    %v4132 = vpack.c.bf16 %v4116, %v4114
    %v4133 = vpack.c.bf16 %v4117, %v4115
    %s4134 = scalar_lea.vmem [#allocation7], 2560
    %v4135 = vld [vmem:[%s4134] sm:$0xff]
    %v4136 = vld [vmem:[%s4134 + $0x8] sm:$0xff]
    %v4137 = vld [vmem:[%s4134 + $0x10] sm:$0xff]
    %v4138 = vld [vmem:[%s4134 + $0x18] sm:$0xff]
    %v4139 = vld [vmem:[%s4134 + $0x20] sm:$0xff]
    %v4140 = vld [vmem:[%s4134 + $0x28] sm:$0xff]
    %v4141 = vld [vmem:[%s4134 + $0x30] sm:$0xff]
    %v4142 = vld [vmem:[%s4134 + $0x38] sm:$0xff]
    %v4143 = vld [vmem:[%s4134 + $0x40] sm:$0xff]
    %v4144 = vld [vmem:[%s4134 + $0x48] sm:$0xff]
    %v4145 = vld [vmem:[%s4134 + $0x50] sm:$0xff]
    %v4146 = vld [vmem:[%s4134 + $0x58] sm:$0xff]
    %v4147 = vld [vmem:[%s4134 + $0x60] sm:$0xff]
    %v4148 = vld [vmem:[%s4134 + $0x68] sm:$0xff]
    %v4149 = vld [vmem:[%s4134 + $0x70] sm:$0xff]
    %v4150 = vld [vmem:[%s4134 + $0x78] sm:$0xff]
    %v4151 = vld [vmem:[%s4134 + $0x80] sm:$0xff]
    %v4152 = vld [vmem:[%s4134 + $0x88] sm:$0xff]
    %v4153 = vld [vmem:[%s4134 + $0x90] sm:$0xff]
    %v4154 = vld [vmem:[%s4134 + $0x98] sm:$0xff]
    %v4155 = vld [vmem:[%s4134 + $0xa0] sm:$0xff]
    %v4156 = vld [vmem:[%s4134 + $0xa8] sm:$0xff]
    %v4157 = vld [vmem:[%s4134 + $0xb0] sm:$0xff]
    %v4158 = vld [vmem:[%s4134 + $0xb8] sm:$0xff]
    %v4159 = vld [vmem:[%s4134 + $0xc0] sm:$0xff]
    %v4160 = vld [vmem:[%s4134 + $0xc8] sm:$0xff]
    %v4161 = vld [vmem:[%s4134 + $0xd0] sm:$0xff]
    %v4162 = vld [vmem:[%s4134 + $0xd8] sm:$0xff]
    %v4163 = vld [vmem:[%s4134 + $0xe0] sm:$0xff]
    %v4164 = vld [vmem:[%s4134 + $0xe8] sm:$0xff]
    %v4165 = vld [vmem:[%s4134 + $0xf0] sm:$0xff]
    %v4166 = vld [vmem:[%s4134 + $0xf8] sm:$0xff]
    %s4167 = scalar_lea.vmem [#allocation8], 20
    %v4168 = vld [vmem:[%s4167] sm:$0x3]
    %v4170 = vlaneseq
    %v4171 = vshrl.u32 %v4170, 7
    %v4172 = vsub.s32 0, %v4171
    %v4173 = vrot.slane %v4168, %v4172
    %v4174 = vlaneseq
    %v4175 = vshrl.u32 %v4174, 7
    %v4176 = vsub.s32 1, %v4175
    %v4177 = vrot.slane %v4168, %v4176
    %v4212 = vunpack.c.l.b16 %v4135
    %v4213 = vunpack.c.h.b16 %v4135
    %v4214 = vunpack.c.l.b16 %v4136
    %v4215 = vunpack.c.h.b16 %v4136
    %v4216 = vunpack.c.l.b16 %v4137
    %v4217 = vunpack.c.h.b16 %v4137
    %v4218 = vunpack.c.l.b16 %v4138
    %v4219 = vunpack.c.h.b16 %v4138
    %v4220 = vunpack.c.l.b16 %v4139
    %v4221 = vunpack.c.h.b16 %v4139
    %v4222 = vunpack.c.l.b16 %v4140
    %v4223 = vunpack.c.h.b16 %v4140
    %v4224 = vunpack.c.l.b16 %v4141
    %v4225 = vunpack.c.h.b16 %v4141
    %v4226 = vunpack.c.l.b16 %v4142
    %v4227 = vunpack.c.h.b16 %v4142
    %v4228 = vunpack.c.l.b16 %v4143
    %v4229 = vunpack.c.h.b16 %v4143
    %v4230 = vunpack.c.l.b16 %v4144
    %v4231 = vunpack.c.h.b16 %v4144
    %v4232 = vunpack.c.l.b16 %v4145
    %v4233 = vunpack.c.h.b16 %v4145
    %v4234 = vunpack.c.l.b16 %v4146
    %v4235 = vunpack.c.h.b16 %v4146
    %v4236 = vunpack.c.l.b16 %v4147
    %v4237 = vunpack.c.h.b16 %v4147
    %v4238 = vunpack.c.l.b16 %v4148
    %v4239 = vunpack.c.h.b16 %v4148
    %v4240 = vunpack.c.l.b16 %v4149
    %v4241 = vunpack.c.h.b16 %v4149
    %v4242 = vunpack.c.l.b16 %v4150
    %v4243 = vunpack.c.h.b16 %v4150
    %v4244 = vunpack.c.l.b16 %v4151
    %v4245 = vunpack.c.h.b16 %v4151
    %v4246 = vunpack.c.l.b16 %v4152
    %v4247 = vunpack.c.h.b16 %v4152
    %v4248 = vunpack.c.l.b16 %v4153
    %v4249 = vunpack.c.h.b16 %v4153
    %v4250 = vunpack.c.l.b16 %v4154
    %v4251 = vunpack.c.h.b16 %v4154
    %v4252 = vunpack.c.l.b16 %v4155
    %v4253 = vunpack.c.h.b16 %v4155
    %v4254 = vunpack.c.l.b16 %v4156
    %v4255 = vunpack.c.h.b16 %v4156
    %v4256 = vunpack.c.l.b16 %v4157
    %v4257 = vunpack.c.h.b16 %v4157
    %v4258 = vunpack.c.l.b16 %v4158
    %v4259 = vunpack.c.h.b16 %v4158
    %v4260 = vunpack.c.l.b16 %v4159
    %v4261 = vunpack.c.h.b16 %v4159
    %v4262 = vunpack.c.l.b16 %v4160
    %v4263 = vunpack.c.h.b16 %v4160
    %v4264 = vunpack.c.l.b16 %v4161
    %v4265 = vunpack.c.h.b16 %v4161
    %v4266 = vunpack.c.l.b16 %v4162
    %v4267 = vunpack.c.h.b16 %v4162
    %v4268 = vunpack.c.l.b16 %v4163
    %v4269 = vunpack.c.h.b16 %v4163
    %v4270 = vunpack.c.l.b16 %v4164
    %v4271 = vunpack.c.h.b16 %v4164
    %v4272 = vunpack.c.l.b16 %v4165
    %v4273 = vunpack.c.h.b16 %v4165
    %v4274 = vunpack.c.l.b16 %v4166
    %v4275 = vunpack.c.h.b16 %v4166
    %v4276 = vpack.c.b16 %v4214, %v4212
    %v4277 = vpack.c.b16 %v4215, %v4213
    %v4278 = vpack.c.b16 %v4218, %v4216
    %v4279 = vpack.c.b16 %v4219, %v4217
    %v4280 = vpack.c.b16 %v4222, %v4220
    %v4281 = vpack.c.b16 %v4223, %v4221
    %v4282 = vpack.c.b16 %v4226, %v4224
    %v4283 = vpack.c.b16 %v4227, %v4225
    %v4284 = vpack.c.b16 %v4230, %v4228
    %v4285 = vpack.c.b16 %v4231, %v4229
    %v4286 = vpack.c.b16 %v4234, %v4232
    %v4287 = vpack.c.b16 %v4235, %v4233
    %v4288 = vpack.c.b16 %v4238, %v4236
    %v4289 = vpack.c.b16 %v4239, %v4237
    %v4290 = vpack.c.b16 %v4242, %v4240
    %v4291 = vpack.c.b16 %v4243, %v4241
    %v4292 = vpack.c.b16 %v4246, %v4244
    %v4293 = vpack.c.b16 %v4247, %v4245
    %v4294 = vpack.c.b16 %v4250, %v4248
    %v4295 = vpack.c.b16 %v4251, %v4249
    %v4296 = vpack.c.b16 %v4254, %v4252
    %v4297 = vpack.c.b16 %v4255, %v4253
    %v4298 = vpack.c.b16 %v4258, %v4256
    %v4299 = vpack.c.b16 %v4259, %v4257
    %v4300 = vpack.c.b16 %v4262, %v4260
    %v4301 = vpack.c.b16 %v4263, %v4261
    %v4302 = vpack.c.b16 %v4266, %v4264
    %v4303 = vpack.c.b16 %v4267, %v4265
    %v4304 = vpack.c.b16 %v4270, %v4268
    %v4305 = vpack.c.b16 %v4271, %v4269
    %v4306 = vpack.c.b16 %v4274, %v4272
    %v4307 = vpack.c.b16 %v4275, %v4273
    %4340 = vmatprep.subr.bf16.mxu0 %v4291
    %4341 = vmatpush1.bf16.msra.mxu0 %v4290
    %4342 = vmatprep.subr.bf16.mxu0 %v4289
    %4343 = vmatpush1.bf16.msra.mxu0 %v4288
    %4344 = vmatprep.subr.bf16.mxu0 %v4287
    %4345 = vmatpush1.bf16.msra.mxu0 %v4286
    %4346 = vmatprep.subr.bf16.mxu0 %v4285
    %4347 = vmatpush1.bf16.msra.mxu0 %v4284
    %4348 = vmatprep.subr.bf16.mxu0 %v4283
    %4349 = vmatpush1.bf16.msra.mxu0 %v4282
    %4350 = vmatprep.subr.bf16.mxu0 %v4281
    %4351 = vmatpush1.bf16.msra.mxu0 %v4280
    %4352 = vmatprep.subr.bf16.mxu0 %v4279
    %4353 = vmatpush1.bf16.msra.mxu0 %v4278
    %4354 = vmatprep.subr.bf16.mxu0 %v4277
    %4355 = vmatpush1.bf16.msra.mxu0 %v4276
    %4356 = vmatprep.subr.bf16.mxu0 %v4307
    %4357 = vmatpush2.bf16.msra.mxu0 %v4306
    %4358 = vmatprep.subr.bf16.mxu0 %v4305
    %4359 = vmatpush2.bf16.msra.mxu0 %v4304
    %4360 = vmatprep.subr.bf16.mxu0 %v4303
    %4361 = vmatpush2.bf16.msra.mxu0 %v4302
    %4362 = vmatprep.subr.bf16.mxu0 %v4301
    %4363 = vmatpush2.bf16.msra.mxu0 %v4300
    %4364 = vmatprep.subr.bf16.mxu0 %v4299
    %4365 = vmatpush2.bf16.msra.mxu0 %v4298
    %4366 = vmatprep.subr.bf16.mxu0 %v4297
    %4367 = vmatpush2.bf16.msra.mxu0 %v4296
    %4368 = vmatprep.subr.bf16.mxu0 %v4295
    %4369 = vmatpush2.bf16.msra.mxu0 %v4294
    %4370 = vmatprep.subr.bf16.mxu0 %v4293
    %4371 = vmatpush2.bf16.msra.mxu0 %v4292
    %4372 = vmatprep.mubr.bf16.mxu0 %v4119
    %4373 = vmatmul.mubr.bf16.gmra.mxu0 %v4118
    %v4374 = vpop.f32.mrf.mxu0
    %v4375 = vadd.f32 %v4173, %v4374
    %v4376 = vpop.f32.mrf.mxu0
    %v4377 = vadd.f32 %v4177, %v4376
    %v4378 = vpop.f32.mrf.mxu0
    %v4379 = vadd.f32 %v4173, %v4378
    %v4380 = vpop.f32.mrf.mxu0
    %v4381 = vadd.f32 %v4177, %v4380
    %4382 = vmatprep.mubr.bf16.mxu0 %v4121
    %4383 = vmatmul.mubr.bf16.gmra.mxu0 %v4120
    %v4384 = vpop.f32.mrf.mxu0
    %v4385 = vadd.f32 %v4173, %v4384
    %v4386 = vpop.f32.mrf.mxu0
    %v4387 = vadd.f32 %v4177, %v4386
    %v4388 = vpop.f32.mrf.mxu0
    %v4389 = vadd.f32 %v4173, %v4388
    %v4390 = vpop.f32.mrf.mxu0
    %v4391 = vadd.f32 %v4177, %v4390
    %4392 = vmatprep.mubr.bf16.mxu0 %v4123
    %4393 = vmatmul.mubr.bf16.gmra.mxu0 %v4122
    %v4394 = vpop.f32.mrf.mxu0
    %v4395 = vadd.f32 %v4173, %v4394
    %v4396 = vpop.f32.mrf.mxu0
    %v4397 = vadd.f32 %v4177, %v4396
    %v4398 = vpop.f32.mrf.mxu0
    %v4399 = vadd.f32 %v4173, %v4398
    %v4400 = vpop.f32.mrf.mxu0
    %v4401 = vadd.f32 %v4177, %v4400
    %4402 = vmatprep.mubr.bf16.mxu0 %v4125
    %4403 = vmatmul.mubr.bf16.gmra.mxu0 %v4124
    %v4404 = vpop.f32.mrf.mxu0
    %v4405 = vadd.f32 %v4173, %v4404
    %v4406 = vpop.f32.mrf.mxu0
    %v4407 = vadd.f32 %v4177, %v4406
    %v4408 = vpop.f32.mrf.mxu0
    %v4409 = vadd.f32 %v4173, %v4408
    %v4410 = vpop.f32.mrf.mxu0
    %v4411 = vadd.f32 %v4177, %v4410
    %4412 = vmatprep.mubr.bf16.mxu0 %v4127
    %4413 = vmatmul.mubr.bf16.gmra.mxu0 %v4126
    %v4414 = vpop.f32.mrf.mxu0
    %v4415 = vadd.f32 %v4173, %v4414
    %v4416 = vpop.f32.mrf.mxu0
    %v4417 = vadd.f32 %v4177, %v4416
    %v4418 = vpop.f32.mrf.mxu0
    %v4419 = vadd.f32 %v4173, %v4418
    %v4420 = vpop.f32.mrf.mxu0
    %v4421 = vadd.f32 %v4177, %v4420
    %4422 = vmatprep.mubr.bf16.mxu0 %v4129
    %4423 = vmatmul.mubr.bf16.gmra.mxu0 %v4128
    %v4424 = vpop.f32.mrf.mxu0
    %v4425 = vadd.f32 %v4173, %v4424
    %v4426 = vpop.f32.mrf.mxu0
    %v4427 = vadd.f32 %v4177, %v4426
    %v4428 = vpop.f32.mrf.mxu0
    %v4429 = vadd.f32 %v4173, %v4428
    %v4430 = vpop.f32.mrf.mxu0
    %v4431 = vadd.f32 %v4177, %v4430
    %4432 = vmatprep.mubr.bf16.mxu0 %v4131
    %4433 = vmatmul.mubr.bf16.gmra.mxu0 %v4130
    %v4434 = vpop.f32.mrf.mxu0
    %v4435 = vadd.f32 %v4173, %v4434
    %v4436 = vpop.f32.mrf.mxu0
    %v4437 = vadd.f32 %v4177, %v4436
    %v4438 = vpop.f32.mrf.mxu0
    %v4439 = vadd.f32 %v4173, %v4438
    %v4440 = vpop.f32.mrf.mxu0
    %v4441 = vadd.f32 %v4177, %v4440
    %4442 = vmatprep.mubr.bf16.mxu0 %v4133
    %4443 = vmatmul.mubr.bf16.gmra.mxu0 %v4132
    %v4444 = vpop.f32.mrf.mxu0
    %v4445 = vadd.f32 %v4173, %v4444
    %v4446 = vpop.f32.mrf.mxu0
    %v4447 = vadd.f32 %v4177, %v4446
    %v4448 = vpop.f32.mrf.mxu0
    %v4449 = vadd.f32 %v4173, %v4448
    %v4450 = vpop.f32.mrf.mxu0
    %v4451 = vadd.f32 %v4177, %v4450
    %4452 = vdwg.mxu0
    %v4453 = vmul.f32 %v4375, 0.2
    %v4454 = vmul.f32 %v4377, 0.2
    %v4455 = vmul.f32 %v4379, 0.2
    %v4456 = vmul.f32 %v4381, 0.2
    %v4457 = vmul.f32 %v4385, 0.2
    %v4458 = vmul.f32 %v4387, 0.2
    %v4459 = vmul.f32 %v4389, 0.2
    %v4460 = vmul.f32 %v4391, 0.2
    %v4461 = vmul.f32 %v4395, 0.2
    %v4462 = vmul.f32 %v4397, 0.2
    %v4463 = vmul.f32 %v4399, 0.2
    %v4464 = vmul.f32 %v4401, 0.2
    %v4465 = vmul.f32 %v4405, 0.2
    %v4466 = vmul.f32 %v4407, 0.2
    %v4467 = vmul.f32 %v4409, 0.2
    %v4468 = vmul.f32 %v4411, 0.2
    %v4469 = vmul.f32 %v4415, 0.2
    %v4470 = vmul.f32 %v4417, 0.2
    %v4471 = vmul.f32 %v4419, 0.2
    %v4472 = vmul.f32 %v4421, 0.2
    %v4473 = vmul.f32 %v4425, 0.2
    %v4474 = vmul.f32 %v4427, 0.2
    %v4475 = vmul.f32 %v4429, 0.2
    %v4476 = vmul.f32 %v4431, 0.2
    %v4477 = vmul.f32 %v4435, 0.2
    %v4478 = vmul.f32 %v4437, 0.2
    %v4479 = vmul.f32 %v4439, 0.2
    %v4480 = vmul.f32 %v4441, 0.2
    %v4481 = vmul.f32 %v4445, 0.2
    %v4482 = vmul.f32 %v4447, 0.2
    %v4483 = vmul.f32 %v4449, 0.2
    %v4484 = vmul.f32 %v4451, 0.2
    %v4485 = vmax.f32 %v4375, %v4453
    %v4486 = vmax.f32 %v4377, %v4454
    %v4487 = vmax.f32 %v4379, %v4455
    %v4488 = vmax.f32 %v4381, %v4456
    %v4489 = vmax.f32 %v4385, %v4457
    %v4490 = vmax.f32 %v4387, %v4458
    %v4491 = vmax.f32 %v4389, %v4459
    %v4492 = vmax.f32 %v4391, %v4460
    %v4493 = vmax.f32 %v4395, %v4461
    %v4494 = vmax.f32 %v4397, %v4462
    %v4495 = vmax.f32 %v4399, %v4463
    %v4496 = vmax.f32 %v4401, %v4464
    %v4497 = vmax.f32 %v4405, %v4465
    %v4498 = vmax.f32 %v4407, %v4466
    %v4499 = vmax.f32 %v4409, %v4467
    %v4500 = vmax.f32 %v4411, %v4468
    %v4501 = vmax.f32 %v4415, %v4469
    %v4502 = vmax.f32 %v4417, %v4470
    %v4503 = vmax.f32 %v4419, %v4471
    %v4504 = vmax.f32 %v4421, %v4472
    %v4505 = vmax.f32 %v4425, %v4473
    %v4506 = vmax.f32 %v4427, %v4474
    %v4507 = vmax.f32 %v4429, %v4475
    %v4508 = vmax.f32 %v4431, %v4476
    %v4509 = vmax.f32 %v4435, %v4477
    %v4510 = vmax.f32 %v4437, %v4478
    %v4511 = vmax.f32 %v4439, %v4479
    %v4512 = vmax.f32 %v4441, %v4480
    %v4513 = vmax.f32 %v4445, %v4481
    %v4514 = vmax.f32 %v4447, %v4482
    %v4515 = vmax.f32 %v4449, %v4483
    %v4516 = vmax.f32 %v4451, %v4484
    %v4517 = vpack.c.bf16 %v4487, %v4485
    %v4518 = vpack.c.bf16 %v4488, %v4486
    %v4519 = vpack.c.bf16 %v4491, %v4489
    %v4520 = vpack.c.bf16 %v4492, %v4490
    %v4521 = vpack.c.bf16 %v4495, %v4493
    %v4522 = vpack.c.bf16 %v4496, %v4494
    %v4523 = vpack.c.bf16 %v4499, %v4497
    %v4524 = vpack.c.bf16 %v4500, %v4498
    %v4525 = vpack.c.bf16 %v4503, %v4501
    %v4526 = vpack.c.bf16 %v4504, %v4502
    %v4527 = vpack.c.bf16 %v4507, %v4505
    %v4528 = vpack.c.bf16 %v4508, %v4506
    %v4529 = vpack.c.bf16 %v4511, %v4509
    %v4530 = vpack.c.bf16 %v4512, %v4510
    %v4531 = vpack.c.bf16 %v4515, %v4513
    %v4532 = vpack.c.bf16 %v4516, %v4514
    %s4533 = scalar_lea.vmem [#allocation7], 2816
    %v4534 = vld [vmem:[%s4533] sm:$0xff]
    %v4535 = vld [vmem:[%s4533 + $0x8] sm:$0xff]
    %v4536 = vld [vmem:[%s4533 + $0x10] sm:$0xff]
    %v4537 = vld [vmem:[%s4533 + $0x18] sm:$0xff]
    %v4538 = vld [vmem:[%s4533 + $0x20] sm:$0xff]
    %v4539 = vld [vmem:[%s4533 + $0x28] sm:$0xff]
    %v4540 = vld [vmem:[%s4533 + $0x30] sm:$0xff]
    %v4541 = vld [vmem:[%s4533 + $0x38] sm:$0xff]
    %v4542 = vld [vmem:[%s4533 + $0x40] sm:$0xff]
    %v4543 = vld [vmem:[%s4533 + $0x48] sm:$0xff]
    %v4544 = vld [vmem:[%s4533 + $0x50] sm:$0xff]
    %v4545 = vld [vmem:[%s4533 + $0x58] sm:$0xff]
    %v4546 = vld [vmem:[%s4533 + $0x60] sm:$0xff]
    %v4547 = vld [vmem:[%s4533 + $0x68] sm:$0xff]
    %v4548 = vld [vmem:[%s4533 + $0x70] sm:$0xff]
    %v4549 = vld [vmem:[%s4533 + $0x78] sm:$0xff]
    %v4550 = vld [vmem:[%s4533 + $0x80] sm:$0xff]
    %v4551 = vld [vmem:[%s4533 + $0x88] sm:$0xff]
    %v4552 = vld [vmem:[%s4533 + $0x90] sm:$0xff]
    %v4553 = vld [vmem:[%s4533 + $0x98] sm:$0xff]
    %v4554 = vld [vmem:[%s4533 + $0xa0] sm:$0xff]
    %v4555 = vld [vmem:[%s4533 + $0xa8] sm:$0xff]
    %v4556 = vld [vmem:[%s4533 + $0xb0] sm:$0xff]
    %v4557 = vld [vmem:[%s4533 + $0xb8] sm:$0xff]
    %v4558 = vld [vmem:[%s4533 + $0xc0] sm:$0xff]
    %v4559 = vld [vmem:[%s4533 + $0xc8] sm:$0xff]
    %v4560 = vld [vmem:[%s4533 + $0xd0] sm:$0xff]
    %v4561 = vld [vmem:[%s4533 + $0xd8] sm:$0xff]
    %v4562 = vld [vmem:[%s4533 + $0xe0] sm:$0xff]
    %v4563 = vld [vmem:[%s4533 + $0xe8] sm:$0xff]
    %v4564 = vld [vmem:[%s4533 + $0xf0] sm:$0xff]
    %v4565 = vld [vmem:[%s4533 + $0xf8] sm:$0xff]
    %s4566 = scalar_lea.vmem [#allocation8], 22
    %v4567 = vld [vmem:[%s4566] sm:$0x3]
    %v4569 = vlaneseq
    %v4570 = vshrl.u32 %v4569, 7
    %v4571 = vsub.s32 0, %v4570
    %v4572 = vrot.slane %v4567, %v4571
    %v4573 = vlaneseq
    %v4574 = vshrl.u32 %v4573, 7
    %v4575 = vsub.s32 1, %v4574
    %v4576 = vrot.slane %v4567, %v4575
    %v4611 = vunpack.c.l.b16 %v4534
    %v4612 = vunpack.c.h.b16 %v4534
    %v4613 = vunpack.c.l.b16 %v4535
    %v4614 = vunpack.c.h.b16 %v4535
    %v4615 = vunpack.c.l.b16 %v4536
    %v4616 = vunpack.c.h.b16 %v4536
    %v4617 = vunpack.c.l.b16 %v4537
    %v4618 = vunpack.c.h.b16 %v4537
    %v4619 = vunpack.c.l.b16 %v4538
    %v4620 = vunpack.c.h.b16 %v4538
    %v4621 = vunpack.c.l.b16 %v4539
    %v4622 = vunpack.c.h.b16 %v4539
    %v4623 = vunpack.c.l.b16 %v4540
    %v4624 = vunpack.c.h.b16 %v4540
    %v4625 = vunpack.c.l.b16 %v4541
    %v4626 = vunpack.c.h.b16 %v4541
    %v4627 = vunpack.c.l.b16 %v4542
    %v4628 = vunpack.c.h.b16 %v4542
    %v4629 = vunpack.c.l.b16 %v4543
    %v4630 = vunpack.c.h.b16 %v4543
    %v4631 = vunpack.c.l.b16 %v4544
    %v4632 = vunpack.c.h.b16 %v4544
    %v4633 = vunpack.c.l.b16 %v4545
    %v4634 = vunpack.c.h.b16 %v4545
    %v4635 = vunpack.c.l.b16 %v4546
    %v4636 = vunpack.c.h.b16 %v4546
    %v4637 = vunpack.c.l.b16 %v4547
    %v4638 = vunpack.c.h.b16 %v4547
    %v4639 = vunpack.c.l.b16 %v4548
    %v4640 = vunpack.c.h.b16 %v4548
    %v4641 = vunpack.c.l.b16 %v4549
    %v4642 = vunpack.c.h.b16 %v4549
    %v4643 = vunpack.c.l.b16 %v4550
    %v4644 = vunpack.c.h.b16 %v4550
    %v4645 = vunpack.c.l.b16 %v4551
    %v4646 = vunpack.c.h.b16 %v4551
    %v4647 = vunpack.c.l.b16 %v4552
    %v4648 = vunpack.c.h.b16 %v4552
    %v4649 = vunpack.c.l.b16 %v4553
    %v4650 = vunpack.c.h.b16 %v4553
    %v4651 = vunpack.c.l.b16 %v4554
    %v4652 = vunpack.c.h.b16 %v4554
    %v4653 = vunpack.c.l.b16 %v4555
    %v4654 = vunpack.c.h.b16 %v4555
    %v4655 = vunpack.c.l.b16 %v4556
    %v4656 = vunpack.c.h.b16 %v4556
    %v4657 = vunpack.c.l.b16 %v4557
    %v4658 = vunpack.c.h.b16 %v4557
    %v4659 = vunpack.c.l.b16 %v4558
    %v4660 = vunpack.c.h.b16 %v4558
    %v4661 = vunpack.c.l.b16 %v4559
    %v4662 = vunpack.c.h.b16 %v4559
    %v4663 = vunpack.c.l.b16 %v4560
    %v4664 = vunpack.c.h.b16 %v4560
    %v4665 = vunpack.c.l.b16 %v4561
    %v4666 = vunpack.c.h.b16 %v4561
    %v4667 = vunpack.c.l.b16 %v4562
    %v4668 = vunpack.c.h.b16 %v4562
    %v4669 = vunpack.c.l.b16 %v4563
    %v4670 = vunpack.c.h.b16 %v4563
    %v4671 = vunpack.c.l.b16 %v4564
    %v4672 = vunpack.c.h.b16 %v4564
    %v4673 = vunpack.c.l.b16 %v4565
    %v4674 = vunpack.c.h.b16 %v4565
    %v4675 = vpack.c.b16 %v4613, %v4611
    %v4676 = vpack.c.b16 %v4614, %v4612
    %v4677 = vpack.c.b16 %v4617, %v4615
    %v4678 = vpack.c.b16 %v4618, %v4616
    %v4679 = vpack.c.b16 %v4621, %v4619
    %v4680 = vpack.c.b16 %v4622, %v4620
    %v4681 = vpack.c.b16 %v4625, %v4623
    %v4682 = vpack.c.b16 %v4626, %v4624
    %v4683 = vpack.c.b16 %v4629, %v4627
    %v4684 = vpack.c.b16 %v4630, %v4628
    %v4685 = vpack.c.b16 %v4633, %v4631
    %v4686 = vpack.c.b16 %v4634, %v4632
    %v4687 = vpack.c.b16 %v4637, %v4635
    %v4688 = vpack.c.b16 %v4638, %v4636
    %v4689 = vpack.c.b16 %v4641, %v4639
    %v4690 = vpack.c.b16 %v4642, %v4640
    %v4691 = vpack.c.b16 %v4645, %v4643
    %v4692 = vpack.c.b16 %v4646, %v4644
    %v4693 = vpack.c.b16 %v4649, %v4647
    %v4694 = vpack.c.b16 %v4650, %v4648
    %v4695 = vpack.c.b16 %v4653, %v4651
    %v4696 = vpack.c.b16 %v4654, %v4652
    %v4697 = vpack.c.b16 %v4657, %v4655
    %v4698 = vpack.c.b16 %v4658, %v4656
    %v4699 = vpack.c.b16 %v4661, %v4659
    %v4700 = vpack.c.b16 %v4662, %v4660
    %v4701 = vpack.c.b16 %v4665, %v4663
    %v4702 = vpack.c.b16 %v4666, %v4664
    %v4703 = vpack.c.b16 %v4669, %v4667
    %v4704 = vpack.c.b16 %v4670, %v4668
    %v4705 = vpack.c.b16 %v4673, %v4671
    %v4706 = vpack.c.b16 %v4674, %v4672
    %4739 = vmatprep.subr.bf16.mxu0 %v4690
    %4740 = vmatpush1.bf16.msra.mxu0 %v4689
    %4741 = vmatprep.subr.bf16.mxu0 %v4688
    %4742 = vmatpush1.bf16.msra.mxu0 %v4687
    %4743 = vmatprep.subr.bf16.mxu0 %v4686
    %4744 = vmatpush1.bf16.msra.mxu0 %v4685
    %4745 = vmatprep.subr.bf16.mxu0 %v4684
    %4746 = vmatpush1.bf16.msra.mxu0 %v4683
    %4747 = vmatprep.subr.bf16.mxu0 %v4682
    %4748 = vmatpush1.bf16.msra.mxu0 %v4681
    %4749 = vmatprep.subr.bf16.mxu0 %v4680
    %4750 = vmatpush1.bf16.msra.mxu0 %v4679
    %4751 = vmatprep.subr.bf16.mxu0 %v4678
    %4752 = vmatpush1.bf16.msra.mxu0 %v4677
    %4753 = vmatprep.subr.bf16.mxu0 %v4676
    %4754 = vmatpush1.bf16.msra.mxu0 %v4675
    %4755 = vmatprep.subr.bf16.mxu0 %v4706
    %4756 = vmatpush2.bf16.msra.mxu0 %v4705
    %4757 = vmatprep.subr.bf16.mxu0 %v4704
    %4758 = vmatpush2.bf16.msra.mxu0 %v4703
    %4759 = vmatprep.subr.bf16.mxu0 %v4702
    %4760 = vmatpush2.bf16.msra.mxu0 %v4701
    %4761 = vmatprep.subr.bf16.mxu0 %v4700
    %4762 = vmatpush2.bf16.msra.mxu0 %v4699
    %4763 = vmatprep.subr.bf16.mxu0 %v4698
    %4764 = vmatpush2.bf16.msra.mxu0 %v4697
    %4765 = vmatprep.subr.bf16.mxu0 %v4696
    %4766 = vmatpush2.bf16.msra.mxu0 %v4695
    %4767 = vmatprep.subr.bf16.mxu0 %v4694
    %4768 = vmatpush2.bf16.msra.mxu0 %v4693
    %4769 = vmatprep.subr.bf16.mxu0 %v4692
    %4770 = vmatpush2.bf16.msra.mxu0 %v4691
    %4771 = vmatprep.mubr.bf16.mxu0 %v4518
    %4772 = vmatmul.mubr.bf16.gmra.mxu0 %v4517
    %v4773 = vpop.f32.mrf.mxu0
    %v4774 = vadd.f32 %v4572, %v4773
    %v4775 = vpop.f32.mrf.mxu0
    %v4776 = vadd.f32 %v4576, %v4775
    %v4777 = vpop.f32.mrf.mxu0
    %v4778 = vadd.f32 %v4572, %v4777
    %v4779 = vpop.f32.mrf.mxu0
    %v4780 = vadd.f32 %v4576, %v4779
    %4781 = vmatprep.mubr.bf16.mxu0 %v4520
    %4782 = vmatmul.mubr.bf16.gmra.mxu0 %v4519
    %v4783 = vpop.f32.mrf.mxu0
    %v4784 = vadd.f32 %v4572, %v4783
    %v4785 = vpop.f32.mrf.mxu0
    %v4786 = vadd.f32 %v4576, %v4785
    %v4787 = vpop.f32.mrf.mxu0
    %v4788 = vadd.f32 %v4572, %v4787
    %v4789 = vpop.f32.mrf.mxu0
    %v4790 = vadd.f32 %v4576, %v4789
    %4791 = vmatprep.mubr.bf16.mxu0 %v4522
    %4792 = vmatmul.mubr.bf16.gmra.mxu0 %v4521
    %v4793 = vpop.f32.mrf.mxu0
    %v4794 = vadd.f32 %v4572, %v4793
    %v4795 = vpop.f32.mrf.mxu0
    %v4796 = vadd.f32 %v4576, %v4795
    %v4797 = vpop.f32.mrf.mxu0
    %v4798 = vadd.f32 %v4572, %v4797
    %v4799 = vpop.f32.mrf.mxu0
    %v4800 = vadd.f32 %v4576, %v4799
    %4801 = vmatprep.mubr.bf16.mxu0 %v4524
    %4802 = vmatmul.mubr.bf16.gmra.mxu0 %v4523
    %v4803 = vpop.f32.mrf.mxu0
    %v4804 = vadd.f32 %v4572, %v4803
    %v4805 = vpop.f32.mrf.mxu0
    %v4806 = vadd.f32 %v4576, %v4805
    %v4807 = vpop.f32.mrf.mxu0
    %v4808 = vadd.f32 %v4572, %v4807
    %v4809 = vpop.f32.mrf.mxu0
    %v4810 = vadd.f32 %v4576, %v4809
    %4811 = vmatprep.mubr.bf16.mxu0 %v4526
    %4812 = vmatmul.mubr.bf16.gmra.mxu0 %v4525
    %v4813 = vpop.f32.mrf.mxu0
    %v4814 = vadd.f32 %v4572, %v4813
    %v4815 = vpop.f32.mrf.mxu0
    %v4816 = vadd.f32 %v4576, %v4815
    %v4817 = vpop.f32.mrf.mxu0
    %v4818 = vadd.f32 %v4572, %v4817
    %v4819 = vpop.f32.mrf.mxu0
    %v4820 = vadd.f32 %v4576, %v4819
    %4821 = vmatprep.mubr.bf16.mxu0 %v4528
    %4822 = vmatmul.mubr.bf16.gmra.mxu0 %v4527
    %v4823 = vpop.f32.mrf.mxu0
    %v4824 = vadd.f32 %v4572, %v4823
    %v4825 = vpop.f32.mrf.mxu0
    %v4826 = vadd.f32 %v4576, %v4825
    %v4827 = vpop.f32.mrf.mxu0
    %v4828 = vadd.f32 %v4572, %v4827
    %v4829 = vpop.f32.mrf.mxu0
    %v4830 = vadd.f32 %v4576, %v4829
    %4831 = vmatprep.mubr.bf16.mxu0 %v4530
    %4832 = vmatmul.mubr.bf16.gmra.mxu0 %v4529
    %v4833 = vpop.f32.mrf.mxu0
    %v4834 = vadd.f32 %v4572, %v4833
    %v4835 = vpop.f32.mrf.mxu0
    %v4836 = vadd.f32 %v4576, %v4835
    %v4837 = vpop.f32.mrf.mxu0
    %v4838 = vadd.f32 %v4572, %v4837
    %v4839 = vpop.f32.mrf.mxu0
    %v4840 = vadd.f32 %v4576, %v4839
    %4841 = vmatprep.mubr.bf16.mxu0 %v4532
    %4842 = vmatmul.mubr.bf16.gmra.mxu0 %v4531
    %v4843 = vpop.f32.mrf.mxu0
    %v4844 = vadd.f32 %v4572, %v4843
    %v4845 = vpop.f32.mrf.mxu0
    %v4846 = vadd.f32 %v4576, %v4845
    %v4847 = vpop.f32.mrf.mxu0
    %v4848 = vadd.f32 %v4572, %v4847
    %v4849 = vpop.f32.mrf.mxu0
    %v4850 = vadd.f32 %v4576, %v4849
    %4851 = vdwg.mxu0
    %v4852 = vmul.f32 %v4774, 0.2
    %v4853 = vmul.f32 %v4776, 0.2
    %v4854 = vmul.f32 %v4778, 0.2
    %v4855 = vmul.f32 %v4780, 0.2
    %v4856 = vmul.f32 %v4784, 0.2
    %v4857 = vmul.f32 %v4786, 0.2
    %v4858 = vmul.f32 %v4788, 0.2
    %v4859 = vmul.f32 %v4790, 0.2
    %v4860 = vmul.f32 %v4794, 0.2
    %v4861 = vmul.f32 %v4796, 0.2
    %v4862 = vmul.f32 %v4798, 0.2
    %v4863 = vmul.f32 %v4800, 0.2
    %v4864 = vmul.f32 %v4804, 0.2
    %v4865 = vmul.f32 %v4806, 0.2
    %v4866 = vmul.f32 %v4808, 0.2
    %v4867 = vmul.f32 %v4810, 0.2
    %v4868 = vmul.f32 %v4814, 0.2
    %v4869 = vmul.f32 %v4816, 0.2
    %v4870 = vmul.f32 %v4818, 0.2
    %v4871 = vmul.f32 %v4820, 0.2
    %v4872 = vmul.f32 %v4824, 0.2
    %v4873 = vmul.f32 %v4826, 0.2
    %v4874 = vmul.f32 %v4828, 0.2
    %v4875 = vmul.f32 %v4830, 0.2
    %v4876 = vmul.f32 %v4834, 0.2
    %v4877 = vmul.f32 %v4836, 0.2
    %v4878 = vmul.f32 %v4838, 0.2
    %v4879 = vmul.f32 %v4840, 0.2
    %v4880 = vmul.f32 %v4844, 0.2
    %v4881 = vmul.f32 %v4846, 0.2
    %v4882 = vmul.f32 %v4848, 0.2
    %v4883 = vmul.f32 %v4850, 0.2
    %v4884 = vmax.f32 %v4774, %v4852
    %v4885 = vmax.f32 %v4776, %v4853
    %v4886 = vmax.f32 %v4778, %v4854
    %v4887 = vmax.f32 %v4780, %v4855
    %v4888 = vmax.f32 %v4784, %v4856
    %v4889 = vmax.f32 %v4786, %v4857
    %v4890 = vmax.f32 %v4788, %v4858
    %v4891 = vmax.f32 %v4790, %v4859
    %v4892 = vmax.f32 %v4794, %v4860
    %v4893 = vmax.f32 %v4796, %v4861
    %v4894 = vmax.f32 %v4798, %v4862
    %v4895 = vmax.f32 %v4800, %v4863
    %v4896 = vmax.f32 %v4804, %v4864
    %v4897 = vmax.f32 %v4806, %v4865
    %v4898 = vmax.f32 %v4808, %v4866
    %v4899 = vmax.f32 %v4810, %v4867
    %v4900 = vmax.f32 %v4814, %v4868
    %v4901 = vmax.f32 %v4816, %v4869
    %v4902 = vmax.f32 %v4818, %v4870
    %v4903 = vmax.f32 %v4820, %v4871
    %v4904 = vmax.f32 %v4824, %v4872
    %v4905 = vmax.f32 %v4826, %v4873
    %v4906 = vmax.f32 %v4828, %v4874
    %v4907 = vmax.f32 %v4830, %v4875
    %v4908 = vmax.f32 %v4834, %v4876
    %v4909 = vmax.f32 %v4836, %v4877
    %v4910 = vmax.f32 %v4838, %v4878
    %v4911 = vmax.f32 %v4840, %v4879
    %v4912 = vmax.f32 %v4844, %v4880
    %v4913 = vmax.f32 %v4846, %v4881
    %v4914 = vmax.f32 %v4848, %v4882
    %v4915 = vmax.f32 %v4850, %v4883
    %v4916 = vpack.c.bf16 %v4886, %v4884
    %v4917 = vpack.c.bf16 %v4887, %v4885
    %v4918 = vpack.c.bf16 %v4890, %v4888
    %v4919 = vpack.c.bf16 %v4891, %v4889
    %v4920 = vpack.c.bf16 %v4894, %v4892
    %v4921 = vpack.c.bf16 %v4895, %v4893
    %v4922 = vpack.c.bf16 %v4898, %v4896
    %v4923 = vpack.c.bf16 %v4899, %v4897
    %v4924 = vpack.c.bf16 %v4902, %v4900
    %v4925 = vpack.c.bf16 %v4903, %v4901
    %v4926 = vpack.c.bf16 %v4906, %v4904
    %v4927 = vpack.c.bf16 %v4907, %v4905
    %v4928 = vpack.c.bf16 %v4910, %v4908
    %v4929 = vpack.c.bf16 %v4911, %v4909
    %v4930 = vpack.c.bf16 %v4914, %v4912
    %v4931 = vpack.c.bf16 %v4915, %v4913
    %s4932 = scalar_lea.vmem [#allocation7], 3072
    %v4933 = vld [vmem:[%s4932] sm:$0xff]
    %v4934 = vld [vmem:[%s4932 + $0x8] sm:$0xff]
    %v4935 = vld [vmem:[%s4932 + $0x10] sm:$0xff]
    %v4936 = vld [vmem:[%s4932 + $0x18] sm:$0xff]
    %v4937 = vld [vmem:[%s4932 + $0x20] sm:$0xff]
    %v4938 = vld [vmem:[%s4932 + $0x28] sm:$0xff]
    %v4939 = vld [vmem:[%s4932 + $0x30] sm:$0xff]
    %v4940 = vld [vmem:[%s4932 + $0x38] sm:$0xff]
    %v4941 = vld [vmem:[%s4932 + $0x40] sm:$0xff]
    %v4942 = vld [vmem:[%s4932 + $0x48] sm:$0xff]
    %v4943 = vld [vmem:[%s4932 + $0x50] sm:$0xff]
    %v4944 = vld [vmem:[%s4932 + $0x58] sm:$0xff]
    %v4945 = vld [vmem:[%s4932 + $0x60] sm:$0xff]
    %v4946 = vld [vmem:[%s4932 + $0x68] sm:$0xff]
    %v4947 = vld [vmem:[%s4932 + $0x70] sm:$0xff]
    %v4948 = vld [vmem:[%s4932 + $0x78] sm:$0xff]
    %v4949 = vld [vmem:[%s4932 + $0x80] sm:$0xff]
    %v4950 = vld [vmem:[%s4932 + $0x88] sm:$0xff]
    %v4951 = vld [vmem:[%s4932 + $0x90] sm:$0xff]
    %v4952 = vld [vmem:[%s4932 + $0x98] sm:$0xff]
    %v4953 = vld [vmem:[%s4932 + $0xa0] sm:$0xff]
    %v4954 = vld [vmem:[%s4932 + $0xa8] sm:$0xff]
    %v4955 = vld [vmem:[%s4932 + $0xb0] sm:$0xff]
    %v4956 = vld [vmem:[%s4932 + $0xb8] sm:$0xff]
    %v4957 = vld [vmem:[%s4932 + $0xc0] sm:$0xff]
    %v4958 = vld [vmem:[%s4932 + $0xc8] sm:$0xff]
    %v4959 = vld [vmem:[%s4932 + $0xd0] sm:$0xff]
    %v4960 = vld [vmem:[%s4932 + $0xd8] sm:$0xff]
    %v4961 = vld [vmem:[%s4932 + $0xe0] sm:$0xff]
    %v4962 = vld [vmem:[%s4932 + $0xe8] sm:$0xff]
    %v4963 = vld [vmem:[%s4932 + $0xf0] sm:$0xff]
    %v4964 = vld [vmem:[%s4932 + $0xf8] sm:$0xff]
    %s4965 = scalar_lea.vmem [#allocation8], 24
    %v4966 = vld [vmem:[%s4965] sm:$0x3]
    %v4968 = vlaneseq
    %v4969 = vshrl.u32 %v4968, 7
    %v4970 = vsub.s32 0, %v4969
    %v4971 = vrot.slane %v4966, %v4970
    %v4972 = vlaneseq
    %v4973 = vshrl.u32 %v4972, 7
    %v4974 = vsub.s32 1, %v4973
    %v4975 = vrot.slane %v4966, %v4974
    %v5010 = vunpack.c.l.b16 %v4933
    %v5011 = vunpack.c.h.b16 %v4933
    %v5012 = vunpack.c.l.b16 %v4934
    %v5013 = vunpack.c.h.b16 %v4934
    %v5014 = vunpack.c.l.b16 %v4935
    %v5015 = vunpack.c.h.b16 %v4935
    %v5016 = vunpack.c.l.b16 %v4936
    %v5017 = vunpack.c.h.b16 %v4936
    %v5018 = vunpack.c.l.b16 %v4937
    %v5019 = vunpack.c.h.b16 %v4937
    %v5020 = vunpack.c.l.b16 %v4938
    %v5021 = vunpack.c.h.b16 %v4938
    %v5022 = vunpack.c.l.b16 %v4939
    %v5023 = vunpack.c.h.b16 %v4939
    %v5024 = vunpack.c.l.b16 %v4940
    %v5025 = vunpack.c.h.b16 %v4940
    %v5026 = vunpack.c.l.b16 %v4941
    %v5027 = vunpack.c.h.b16 %v4941
    %v5028 = vunpack.c.l.b16 %v4942
    %v5029 = vunpack.c.h.b16 %v4942
    %v5030 = vunpack.c.l.b16 %v4943
    %v5031 = vunpack.c.h.b16 %v4943
    %v5032 = vunpack.c.l.b16 %v4944
    %v5033 = vunpack.c.h.b16 %v4944
    %v5034 = vunpack.c.l.b16 %v4945
    %v5035 = vunpack.c.h.b16 %v4945
    %v5036 = vunpack.c.l.b16 %v4946
    %v5037 = vunpack.c.h.b16 %v4946
    %v5038 = vunpack.c.l.b16 %v4947
    %v5039 = vunpack.c.h.b16 %v4947
    %v5040 = vunpack.c.l.b16 %v4948
    %v5041 = vunpack.c.h.b16 %v4948
    %v5042 = vunpack.c.l.b16 %v4949
    %v5043 = vunpack.c.h.b16 %v4949
    %v5044 = vunpack.c.l.b16 %v4950
    %v5045 = vunpack.c.h.b16 %v4950
    %v5046 = vunpack.c.l.b16 %v4951
    %v5047 = vunpack.c.h.b16 %v4951
    %v5048 = vunpack.c.l.b16 %v4952
    %v5049 = vunpack.c.h.b16 %v4952
    %v5050 = vunpack.c.l.b16 %v4953
    %v5051 = vunpack.c.h.b16 %v4953
    %v5052 = vunpack.c.l.b16 %v4954
    %v5053 = vunpack.c.h.b16 %v4954
    %v5054 = vunpack.c.l.b16 %v4955
    %v5055 = vunpack.c.h.b16 %v4955
    %v5056 = vunpack.c.l.b16 %v4956
    %v5057 = vunpack.c.h.b16 %v4956
    %v5058 = vunpack.c.l.b16 %v4957
    %v5059 = vunpack.c.h.b16 %v4957
    %v5060 = vunpack.c.l.b16 %v4958
    %v5061 = vunpack.c.h.b16 %v4958
    %v5062 = vunpack.c.l.b16 %v4959
    %v5063 = vunpack.c.h.b16 %v4959
    %v5064 = vunpack.c.l.b16 %v4960
    %v5065 = vunpack.c.h.b16 %v4960
    %v5066 = vunpack.c.l.b16 %v4961
    %v5067 = vunpack.c.h.b16 %v4961
    %v5068 = vunpack.c.l.b16 %v4962
    %v5069 = vunpack.c.h.b16 %v4962
    %v5070 = vunpack.c.l.b16 %v4963
    %v5071 = vunpack.c.h.b16 %v4963
    %v5072 = vunpack.c.l.b16 %v4964
    %v5073 = vunpack.c.h.b16 %v4964
    %v5074 = vpack.c.b16 %v5012, %v5010
    %v5075 = vpack.c.b16 %v5013, %v5011
    %v5076 = vpack.c.b16 %v5016, %v5014
    %v5077 = vpack.c.b16 %v5017, %v5015
    %v5078 = vpack.c.b16 %v5020, %v5018
    %v5079 = vpack.c.b16 %v5021, %v5019
    %v5080 = vpack.c.b16 %v5024, %v5022
    %v5081 = vpack.c.b16 %v5025, %v5023
    %v5082 = vpack.c.b16 %v5028, %v5026
    %v5083 = vpack.c.b16 %v5029, %v5027
    %v5084 = vpack.c.b16 %v5032, %v5030
    %v5085 = vpack.c.b16 %v5033, %v5031
    %v5086 = vpack.c.b16 %v5036, %v5034
    %v5087 = vpack.c.b16 %v5037, %v5035
    %v5088 = vpack.c.b16 %v5040, %v5038
    %v5089 = vpack.c.b16 %v5041, %v5039
    %v5090 = vpack.c.b16 %v5044, %v5042
    %v5091 = vpack.c.b16 %v5045, %v5043
    %v5092 = vpack.c.b16 %v5048, %v5046
    %v5093 = vpack.c.b16 %v5049, %v5047
    %v5094 = vpack.c.b16 %v5052, %v5050
    %v5095 = vpack.c.b16 %v5053, %v5051
    %v5096 = vpack.c.b16 %v5056, %v5054
    %v5097 = vpack.c.b16 %v5057, %v5055
    %v5098 = vpack.c.b16 %v5060, %v5058
    %v5099 = vpack.c.b16 %v5061, %v5059
    %v5100 = vpack.c.b16 %v5064, %v5062
    %v5101 = vpack.c.b16 %v5065, %v5063
    %v5102 = vpack.c.b16 %v5068, %v5066
    %v5103 = vpack.c.b16 %v5069, %v5067
    %v5104 = vpack.c.b16 %v5072, %v5070
    %v5105 = vpack.c.b16 %v5073, %v5071
    %5138 = vmatprep.subr.bf16.mxu0 %v5089
    %5139 = vmatpush1.bf16.msra.mxu0 %v5088
    %5140 = vmatprep.subr.bf16.mxu0 %v5087
    %5141 = vmatpush1.bf16.msra.mxu0 %v5086
    %5142 = vmatprep.subr.bf16.mxu0 %v5085
    %5143 = vmatpush1.bf16.msra.mxu0 %v5084
    %5144 = vmatprep.subr.bf16.mxu0 %v5083
    %5145 = vmatpush1.bf16.msra.mxu0 %v5082
    %5146 = vmatprep.subr.bf16.mxu0 %v5081
    %5147 = vmatpush1.bf16.msra.mxu0 %v5080
    %5148 = vmatprep.subr.bf16.mxu0 %v5079
    %5149 = vmatpush1.bf16.msra.mxu0 %v5078
    %5150 = vmatprep.subr.bf16.mxu0 %v5077
    %5151 = vmatpush1.bf16.msra.mxu0 %v5076
    %5152 = vmatprep.subr.bf16.mxu0 %v5075
    %5153 = vmatpush1.bf16.msra.mxu0 %v5074
    %5154 = vmatprep.subr.bf16.mxu0 %v5105
    %5155 = vmatpush2.bf16.msra.mxu0 %v5104
    %5156 = vmatprep.subr.bf16.mxu0 %v5103
    %5157 = vmatpush2.bf16.msra.mxu0 %v5102
    %5158 = vmatprep.subr.bf16.mxu0 %v5101
    %5159 = vmatpush2.bf16.msra.mxu0 %v5100
    %5160 = vmatprep.subr.bf16.mxu0 %v5099
    %5161 = vmatpush2.bf16.msra.mxu0 %v5098
    %5162 = vmatprep.subr.bf16.mxu0 %v5097
    %5163 = vmatpush2.bf16.msra.mxu0 %v5096
    %5164 = vmatprep.subr.bf16.mxu0 %v5095
    %5165 = vmatpush2.bf16.msra.mxu0 %v5094
    %5166 = vmatprep.subr.bf16.mxu0 %v5093
    %5167 = vmatpush2.bf16.msra.mxu0 %v5092
    %5168 = vmatprep.subr.bf16.mxu0 %v5091
    %5169 = vmatpush2.bf16.msra.mxu0 %v5090
    %5170 = vmatprep.mubr.bf16.mxu0 %v4917
    %5171 = vmatmul.mubr.bf16.gmra.mxu0 %v4916
    %v5172 = vpop.f32.mrf.mxu0
    %v5173 = vadd.f32 %v4971, %v5172
    %v5174 = vpop.f32.mrf.mxu0
    %v5175 = vadd.f32 %v4975, %v5174
    %v5176 = vpop.f32.mrf.mxu0
    %v5177 = vadd.f32 %v4971, %v5176
    %v5178 = vpop.f32.mrf.mxu0
    %v5179 = vadd.f32 %v4975, %v5178
    %5180 = vmatprep.mubr.bf16.mxu0 %v4919
    %5181 = vmatmul.mubr.bf16.gmra.mxu0 %v4918
    %v5182 = vpop.f32.mrf.mxu0
    %v5183 = vadd.f32 %v4971, %v5182
    %v5184 = vpop.f32.mrf.mxu0
    %v5185 = vadd.f32 %v4975, %v5184
    %v5186 = vpop.f32.mrf.mxu0
    %v5187 = vadd.f32 %v4971, %v5186
    %v5188 = vpop.f32.mrf.mxu0
    %v5189 = vadd.f32 %v4975, %v5188
    %5190 = vmatprep.mubr.bf16.mxu0 %v4921
    %5191 = vmatmul.mubr.bf16.gmra.mxu0 %v4920
    %v5192 = vpop.f32.mrf.mxu0
    %v5193 = vadd.f32 %v4971, %v5192
    %v5194 = vpop.f32.mrf.mxu0
    %v5195 = vadd.f32 %v4975, %v5194
    %v5196 = vpop.f32.mrf.mxu0
    %v5197 = vadd.f32 %v4971, %v5196
    %v5198 = vpop.f32.mrf.mxu0
    %v5199 = vadd.f32 %v4975, %v5198
    %5200 = vmatprep.mubr.bf16.mxu0 %v4923
    %5201 = vmatmul.mubr.bf16.gmra.mxu0 %v4922
    %v5202 = vpop.f32.mrf.mxu0
    %v5203 = vadd.f32 %v4971, %v5202
    %v5204 = vpop.f32.mrf.mxu0
    %v5205 = vadd.f32 %v4975, %v5204
    %v5206 = vpop.f32.mrf.mxu0
    %v5207 = vadd.f32 %v4971, %v5206
    %v5208 = vpop.f32.mrf.mxu0
    %v5209 = vadd.f32 %v4975, %v5208
    %5210 = vmatprep.mubr.bf16.mxu0 %v4925
    %5211 = vmatmul.mubr.bf16.gmra.mxu0 %v4924
    %v5212 = vpop.f32.mrf.mxu0
    %v5213 = vadd.f32 %v4971, %v5212
    %v5214 = vpop.f32.mrf.mxu0
    %v5215 = vadd.f32 %v4975, %v5214
    %v5216 = vpop.f32.mrf.mxu0
    %v5217 = vadd.f32 %v4971, %v5216
    %v5218 = vpop.f32.mrf.mxu0
    %v5219 = vadd.f32 %v4975, %v5218
    %5220 = vmatprep.mubr.bf16.mxu0 %v4927
    %5221 = vmatmul.mubr.bf16.gmra.mxu0 %v4926
    %v5222 = vpop.f32.mrf.mxu0
    %v5223 = vadd.f32 %v4971, %v5222
    %v5224 = vpop.f32.mrf.mxu0
    %v5225 = vadd.f32 %v4975, %v5224
    %v5226 = vpop.f32.mrf.mxu0
    %v5227 = vadd.f32 %v4971, %v5226
    %v5228 = vpop.f32.mrf.mxu0
    %v5229 = vadd.f32 %v4975, %v5228
    %5230 = vmatprep.mubr.bf16.mxu0 %v4929
    %5231 = vmatmul.mubr.bf16.gmra.mxu0 %v4928
    %v5232 = vpop.f32.mrf.mxu0
    %v5233 = vadd.f32 %v4971, %v5232
    %v5234 = vpop.f32.mrf.mxu0
    %v5235 = vadd.f32 %v4975, %v5234
    %v5236 = vpop.f32.mrf.mxu0
    %v5237 = vadd.f32 %v4971, %v5236
    %v5238 = vpop.f32.mrf.mxu0
    %v5239 = vadd.f32 %v4975, %v5238
    %5240 = vmatprep.mubr.bf16.mxu0 %v4931
    %5241 = vmatmul.mubr.bf16.gmra.mxu0 %v4930
    %v5242 = vpop.f32.mrf.mxu0
    %v5243 = vadd.f32 %v4971, %v5242
    %v5244 = vpop.f32.mrf.mxu0
    %v5245 = vadd.f32 %v4975, %v5244
    %v5246 = vpop.f32.mrf.mxu0
    %v5247 = vadd.f32 %v4971, %v5246
    %v5248 = vpop.f32.mrf.mxu0
    %v5249 = vadd.f32 %v4975, %v5248
    %5250 = vdwg.mxu0
    %v5251 = vmul.f32 %v5173, 0.2
    %v5252 = vmul.f32 %v5175, 0.2
    %v5253 = vmul.f32 %v5177, 0.2
    %v5254 = vmul.f32 %v5179, 0.2
    %v5255 = vmul.f32 %v5183, 0.2
    %v5256 = vmul.f32 %v5185, 0.2
    %v5257 = vmul.f32 %v5187, 0.2
    %v5258 = vmul.f32 %v5189, 0.2
    %v5259 = vmul.f32 %v5193, 0.2
    %v5260 = vmul.f32 %v5195, 0.2
    %v5261 = vmul.f32 %v5197, 0.2
    %v5262 = vmul.f32 %v5199, 0.2
    %v5263 = vmul.f32 %v5203, 0.2
    %v5264 = vmul.f32 %v5205, 0.2
    %v5265 = vmul.f32 %v5207, 0.2
    %v5266 = vmul.f32 %v5209, 0.2
    %v5267 = vmul.f32 %v5213, 0.2
    %v5268 = vmul.f32 %v5215, 0.2
    %v5269 = vmul.f32 %v5217, 0.2
    %v5270 = vmul.f32 %v5219, 0.2
    %v5271 = vmul.f32 %v5223, 0.2
    %v5272 = vmul.f32 %v5225, 0.2
    %v5273 = vmul.f32 %v5227, 0.2
    %v5274 = vmul.f32 %v5229, 0.2
    %v5275 = vmul.f32 %v5233, 0.2
    %v5276 = vmul.f32 %v5235, 0.2
    %v5277 = vmul.f32 %v5237, 0.2
    %v5278 = vmul.f32 %v5239, 0.2
    %v5279 = vmul.f32 %v5243, 0.2
    %v5280 = vmul.f32 %v5245, 0.2
    %v5281 = vmul.f32 %v5247, 0.2
    %v5282 = vmul.f32 %v5249, 0.2
    %v5283 = vmax.f32 %v5173, %v5251
    %v5284 = vmax.f32 %v5175, %v5252
    %v5285 = vmax.f32 %v5177, %v5253
    %v5286 = vmax.f32 %v5179, %v5254
    %v5287 = vmax.f32 %v5183, %v5255
    %v5288 = vmax.f32 %v5185, %v5256
    %v5289 = vmax.f32 %v5187, %v5257
    %v5290 = vmax.f32 %v5189, %v5258
    %v5291 = vmax.f32 %v5193, %v5259
    %v5292 = vmax.f32 %v5195, %v5260
    %v5293 = vmax.f32 %v5197, %v5261
    %v5294 = vmax.f32 %v5199, %v5262
    %v5295 = vmax.f32 %v5203, %v5263
    %v5296 = vmax.f32 %v5205, %v5264
    %v5297 = vmax.f32 %v5207, %v5265
    %v5298 = vmax.f32 %v5209, %v5266
    %v5299 = vmax.f32 %v5213, %v5267
    %v5300 = vmax.f32 %v5215, %v5268
    %v5301 = vmax.f32 %v5217, %v5269
    %v5302 = vmax.f32 %v5219, %v5270
    %v5303 = vmax.f32 %v5223, %v5271
    %v5304 = vmax.f32 %v5225, %v5272
    %v5305 = vmax.f32 %v5227, %v5273
    %v5306 = vmax.f32 %v5229, %v5274
    %v5307 = vmax.f32 %v5233, %v5275
    %v5308 = vmax.f32 %v5235, %v5276
    %v5309 = vmax.f32 %v5237, %v5277
    %v5310 = vmax.f32 %v5239, %v5278
    %v5311 = vmax.f32 %v5243, %v5279
    %v5312 = vmax.f32 %v5245, %v5280
    %v5313 = vmax.f32 %v5247, %v5281
    %v5314 = vmax.f32 %v5249, %v5282
    %v5315 = vpack.c.bf16 %v5285, %v5283
    %v5316 = vpack.c.bf16 %v5286, %v5284
    %v5317 = vpack.c.bf16 %v5289, %v5287
    %v5318 = vpack.c.bf16 %v5290, %v5288
    %v5319 = vpack.c.bf16 %v5293, %v5291
    %v5320 = vpack.c.bf16 %v5294, %v5292
    %v5321 = vpack.c.bf16 %v5297, %v5295
    %v5322 = vpack.c.bf16 %v5298, %v5296
    %v5323 = vpack.c.bf16 %v5301, %v5299
    %v5324 = vpack.c.bf16 %v5302, %v5300
    %v5325 = vpack.c.bf16 %v5305, %v5303
    %v5326 = vpack.c.bf16 %v5306, %v5304
    %v5327 = vpack.c.bf16 %v5309, %v5307
    %v5328 = vpack.c.bf16 %v5310, %v5308
    %v5329 = vpack.c.bf16 %v5313, %v5311
    %v5330 = vpack.c.bf16 %v5314, %v5312
    %s5331 = scalar_lea.vmem [#allocation7], 3328
    %v5332 = vld [vmem:[%s5331] sm:$0xff]
    %v5333 = vld [vmem:[%s5331 + $0x8] sm:$0xff]
    %v5334 = vld [vmem:[%s5331 + $0x10] sm:$0xff]
    %v5335 = vld [vmem:[%s5331 + $0x18] sm:$0xff]
    %v5336 = vld [vmem:[%s5331 + $0x20] sm:$0xff]
    %v5337 = vld [vmem:[%s5331 + $0x28] sm:$0xff]
    %v5338 = vld [vmem:[%s5331 + $0x30] sm:$0xff]
    %v5339 = vld [vmem:[%s5331 + $0x38] sm:$0xff]
    %v5340 = vld [vmem:[%s5331 + $0x40] sm:$0xff]
    %v5341 = vld [vmem:[%s5331 + $0x48] sm:$0xff]
    %v5342 = vld [vmem:[%s5331 + $0x50] sm:$0xff]
    %v5343 = vld [vmem:[%s5331 + $0x58] sm:$0xff]
    %v5344 = vld [vmem:[%s5331 + $0x60] sm:$0xff]
    %v5345 = vld [vmem:[%s5331 + $0x68] sm:$0xff]
    %v5346 = vld [vmem:[%s5331 + $0x70] sm:$0xff]
    %v5347 = vld [vmem:[%s5331 + $0x78] sm:$0xff]
    %v5348 = vld [vmem:[%s5331 + $0x80] sm:$0xff]
    %v5349 = vld [vmem:[%s5331 + $0x88] sm:$0xff]
    %v5350 = vld [vmem:[%s5331 + $0x90] sm:$0xff]
    %v5351 = vld [vmem:[%s5331 + $0x98] sm:$0xff]
    %v5352 = vld [vmem:[%s5331 + $0xa0] sm:$0xff]
    %v5353 = vld [vmem:[%s5331 + $0xa8] sm:$0xff]
    %v5354 = vld [vmem:[%s5331 + $0xb0] sm:$0xff]
    %v5355 = vld [vmem:[%s5331 + $0xb8] sm:$0xff]
    %v5356 = vld [vmem:[%s5331 + $0xc0] sm:$0xff]
    %v5357 = vld [vmem:[%s5331 + $0xc8] sm:$0xff]
    %v5358 = vld [vmem:[%s5331 + $0xd0] sm:$0xff]
    %v5359 = vld [vmem:[%s5331 + $0xd8] sm:$0xff]
    %v5360 = vld [vmem:[%s5331 + $0xe0] sm:$0xff]
    %v5361 = vld [vmem:[%s5331 + $0xe8] sm:$0xff]
    %v5362 = vld [vmem:[%s5331 + $0xf0] sm:$0xff]
    %v5363 = vld [vmem:[%s5331 + $0xf8] sm:$0xff]
    %s5364 = scalar_lea.vmem [#allocation8], 26
    %v5365 = vld [vmem:[%s5364] sm:$0x3]
    %v5367 = vlaneseq
    %v5368 = vshrl.u32 %v5367, 7
    %v5369 = vsub.s32 0, %v5368
    %v5370 = vrot.slane %v5365, %v5369
    %v5371 = vlaneseq
    %v5372 = vshrl.u32 %v5371, 7
    %v5373 = vsub.s32 1, %v5372
    %v5374 = vrot.slane %v5365, %v5373
    %v5409 = vunpack.c.l.b16 %v5332
    %v5410 = vunpack.c.h.b16 %v5332
    %v5411 = vunpack.c.l.b16 %v5333
    %v5412 = vunpack.c.h.b16 %v5333
    %v5413 = vunpack.c.l.b16 %v5334
    %v5414 = vunpack.c.h.b16 %v5334
    %v5415 = vunpack.c.l.b16 %v5335
    %v5416 = vunpack.c.h.b16 %v5335
    %v5417 = vunpack.c.l.b16 %v5336
    %v5418 = vunpack.c.h.b16 %v5336
    %v5419 = vunpack.c.l.b16 %v5337
    %v5420 = vunpack.c.h.b16 %v5337
    %v5421 = vunpack.c.l.b16 %v5338
    %v5422 = vunpack.c.h.b16 %v5338
    %v5423 = vunpack.c.l.b16 %v5339
    %v5424 = vunpack.c.h.b16 %v5339
    %v5425 = vunpack.c.l.b16 %v5340
    %v5426 = vunpack.c.h.b16 %v5340
    %v5427 = vunpack.c.l.b16 %v5341
    %v5428 = vunpack.c.h.b16 %v5341
    %v5429 = vunpack.c.l.b16 %v5342
    %v5430 = vunpack.c.h.b16 %v5342
    %v5431 = vunpack.c.l.b16 %v5343
    %v5432 = vunpack.c.h.b16 %v5343
    %v5433 = vunpack.c.l.b16 %v5344
    %v5434 = vunpack.c.h.b16 %v5344
    %v5435 = vunpack.c.l.b16 %v5345
    %v5436 = vunpack.c.h.b16 %v5345
    %v5437 = vunpack.c.l.b16 %v5346
    %v5438 = vunpack.c.h.b16 %v5346
    %v5439 = vunpack.c.l.b16 %v5347
    %v5440 = vunpack.c.h.b16 %v5347
    %v5441 = vunpack.c.l.b16 %v5348
    %v5442 = vunpack.c.h.b16 %v5348
    %v5443 = vunpack.c.l.b16 %v5349
    %v5444 = vunpack.c.h.b16 %v5349
    %v5445 = vunpack.c.l.b16 %v5350
    %v5446 = vunpack.c.h.b16 %v5350
    %v5447 = vunpack.c.l.b16 %v5351
    %v5448 = vunpack.c.h.b16 %v5351
    %v5449 = vunpack.c.l.b16 %v5352
    %v5450 = vunpack.c.h.b16 %v5352
    %v5451 = vunpack.c.l.b16 %v5353
    %v5452 = vunpack.c.h.b16 %v5353
    %v5453 = vunpack.c.l.b16 %v5354
    %v5454 = vunpack.c.h.b16 %v5354
    %v5455 = vunpack.c.l.b16 %v5355
    %v5456 = vunpack.c.h.b16 %v5355
    %v5457 = vunpack.c.l.b16 %v5356
    %v5458 = vunpack.c.h.b16 %v5356
    %v5459 = vunpack.c.l.b16 %v5357
    %v5460 = vunpack.c.h.b16 %v5357
    %v5461 = vunpack.c.l.b16 %v5358
    %v5462 = vunpack.c.h.b16 %v5358
    %v5463 = vunpack.c.l.b16 %v5359
    %v5464 = vunpack.c.h.b16 %v5359
    %v5465 = vunpack.c.l.b16 %v5360
    %v5466 = vunpack.c.h.b16 %v5360
    %v5467 = vunpack.c.l.b16 %v5361
    %v5468 = vunpack.c.h.b16 %v5361
    %v5469 = vunpack.c.l.b16 %v5362
    %v5470 = vunpack.c.h.b16 %v5362
    %v5471 = vunpack.c.l.b16 %v5363
    %v5472 = vunpack.c.h.b16 %v5363
    %v5473 = vpack.c.b16 %v5411, %v5409
    %v5474 = vpack.c.b16 %v5412, %v5410
    %v5475 = vpack.c.b16 %v5415, %v5413
    %v5476 = vpack.c.b16 %v5416, %v5414
    %v5477 = vpack.c.b16 %v5419, %v5417
    %v5478 = vpack.c.b16 %v5420, %v5418
    %v5479 = vpack.c.b16 %v5423, %v5421
    %v5480 = vpack.c.b16 %v5424, %v5422
    %v5481 = vpack.c.b16 %v5427, %v5425
    %v5482 = vpack.c.b16 %v5428, %v5426
    %v5483 = vpack.c.b16 %v5431, %v5429
    %v5484 = vpack.c.b16 %v5432, %v5430
    %v5485 = vpack.c.b16 %v5435, %v5433
    %v5486 = vpack.c.b16 %v5436, %v5434
    %v5487 = vpack.c.b16 %v5439, %v5437
    %v5488 = vpack.c.b16 %v5440, %v5438
    %v5489 = vpack.c.b16 %v5443, %v5441
    %v5490 = vpack.c.b16 %v5444, %v5442
    %v5491 = vpack.c.b16 %v5447, %v5445
    %v5492 = vpack.c.b16 %v5448, %v5446
    %v5493 = vpack.c.b16 %v5451, %v5449
    %v5494 = vpack.c.b16 %v5452, %v5450
    %v5495 = vpack.c.b16 %v5455, %v5453
    %v5496 = vpack.c.b16 %v5456, %v5454
    %v5497 = vpack.c.b16 %v5459, %v5457
    %v5498 = vpack.c.b16 %v5460, %v5458
    %v5499 = vpack.c.b16 %v5463, %v5461
    %v5500 = vpack.c.b16 %v5464, %v5462
    %v5501 = vpack.c.b16 %v5467, %v5465
    %v5502 = vpack.c.b16 %v5468, %v5466
    %v5503 = vpack.c.b16 %v5471, %v5469
    %v5504 = vpack.c.b16 %v5472, %v5470
    %5537 = vmatprep.subr.bf16.mxu0 %v5488
    %5538 = vmatpush1.bf16.msra.mxu0 %v5487
    %5539 = vmatprep.subr.bf16.mxu0 %v5486
    %5540 = vmatpush1.bf16.msra.mxu0 %v5485
    %5541 = vmatprep.subr.bf16.mxu0 %v5484
    %5542 = vmatpush1.bf16.msra.mxu0 %v5483
    %5543 = vmatprep.subr.bf16.mxu0 %v5482
    %5544 = vmatpush1.bf16.msra.mxu0 %v5481
    %5545 = vmatprep.subr.bf16.mxu0 %v5480
    %5546 = vmatpush1.bf16.msra.mxu0 %v5479
    %5547 = vmatprep.subr.bf16.mxu0 %v5478
    %5548 = vmatpush1.bf16.msra.mxu0 %v5477
    %5549 = vmatprep.subr.bf16.mxu0 %v5476
    %5550 = vmatpush1.bf16.msra.mxu0 %v5475
    %5551 = vmatprep.subr.bf16.mxu0 %v5474
    %5552 = vmatpush1.bf16.msra.mxu0 %v5473
    %5553 = vmatprep.subr.bf16.mxu0 %v5504
    %5554 = vmatpush2.bf16.msra.mxu0 %v5503
    %5555 = vmatprep.subr.bf16.mxu0 %v5502
    %5556 = vmatpush2.bf16.msra.mxu0 %v5501
    %5557 = vmatprep.subr.bf16.mxu0 %v5500
    %5558 = vmatpush2.bf16.msra.mxu0 %v5499
    %5559 = vmatprep.subr.bf16.mxu0 %v5498
    %5560 = vmatpush2.bf16.msra.mxu0 %v5497
    %5561 = vmatprep.subr.bf16.mxu0 %v5496
    %5562 = vmatpush2.bf16.msra.mxu0 %v5495
    %5563 = vmatprep.subr.bf16.mxu0 %v5494
    %5564 = vmatpush2.bf16.msra.mxu0 %v5493
    %5565 = vmatprep.subr.bf16.mxu0 %v5492
    %5566 = vmatpush2.bf16.msra.mxu0 %v5491
    %5567 = vmatprep.subr.bf16.mxu0 %v5490
    %5568 = vmatpush2.bf16.msra.mxu0 %v5489
    %5569 = vmatprep.mubr.bf16.mxu0 %v5316
    %5570 = vmatmul.mubr.bf16.gmra.mxu0 %v5315
    %v5571 = vpop.f32.mrf.mxu0
    %v5572 = vadd.f32 %v5370, %v5571
    %v5573 = vpop.f32.mrf.mxu0
    %v5574 = vadd.f32 %v5374, %v5573
    %v5575 = vpop.f32.mrf.mxu0
    %v5576 = vadd.f32 %v5370, %v5575
    %v5577 = vpop.f32.mrf.mxu0
    %v5578 = vadd.f32 %v5374, %v5577
    %5579 = vmatprep.mubr.bf16.mxu0 %v5318
    %5580 = vmatmul.mubr.bf16.gmra.mxu0 %v5317
    %v5581 = vpop.f32.mrf.mxu0
    %v5582 = vadd.f32 %v5370, %v5581
    %v5583 = vpop.f32.mrf.mxu0
    %v5584 = vadd.f32 %v5374, %v5583
    %v5585 = vpop.f32.mrf.mxu0
    %v5586 = vadd.f32 %v5370, %v5585
    %v5587 = vpop.f32.mrf.mxu0
    %v5588 = vadd.f32 %v5374, %v5587
    %5589 = vmatprep.mubr.bf16.mxu0 %v5320
    %5590 = vmatmul.mubr.bf16.gmra.mxu0 %v5319
    %v5591 = vpop.f32.mrf.mxu0
    %v5592 = vadd.f32 %v5370, %v5591
    %v5593 = vpop.f32.mrf.mxu0
    %v5594 = vadd.f32 %v5374, %v5593
    %v5595 = vpop.f32.mrf.mxu0
    %v5596 = vadd.f32 %v5370, %v5595
    %v5597 = vpop.f32.mrf.mxu0
    %v5598 = vadd.f32 %v5374, %v5597
    %5599 = vmatprep.mubr.bf16.mxu0 %v5322
    %5600 = vmatmul.mubr.bf16.gmra.mxu0 %v5321
    %v5601 = vpop.f32.mrf.mxu0
    %v5602 = vadd.f32 %v5370, %v5601
    %v5603 = vpop.f32.mrf.mxu0
    %v5604 = vadd.f32 %v5374, %v5603
    %v5605 = vpop.f32.mrf.mxu0
    %v5606 = vadd.f32 %v5370, %v5605
    %v5607 = vpop.f32.mrf.mxu0
    %v5608 = vadd.f32 %v5374, %v5607
    %5609 = vmatprep.mubr.bf16.mxu0 %v5324
    %5610 = vmatmul.mubr.bf16.gmra.mxu0 %v5323
    %v5611 = vpop.f32.mrf.mxu0
    %v5612 = vadd.f32 %v5370, %v5611
    %v5613 = vpop.f32.mrf.mxu0
    %v5614 = vadd.f32 %v5374, %v5613
    %v5615 = vpop.f32.mrf.mxu0
    %v5616 = vadd.f32 %v5370, %v5615
    %v5617 = vpop.f32.mrf.mxu0
    %v5618 = vadd.f32 %v5374, %v5617
    %5619 = vmatprep.mubr.bf16.mxu0 %v5326
    %5620 = vmatmul.mubr.bf16.gmra.mxu0 %v5325
    %v5621 = vpop.f32.mrf.mxu0
    %v5622 = vadd.f32 %v5370, %v5621
    %v5623 = vpop.f32.mrf.mxu0
    %v5624 = vadd.f32 %v5374, %v5623
    %v5625 = vpop.f32.mrf.mxu0
    %v5626 = vadd.f32 %v5370, %v5625
    %v5627 = vpop.f32.mrf.mxu0
    %v5628 = vadd.f32 %v5374, %v5627
    %5629 = vmatprep.mubr.bf16.mxu0 %v5328
    %5630 = vmatmul.mubr.bf16.gmra.mxu0 %v5327
    %v5631 = vpop.f32.mrf.mxu0
    %v5632 = vadd.f32 %v5370, %v5631
    %v5633 = vpop.f32.mrf.mxu0
    %v5634 = vadd.f32 %v5374, %v5633
    %v5635 = vpop.f32.mrf.mxu0
    %v5636 = vadd.f32 %v5370, %v5635
    %v5637 = vpop.f32.mrf.mxu0
    %v5638 = vadd.f32 %v5374, %v5637
    %5639 = vmatprep.mubr.bf16.mxu0 %v5330
    %5640 = vmatmul.mubr.bf16.gmra.mxu0 %v5329
    %v5641 = vpop.f32.mrf.mxu0
    %v5642 = vadd.f32 %v5370, %v5641
    %v5643 = vpop.f32.mrf.mxu0
    %v5644 = vadd.f32 %v5374, %v5643
    %v5645 = vpop.f32.mrf.mxu0
    %v5646 = vadd.f32 %v5370, %v5645
    %v5647 = vpop.f32.mrf.mxu0
    %v5648 = vadd.f32 %v5374, %v5647
    %5649 = vdwg.mxu0
    %v5650 = vmul.f32 %v5572, 0.2
    %v5651 = vmul.f32 %v5574, 0.2
    %v5652 = vmul.f32 %v5576, 0.2
    %v5653 = vmul.f32 %v5578, 0.2
    %v5654 = vmul.f32 %v5582, 0.2
    %v5655 = vmul.f32 %v5584, 0.2
    %v5656 = vmul.f32 %v5586, 0.2
    %v5657 = vmul.f32 %v5588, 0.2
    %v5658 = vmul.f32 %v5592, 0.2
    %v5659 = vmul.f32 %v5594, 0.2
    %v5660 = vmul.f32 %v5596, 0.2
    %v5661 = vmul.f32 %v5598, 0.2
    %v5662 = vmul.f32 %v5602, 0.2
    %v5663 = vmul.f32 %v5604, 0.2
    %v5664 = vmul.f32 %v5606, 0.2
    %v5665 = vmul.f32 %v5608, 0.2
    %v5666 = vmul.f32 %v5612, 0.2
    %v5667 = vmul.f32 %v5614, 0.2
    %v5668 = vmul.f32 %v5616, 0.2
    %v5669 = vmul.f32 %v5618, 0.2
    %v5670 = vmul.f32 %v5622, 0.2
    %v5671 = vmul.f32 %v5624, 0.2
    %v5672 = vmul.f32 %v5626, 0.2
    %v5673 = vmul.f32 %v5628, 0.2
    %v5674 = vmul.f32 %v5632, 0.2
    %v5675 = vmul.f32 %v5634, 0.2
    %v5676 = vmul.f32 %v5636, 0.2
    %v5677 = vmul.f32 %v5638, 0.2
    %v5678 = vmul.f32 %v5642, 0.2
    %v5679 = vmul.f32 %v5644, 0.2
    %v5680 = vmul.f32 %v5646, 0.2
    %v5681 = vmul.f32 %v5648, 0.2
    %v5682 = vmax.f32 %v5572, %v5650
    %v5683 = vmax.f32 %v5574, %v5651
    %v5684 = vmax.f32 %v5576, %v5652
    %v5685 = vmax.f32 %v5578, %v5653
    %v5686 = vmax.f32 %v5582, %v5654
    %v5687 = vmax.f32 %v5584, %v5655
    %v5688 = vmax.f32 %v5586, %v5656
    %v5689 = vmax.f32 %v5588, %v5657
    %v5690 = vmax.f32 %v5592, %v5658
    %v5691 = vmax.f32 %v5594, %v5659
    %v5692 = vmax.f32 %v5596, %v5660
    %v5693 = vmax.f32 %v5598, %v5661
    %v5694 = vmax.f32 %v5602, %v5662
    %v5695 = vmax.f32 %v5604, %v5663
    %v5696 = vmax.f32 %v5606, %v5664
    %v5697 = vmax.f32 %v5608, %v5665
    %v5698 = vmax.f32 %v5612, %v5666
    %v5699 = vmax.f32 %v5614, %v5667
    %v5700 = vmax.f32 %v5616, %v5668
    %v5701 = vmax.f32 %v5618, %v5669
    %v5702 = vmax.f32 %v5622, %v5670
    %v5703 = vmax.f32 %v5624, %v5671
    %v5704 = vmax.f32 %v5626, %v5672
    %v5705 = vmax.f32 %v5628, %v5673
    %v5706 = vmax.f32 %v5632, %v5674
    %v5707 = vmax.f32 %v5634, %v5675
    %v5708 = vmax.f32 %v5636, %v5676
    %v5709 = vmax.f32 %v5638, %v5677
    %v5710 = vmax.f32 %v5642, %v5678
    %v5711 = vmax.f32 %v5644, %v5679
    %v5712 = vmax.f32 %v5646, %v5680
    %v5713 = vmax.f32 %v5648, %v5681
    %v5714 = vpack.c.bf16 %v5684, %v5682
    %v5715 = vpack.c.bf16 %v5685, %v5683
    %v5716 = vpack.c.bf16 %v5688, %v5686
    %v5717 = vpack.c.bf16 %v5689, %v5687
    %v5718 = vpack.c.bf16 %v5692, %v5690
    %v5719 = vpack.c.bf16 %v5693, %v5691
    %v5720 = vpack.c.bf16 %v5696, %v5694
    %v5721 = vpack.c.bf16 %v5697, %v5695
    %v5722 = vpack.c.bf16 %v5700, %v5698
    %v5723 = vpack.c.bf16 %v5701, %v5699
    %v5724 = vpack.c.bf16 %v5704, %v5702
    %v5725 = vpack.c.bf16 %v5705, %v5703
    %v5726 = vpack.c.bf16 %v5708, %v5706
    %v5727 = vpack.c.bf16 %v5709, %v5707
    %v5728 = vpack.c.bf16 %v5712, %v5710
    %v5729 = vpack.c.bf16 %v5713, %v5711
    %s5730 = scalar_lea.vmem [#allocation7], 3584
    %v5731 = vld [vmem:[%s5730] sm:$0xff]
    %v5732 = vld [vmem:[%s5730 + $0x8] sm:$0xff]
    %v5733 = vld [vmem:[%s5730 + $0x10] sm:$0xff]
    %v5734 = vld [vmem:[%s5730 + $0x18] sm:$0xff]
    %v5735 = vld [vmem:[%s5730 + $0x20] sm:$0xff]
    %v5736 = vld [vmem:[%s5730 + $0x28] sm:$0xff]
    %v5737 = vld [vmem:[%s5730 + $0x30] sm:$0xff]
    %v5738 = vld [vmem:[%s5730 + $0x38] sm:$0xff]
    %v5739 = vld [vmem:[%s5730 + $0x40] sm:$0xff]
    %v5740 = vld [vmem:[%s5730 + $0x48] sm:$0xff]
    %v5741 = vld [vmem:[%s5730 + $0x50] sm:$0xff]
    %v5742 = vld [vmem:[%s5730 + $0x58] sm:$0xff]
    %v5743 = vld [vmem:[%s5730 + $0x60] sm:$0xff]
    %v5744 = vld [vmem:[%s5730 + $0x68] sm:$0xff]
    %v5745 = vld [vmem:[%s5730 + $0x70] sm:$0xff]
    %v5746 = vld [vmem:[%s5730 + $0x78] sm:$0xff]
    %v5747 = vld [vmem:[%s5730 + $0x80] sm:$0xff]
    %v5748 = vld [vmem:[%s5730 + $0x88] sm:$0xff]
    %v5749 = vld [vmem:[%s5730 + $0x90] sm:$0xff]
    %v5750 = vld [vmem:[%s5730 + $0x98] sm:$0xff]
    %v5751 = vld [vmem:[%s5730 + $0xa0] sm:$0xff]
    %v5752 = vld [vmem:[%s5730 + $0xa8] sm:$0xff]
    %v5753 = vld [vmem:[%s5730 + $0xb0] sm:$0xff]
    %v5754 = vld [vmem:[%s5730 + $0xb8] sm:$0xff]
    %v5755 = vld [vmem:[%s5730 + $0xc0] sm:$0xff]
    %v5756 = vld [vmem:[%s5730 + $0xc8] sm:$0xff]
    %v5757 = vld [vmem:[%s5730 + $0xd0] sm:$0xff]
    %v5758 = vld [vmem:[%s5730 + $0xd8] sm:$0xff]
    %v5759 = vld [vmem:[%s5730 + $0xe0] sm:$0xff]
    %v5760 = vld [vmem:[%s5730 + $0xe8] sm:$0xff]
    %v5761 = vld [vmem:[%s5730 + $0xf0] sm:$0xff]
    %v5762 = vld [vmem:[%s5730 + $0xf8] sm:$0xff]
    %s5763 = scalar_lea.vmem [#allocation8], 28
    %v5764 = vld [vmem:[%s5763] sm:$0x3]
    %v5766 = vlaneseq
    %v5767 = vshrl.u32 %v5766, 7
    %v5768 = vsub.s32 0, %v5767
    %v5769 = vrot.slane %v5764, %v5768
    %v5770 = vlaneseq
    %v5771 = vshrl.u32 %v5770, 7
    %v5772 = vsub.s32 1, %v5771
    %v5773 = vrot.slane %v5764, %v5772
    %v5808 = vunpack.c.l.b16 %v5731
    %v5809 = vunpack.c.h.b16 %v5731
    %v5810 = vunpack.c.l.b16 %v5732
    %v5811 = vunpack.c.h.b16 %v5732
    %v5812 = vunpack.c.l.b16 %v5733
    %v5813 = vunpack.c.h.b16 %v5733
    %v5814 = vunpack.c.l.b16 %v5734
    %v5815 = vunpack.c.h.b16 %v5734
    %v5816 = vunpack.c.l.b16 %v5735
    %v5817 = vunpack.c.h.b16 %v5735
    %v5818 = vunpack.c.l.b16 %v5736
    %v5819 = vunpack.c.h.b16 %v5736
    %v5820 = vunpack.c.l.b16 %v5737
    %v5821 = vunpack.c.h.b16 %v5737
    %v5822 = vunpack.c.l.b16 %v5738
    %v5823 = vunpack.c.h.b16 %v5738
    %v5824 = vunpack.c.l.b16 %v5739
    %v5825 = vunpack.c.h.b16 %v5739
    %v5826 = vunpack.c.l.b16 %v5740
    %v5827 = vunpack.c.h.b16 %v5740
    %v5828 = vunpack.c.l.b16 %v5741
    %v5829 = vunpack.c.h.b16 %v5741
    %v5830 = vunpack.c.l.b16 %v5742
    %v5831 = vunpack.c.h.b16 %v5742
    %v5832 = vunpack.c.l.b16 %v5743
    %v5833 = vunpack.c.h.b16 %v5743
    %v5834 = vunpack.c.l.b16 %v5744
    %v5835 = vunpack.c.h.b16 %v5744
    %v5836 = vunpack.c.l.b16 %v5745
    %v5837 = vunpack.c.h.b16 %v5745
    %v5838 = vunpack.c.l.b16 %v5746
    %v5839 = vunpack.c.h.b16 %v5746
    %v5840 = vunpack.c.l.b16 %v5747
    %v5841 = vunpack.c.h.b16 %v5747
    %v5842 = vunpack.c.l.b16 %v5748
    %v5843 = vunpack.c.h.b16 %v5748
    %v5844 = vunpack.c.l.b16 %v5749
    %v5845 = vunpack.c.h.b16 %v5749
    %v5846 = vunpack.c.l.b16 %v5750
    %v5847 = vunpack.c.h.b16 %v5750
    %v5848 = vunpack.c.l.b16 %v5751
    %v5849 = vunpack.c.h.b16 %v5751
    %v5850 = vunpack.c.l.b16 %v5752
    %v5851 = vunpack.c.h.b16 %v5752
    %v5852 = vunpack.c.l.b16 %v5753
    %v5853 = vunpack.c.h.b16 %v5753
    %v5854 = vunpack.c.l.b16 %v5754
    %v5855 = vunpack.c.h.b16 %v5754
    %v5856 = vunpack.c.l.b16 %v5755
    %v5857 = vunpack.c.h.b16 %v5755
    %v5858 = vunpack.c.l.b16 %v5756
    %v5859 = vunpack.c.h.b16 %v5756
    %v5860 = vunpack.c.l.b16 %v5757
    %v5861 = vunpack.c.h.b16 %v5757
    %v5862 = vunpack.c.l.b16 %v5758
    %v5863 = vunpack.c.h.b16 %v5758
    %v5864 = vunpack.c.l.b16 %v5759
    %v5865 = vunpack.c.h.b16 %v5759
    %v5866 = vunpack.c.l.b16 %v5760
    %v5867 = vunpack.c.h.b16 %v5760
    %v5868 = vunpack.c.l.b16 %v5761
    %v5869 = vunpack.c.h.b16 %v5761
    %v5870 = vunpack.c.l.b16 %v5762
    %v5871 = vunpack.c.h.b16 %v5762
    %v5872 = vpack.c.b16 %v5810, %v5808
    %v5873 = vpack.c.b16 %v5811, %v5809
    %v5874 = vpack.c.b16 %v5814, %v5812
    %v5875 = vpack.c.b16 %v5815, %v5813
    %v5876 = vpack.c.b16 %v5818, %v5816
    %v5877 = vpack.c.b16 %v5819, %v5817
    %v5878 = vpack.c.b16 %v5822, %v5820
    %v5879 = vpack.c.b16 %v5823, %v5821
    %v5880 = vpack.c.b16 %v5826, %v5824
    %v5881 = vpack.c.b16 %v5827, %v5825
    %v5882 = vpack.c.b16 %v5830, %v5828
    %v5883 = vpack.c.b16 %v5831, %v5829
    %v5884 = vpack.c.b16 %v5834, %v5832
    %v5885 = vpack.c.b16 %v5835, %v5833
    %v5886 = vpack.c.b16 %v5838, %v5836
    %v5887 = vpack.c.b16 %v5839, %v5837
    %v5888 = vpack.c.b16 %v5842, %v5840
    %v5889 = vpack.c.b16 %v5843, %v5841
    %v5890 = vpack.c.b16 %v5846, %v5844
    %v5891 = vpack.c.b16 %v5847, %v5845
    %v5892 = vpack.c.b16 %v5850, %v5848
    %v5893 = vpack.c.b16 %v5851, %v5849
    %v5894 = vpack.c.b16 %v5854, %v5852
    %v5895 = vpack.c.b16 %v5855, %v5853
    %v5896 = vpack.c.b16 %v5858, %v5856
    %v5897 = vpack.c.b16 %v5859, %v5857
    %v5898 = vpack.c.b16 %v5862, %v5860
    %v5899 = vpack.c.b16 %v5863, %v5861
    %v5900 = vpack.c.b16 %v5866, %v5864
    %v5901 = vpack.c.b16 %v5867, %v5865
    %v5902 = vpack.c.b16 %v5870, %v5868
    %v5903 = vpack.c.b16 %v5871, %v5869
    %5936 = vmatprep.subr.bf16.mxu0 %v5887
    %5937 = vmatpush1.bf16.msra.mxu0 %v5886
    %5938 = vmatprep.subr.bf16.mxu0 %v5885
    %5939 = vmatpush1.bf16.msra.mxu0 %v5884
    %5940 = vmatprep.subr.bf16.mxu0 %v5883
    %5941 = vmatpush1.bf16.msra.mxu0 %v5882
    %5942 = vmatprep.subr.bf16.mxu0 %v5881
    %5943 = vmatpush1.bf16.msra.mxu0 %v5880
    %5944 = vmatprep.subr.bf16.mxu0 %v5879
    %5945 = vmatpush1.bf16.msra.mxu0 %v5878
    %5946 = vmatprep.subr.bf16.mxu0 %v5877
    %5947 = vmatpush1.bf16.msra.mxu0 %v5876
    %5948 = vmatprep.subr.bf16.mxu0 %v5875
    %5949 = vmatpush1.bf16.msra.mxu0 %v5874
    %5950 = vmatprep.subr.bf16.mxu0 %v5873
    %5951 = vmatpush1.bf16.msra.mxu0 %v5872
    %5952 = vmatprep.subr.bf16.mxu0 %v5903
    %5953 = vmatpush2.bf16.msra.mxu0 %v5902
    %5954 = vmatprep.subr.bf16.mxu0 %v5901
    %5955 = vmatpush2.bf16.msra.mxu0 %v5900
    %5956 = vmatprep.subr.bf16.mxu0 %v5899
    %5957 = vmatpush2.bf16.msra.mxu0 %v5898
    %5958 = vmatprep.subr.bf16.mxu0 %v5897
    %5959 = vmatpush2.bf16.msra.mxu0 %v5896
    %5960 = vmatprep.subr.bf16.mxu0 %v5895
    %5961 = vmatpush2.bf16.msra.mxu0 %v5894
    %5962 = vmatprep.subr.bf16.mxu0 %v5893
    %5963 = vmatpush2.bf16.msra.mxu0 %v5892
    %5964 = vmatprep.subr.bf16.mxu0 %v5891
    %5965 = vmatpush2.bf16.msra.mxu0 %v5890
    %5966 = vmatprep.subr.bf16.mxu0 %v5889
    %5967 = vmatpush2.bf16.msra.mxu0 %v5888
    %5968 = vmatprep.mubr.bf16.mxu0 %v5715
    %5969 = vmatmul.mubr.bf16.gmra.mxu0 %v5714
    %v5970 = vpop.f32.mrf.mxu0
    %v5971 = vadd.f32 %v5769, %v5970
    %v5972 = vpop.f32.mrf.mxu0
    %v5973 = vadd.f32 %v5773, %v5972
    %v5974 = vpop.f32.mrf.mxu0
    %v5975 = vadd.f32 %v5769, %v5974
    %v5976 = vpop.f32.mrf.mxu0
    %v5977 = vadd.f32 %v5773, %v5976
    %5978 = vmatprep.mubr.bf16.mxu0 %v5717
    %5979 = vmatmul.mubr.bf16.gmra.mxu0 %v5716
    %v5980 = vpop.f32.mrf.mxu0
    %v5981 = vadd.f32 %v5769, %v5980
    %v5982 = vpop.f32.mrf.mxu0
    %v5983 = vadd.f32 %v5773, %v5982
    %v5984 = vpop.f32.mrf.mxu0
    %v5985 = vadd.f32 %v5769, %v5984
    %v5986 = vpop.f32.mrf.mxu0
    %v5987 = vadd.f32 %v5773, %v5986
    %5988 = vmatprep.mubr.bf16.mxu0 %v5719
    %5989 = vmatmul.mubr.bf16.gmra.mxu0 %v5718
    %v5990 = vpop.f32.mrf.mxu0
    %v5991 = vadd.f32 %v5769, %v5990
    %v5992 = vpop.f32.mrf.mxu0
    %v5993 = vadd.f32 %v5773, %v5992
    %v5994 = vpop.f32.mrf.mxu0
    %v5995 = vadd.f32 %v5769, %v5994
    %v5996 = vpop.f32.mrf.mxu0
    %v5997 = vadd.f32 %v5773, %v5996
    %5998 = vmatprep.mubr.bf16.mxu0 %v5721
    %5999 = vmatmul.mubr.bf16.gmra.mxu0 %v5720
    %v6000 = vpop.f32.mrf.mxu0
    %v6001 = vadd.f32 %v5769, %v6000
    %v6002 = vpop.f32.mrf.mxu0
    %v6003 = vadd.f32 %v5773, %v6002
    %v6004 = vpop.f32.mrf.mxu0
    %v6005 = vadd.f32 %v5769, %v6004
    %v6006 = vpop.f32.mrf.mxu0
    %v6007 = vadd.f32 %v5773, %v6006
    %6008 = vmatprep.mubr.bf16.mxu0 %v5723
    %6009 = vmatmul.mubr.bf16.gmra.mxu0 %v5722
    %v6010 = vpop.f32.mrf.mxu0
    %v6011 = vadd.f32 %v5769, %v6010
    %v6012 = vpop.f32.mrf.mxu0
    %v6013 = vadd.f32 %v5773, %v6012
    %v6014 = vpop.f32.mrf.mxu0
    %v6015 = vadd.f32 %v5769, %v6014
    %v6016 = vpop.f32.mrf.mxu0
    %v6017 = vadd.f32 %v5773, %v6016
    %6018 = vmatprep.mubr.bf16.mxu0 %v5725
    %6019 = vmatmul.mubr.bf16.gmra.mxu0 %v5724
    %v6020 = vpop.f32.mrf.mxu0
    %v6021 = vadd.f32 %v5769, %v6020
    %v6022 = vpop.f32.mrf.mxu0
    %v6023 = vadd.f32 %v5773, %v6022
    %v6024 = vpop.f32.mrf.mxu0
    %v6025 = vadd.f32 %v5769, %v6024
    %v6026 = vpop.f32.mrf.mxu0
    %v6027 = vadd.f32 %v5773, %v6026
    %6028 = vmatprep.mubr.bf16.mxu0 %v5727
    %6029 = vmatmul.mubr.bf16.gmra.mxu0 %v5726
    %v6030 = vpop.f32.mrf.mxu0
    %v6031 = vadd.f32 %v5769, %v6030
    %v6032 = vpop.f32.mrf.mxu0
    %v6033 = vadd.f32 %v5773, %v6032
    %v6034 = vpop.f32.mrf.mxu0
    %v6035 = vadd.f32 %v5769, %v6034
    %v6036 = vpop.f32.mrf.mxu0
    %v6037 = vadd.f32 %v5773, %v6036
    %6038 = vmatprep.mubr.bf16.mxu0 %v5729
    %6039 = vmatmul.mubr.bf16.gmra.mxu0 %v5728
    %v6040 = vpop.f32.mrf.mxu0
    %v6041 = vadd.f32 %v5769, %v6040
    %v6042 = vpop.f32.mrf.mxu0
    %v6043 = vadd.f32 %v5773, %v6042
    %v6044 = vpop.f32.mrf.mxu0
    %v6045 = vadd.f32 %v5769, %v6044
    %v6046 = vpop.f32.mrf.mxu0
    %v6047 = vadd.f32 %v5773, %v6046
    %6048 = vdwg.mxu0
    %v6049 = vmul.f32 %v5971, 0.2
    %v6050 = vmul.f32 %v5973, 0.2
    %v6051 = vmul.f32 %v5975, 0.2
    %v6052 = vmul.f32 %v5977, 0.2
    %v6053 = vmul.f32 %v5981, 0.2
    %v6054 = vmul.f32 %v5983, 0.2
    %v6055 = vmul.f32 %v5985, 0.2
    %v6056 = vmul.f32 %v5987, 0.2
    %v6057 = vmul.f32 %v5991, 0.2
    %v6058 = vmul.f32 %v5993, 0.2
    %v6059 = vmul.f32 %v5995, 0.2
    %v6060 = vmul.f32 %v5997, 0.2
    %v6061 = vmul.f32 %v6001, 0.2
    %v6062 = vmul.f32 %v6003, 0.2
    %v6063 = vmul.f32 %v6005, 0.2
    %v6064 = vmul.f32 %v6007, 0.2
    %v6065 = vmul.f32 %v6011, 0.2
    %v6066 = vmul.f32 %v6013, 0.2
    %v6067 = vmul.f32 %v6015, 0.2
    %v6068 = vmul.f32 %v6017, 0.2
    %v6069 = vmul.f32 %v6021, 0.2
    %v6070 = vmul.f32 %v6023, 0.2
    %v6071 = vmul.f32 %v6025, 0.2
    %v6072 = vmul.f32 %v6027, 0.2
    %v6073 = vmul.f32 %v6031, 0.2
    %v6074 = vmul.f32 %v6033, 0.2
    %v6075 = vmul.f32 %v6035, 0.2
    %v6076 = vmul.f32 %v6037, 0.2
    %v6077 = vmul.f32 %v6041, 0.2
    %v6078 = vmul.f32 %v6043, 0.2
    %v6079 = vmul.f32 %v6045, 0.2
    %v6080 = vmul.f32 %v6047, 0.2
    %v6081 = vmax.f32 %v5971, %v6049
    %v6082 = vmax.f32 %v5973, %v6050
    %v6083 = vmax.f32 %v5975, %v6051
    %v6084 = vmax.f32 %v5977, %v6052
    %v6085 = vmax.f32 %v5981, %v6053
    %v6086 = vmax.f32 %v5983, %v6054
    %v6087 = vmax.f32 %v5985, %v6055
    %v6088 = vmax.f32 %v5987, %v6056
    %v6089 = vmax.f32 %v5991, %v6057
    %v6090 = vmax.f32 %v5993, %v6058
    %v6091 = vmax.f32 %v5995, %v6059
    %v6092 = vmax.f32 %v5997, %v6060
    %v6093 = vmax.f32 %v6001, %v6061
    %v6094 = vmax.f32 %v6003, %v6062
    %v6095 = vmax.f32 %v6005, %v6063
    %v6096 = vmax.f32 %v6007, %v6064
    %v6097 = vmax.f32 %v6011, %v6065
    %v6098 = vmax.f32 %v6013, %v6066
    %v6099 = vmax.f32 %v6015, %v6067
    %v6100 = vmax.f32 %v6017, %v6068
    %v6101 = vmax.f32 %v6021, %v6069
    %v6102 = vmax.f32 %v6023, %v6070
    %v6103 = vmax.f32 %v6025, %v6071
    %v6104 = vmax.f32 %v6027, %v6072
    %v6105 = vmax.f32 %v6031, %v6073
    %v6106 = vmax.f32 %v6033, %v6074
    %v6107 = vmax.f32 %v6035, %v6075
    %v6108 = vmax.f32 %v6037, %v6076
    %v6109 = vmax.f32 %v6041, %v6077
    %v6110 = vmax.f32 %v6043, %v6078
    %v6111 = vmax.f32 %v6045, %v6079
    %v6112 = vmax.f32 %v6047, %v6080
    %v6113 = vpack.c.bf16 %v6083, %v6081
    %v6114 = vpack.c.bf16 %v6084, %v6082
    %v6115 = vpack.c.bf16 %v6087, %v6085
    %v6116 = vpack.c.bf16 %v6088, %v6086
    %v6117 = vpack.c.bf16 %v6091, %v6089
    %v6118 = vpack.c.bf16 %v6092, %v6090
    %v6119 = vpack.c.bf16 %v6095, %v6093
    %v6120 = vpack.c.bf16 %v6096, %v6094
    %v6121 = vpack.c.bf16 %v6099, %v6097
    %v6122 = vpack.c.bf16 %v6100, %v6098
    %v6123 = vpack.c.bf16 %v6103, %v6101
    %v6124 = vpack.c.bf16 %v6104, %v6102
    %v6125 = vpack.c.bf16 %v6107, %v6105
    %v6126 = vpack.c.bf16 %v6108, %v6106
    %v6127 = vpack.c.bf16 %v6111, %v6109
    %v6128 = vpack.c.bf16 %v6112, %v6110
    %s6129 = scalar_lea.vmem [#allocation7], 3840
    %v6130 = vld [vmem:[%s6129] sm:$0xff]
    %v6131 = vld [vmem:[%s6129 + $0x8] sm:$0xff]
    %v6132 = vld [vmem:[%s6129 + $0x10] sm:$0xff]
    %v6133 = vld [vmem:[%s6129 + $0x18] sm:$0xff]
    %v6134 = vld [vmem:[%s6129 + $0x20] sm:$0xff]
    %v6135 = vld [vmem:[%s6129 + $0x28] sm:$0xff]
    %v6136 = vld [vmem:[%s6129 + $0x30] sm:$0xff]
    %v6137 = vld [vmem:[%s6129 + $0x38] sm:$0xff]
    %v6138 = vld [vmem:[%s6129 + $0x40] sm:$0xff]
    %v6139 = vld [vmem:[%s6129 + $0x48] sm:$0xff]
    %v6140 = vld [vmem:[%s6129 + $0x50] sm:$0xff]
    %v6141 = vld [vmem:[%s6129 + $0x58] sm:$0xff]
    %v6142 = vld [vmem:[%s6129 + $0x60] sm:$0xff]
    %v6143 = vld [vmem:[%s6129 + $0x68] sm:$0xff]
    %v6144 = vld [vmem:[%s6129 + $0x70] sm:$0xff]
    %v6145 = vld [vmem:[%s6129 + $0x78] sm:$0xff]
    %v6146 = vld [vmem:[%s6129 + $0x80] sm:$0xff]
    %v6147 = vld [vmem:[%s6129 + $0x88] sm:$0xff]
    %v6148 = vld [vmem:[%s6129 + $0x90] sm:$0xff]
    %v6149 = vld [vmem:[%s6129 + $0x98] sm:$0xff]
    %v6150 = vld [vmem:[%s6129 + $0xa0] sm:$0xff]
    %v6151 = vld [vmem:[%s6129 + $0xa8] sm:$0xff]
    %v6152 = vld [vmem:[%s6129 + $0xb0] sm:$0xff]
    %v6153 = vld [vmem:[%s6129 + $0xb8] sm:$0xff]
    %v6154 = vld [vmem:[%s6129 + $0xc0] sm:$0xff]
    %v6155 = vld [vmem:[%s6129 + $0xc8] sm:$0xff]
    %v6156 = vld [vmem:[%s6129 + $0xd0] sm:$0xff]
    %v6157 = vld [vmem:[%s6129 + $0xd8] sm:$0xff]
    %v6158 = vld [vmem:[%s6129 + $0xe0] sm:$0xff]
    %v6159 = vld [vmem:[%s6129 + $0xe8] sm:$0xff]
    %v6160 = vld [vmem:[%s6129 + $0xf0] sm:$0xff]
    %v6161 = vld [vmem:[%s6129 + $0xf8] sm:$0xff]
    %s6162 = scalar_lea.vmem [#allocation8], 30
    %v6163 = vld [vmem:[%s6162] sm:$0x3]
    %v6165 = vlaneseq
    %v6166 = vshrl.u32 %v6165, 7
    %v6167 = vsub.s32 0, %v6166
    %v6168 = vrot.slane %v6163, %v6167
    %v6202 = vunpack.c.l.b16 %v6130
    %v6203 = vunpack.c.h.b16 %v6130
    %v6204 = vunpack.c.l.b16 %v6131
    %v6205 = vunpack.c.h.b16 %v6131
    %v6206 = vunpack.c.l.b16 %v6132
    %v6207 = vunpack.c.h.b16 %v6132
    %v6208 = vunpack.c.l.b16 %v6133
    %v6209 = vunpack.c.h.b16 %v6133
    %v6210 = vunpack.c.l.b16 %v6134
    %v6211 = vunpack.c.h.b16 %v6134
    %v6212 = vunpack.c.l.b16 %v6135
    %v6213 = vunpack.c.h.b16 %v6135
    %v6214 = vunpack.c.l.b16 %v6136
    %v6215 = vunpack.c.h.b16 %v6136
    %v6216 = vunpack.c.l.b16 %v6137
    %v6217 = vunpack.c.h.b16 %v6137
    %v6218 = vunpack.c.l.b16 %v6138
    %v6219 = vunpack.c.h.b16 %v6138
    %v6220 = vunpack.c.l.b16 %v6139
    %v6221 = vunpack.c.h.b16 %v6139
    %v6222 = vunpack.c.l.b16 %v6140
    %v6223 = vunpack.c.h.b16 %v6140
    %v6224 = vunpack.c.l.b16 %v6141
    %v6225 = vunpack.c.h.b16 %v6141
    %v6226 = vunpack.c.l.b16 %v6142
    %v6227 = vunpack.c.h.b16 %v6142
    %v6228 = vunpack.c.l.b16 %v6143
    %v6229 = vunpack.c.h.b16 %v6143
    %v6230 = vunpack.c.l.b16 %v6144
    %v6231 = vunpack.c.h.b16 %v6144
    %v6232 = vunpack.c.l.b16 %v6145
    %v6233 = vunpack.c.h.b16 %v6145
    %v6234 = vunpack.c.l.b16 %v6146
    %v6235 = vunpack.c.h.b16 %v6146
    %v6236 = vunpack.c.l.b16 %v6147
    %v6237 = vunpack.c.h.b16 %v6147
    %v6238 = vunpack.c.l.b16 %v6148
    %v6239 = vunpack.c.h.b16 %v6148
    %v6240 = vunpack.c.l.b16 %v6149
    %v6241 = vunpack.c.h.b16 %v6149
    %v6242 = vunpack.c.l.b16 %v6150
    %v6243 = vunpack.c.h.b16 %v6150
    %v6244 = vunpack.c.l.b16 %v6151
    %v6245 = vunpack.c.h.b16 %v6151
    %v6246 = vunpack.c.l.b16 %v6152
    %v6247 = vunpack.c.h.b16 %v6152
    %v6248 = vunpack.c.l.b16 %v6153
    %v6249 = vunpack.c.h.b16 %v6153
    %v6250 = vunpack.c.l.b16 %v6154
    %v6251 = vunpack.c.h.b16 %v6154
    %v6252 = vunpack.c.l.b16 %v6155
    %v6253 = vunpack.c.h.b16 %v6155
    %v6254 = vunpack.c.l.b16 %v6156
    %v6255 = vunpack.c.h.b16 %v6156
    %v6256 = vunpack.c.l.b16 %v6157
    %v6257 = vunpack.c.h.b16 %v6157
    %v6258 = vunpack.c.l.b16 %v6158
    %v6259 = vunpack.c.h.b16 %v6158
    %v6260 = vunpack.c.l.b16 %v6159
    %v6261 = vunpack.c.h.b16 %v6159
    %v6262 = vunpack.c.l.b16 %v6160
    %v6263 = vunpack.c.h.b16 %v6160
    %v6264 = vunpack.c.l.b16 %v6161
    %v6265 = vunpack.c.h.b16 %v6161
    %v6266 = vpack.c.b16 %v6204, %v6202
    %v6267 = vpack.c.b16 %v6205, %v6203
    %v6268 = vpack.c.b16 %v6208, %v6206
    %v6269 = vpack.c.b16 %v6209, %v6207
    %v6270 = vpack.c.b16 %v6212, %v6210
    %v6271 = vpack.c.b16 %v6213, %v6211
    %v6272 = vpack.c.b16 %v6216, %v6214
    %v6273 = vpack.c.b16 %v6217, %v6215
    %v6274 = vpack.c.b16 %v6220, %v6218
    %v6275 = vpack.c.b16 %v6221, %v6219
    %v6276 = vpack.c.b16 %v6224, %v6222
    %v6277 = vpack.c.b16 %v6225, %v6223
    %v6278 = vpack.c.b16 %v6228, %v6226
    %v6279 = vpack.c.b16 %v6229, %v6227
    %v6280 = vpack.c.b16 %v6232, %v6230
    %v6281 = vpack.c.b16 %v6233, %v6231
    %v6282 = vpack.c.b16 %v6236, %v6234
    %v6283 = vpack.c.b16 %v6237, %v6235
    %v6284 = vpack.c.b16 %v6240, %v6238
    %v6285 = vpack.c.b16 %v6241, %v6239
    %v6286 = vpack.c.b16 %v6244, %v6242
    %v6287 = vpack.c.b16 %v6245, %v6243
    %v6288 = vpack.c.b16 %v6248, %v6246
    %v6289 = vpack.c.b16 %v6249, %v6247
    %v6290 = vpack.c.b16 %v6252, %v6250
    %v6291 = vpack.c.b16 %v6253, %v6251
    %v6292 = vpack.c.b16 %v6256, %v6254
    %v6293 = vpack.c.b16 %v6257, %v6255
    %v6294 = vpack.c.b16 %v6260, %v6258
    %v6295 = vpack.c.b16 %v6261, %v6259
    %v6296 = vpack.c.b16 %v6264, %v6262
    %v6297 = vpack.c.b16 %v6265, %v6263
    %6330 = vmatprep.subr.bf16.mxu0 %v6281
    %6331 = vmatpush1.bf16.msra.mxu0 %v6280
    %6332 = vmatprep.subr.bf16.mxu0 %v6279
    %6333 = vmatpush1.bf16.msra.mxu0 %v6278
    %6334 = vmatprep.subr.bf16.mxu0 %v6277
    %6335 = vmatpush1.bf16.msra.mxu0 %v6276
    %6336 = vmatprep.subr.bf16.mxu0 %v6275
    %6337 = vmatpush1.bf16.msra.mxu0 %v6274
    %6338 = vmatprep.subr.bf16.mxu0 %v6273
    %6339 = vmatpush1.bf16.msra.mxu0 %v6272
    %6340 = vmatprep.subr.bf16.mxu0 %v6271
    %6341 = vmatpush1.bf16.msra.mxu0 %v6270
    %6342 = vmatprep.subr.bf16.mxu0 %v6269
    %6343 = vmatpush1.bf16.msra.mxu0 %v6268
    %6344 = vmatprep.subr.bf16.mxu0 %v6267
    %6345 = vmatpush1.bf16.msra.mxu0 %v6266
    %6346 = vmatprep.subr.bf16.mxu0 %v6297
    %6347 = vmatpush2.bf16.msra.mxu0 %v6296
    %6348 = vmatprep.subr.bf16.mxu0 %v6295
    %6349 = vmatpush2.bf16.msra.mxu0 %v6294
    %6350 = vmatprep.subr.bf16.mxu0 %v6293
    %6351 = vmatpush2.bf16.msra.mxu0 %v6292
    %6352 = vmatprep.subr.bf16.mxu0 %v6291
    %6353 = vmatpush2.bf16.msra.mxu0 %v6290
    %6354 = vmatprep.subr.bf16.mxu0 %v6289
    %6355 = vmatpush2.bf16.msra.mxu0 %v6288
    %6356 = vmatprep.subr.bf16.mxu0 %v6287
    %6357 = vmatpush2.bf16.msra.mxu0 %v6286
    %6358 = vmatprep.subr.bf16.mxu0 %v6285
    %6359 = vmatpush2.bf16.msra.mxu0 %v6284
    %6360 = vmatprep.subr.bf16.mxu0 %v6283
    %6361 = vmatpush2.bf16.msra.mxu0 %v6282
    %6362 = vmatprep.mubr.bf16.mxu0 %v6114
    %6363 = vmatmul.mubr.bf16.gmra.mxu0 %v6113
    %v6364 = vpop.f32.mrf.mxu0
    %v6365 = vadd.f32 %v6168, %v6364
    %v6366 = vpop.f32.mrf.mxu0
    %v6367 = vpop.f32.mrf.mxu0
    %v6368 = vadd.f32 %v6168, %v6367
    %v6369 = vpop.f32.mrf.mxu0
    %6370 = vmatprep.mubr.bf16.mxu0 %v6116
    %6371 = vmatmul.mubr.bf16.gmra.mxu0 %v6115
    %v6372 = vpop.f32.mrf.mxu0
    %v6373 = vadd.f32 %v6168, %v6372
    %v6374 = vpop.f32.mrf.mxu0
    %v6375 = vpop.f32.mrf.mxu0
    %v6376 = vadd.f32 %v6168, %v6375
    %v6377 = vpop.f32.mrf.mxu0
    %6378 = vmatprep.mubr.bf16.mxu0 %v6118
    %6379 = vmatmul.mubr.bf16.gmra.mxu0 %v6117
    %v6380 = vpop.f32.mrf.mxu0
    %v6381 = vadd.f32 %v6168, %v6380
    %v6382 = vpop.f32.mrf.mxu0
    %v6383 = vpop.f32.mrf.mxu0
    %v6384 = vadd.f32 %v6168, %v6383
    %v6385 = vpop.f32.mrf.mxu0
    %6386 = vmatprep.mubr.bf16.mxu0 %v6120
    %6387 = vmatmul.mubr.bf16.gmra.mxu0 %v6119
    %v6388 = vpop.f32.mrf.mxu0
    %v6389 = vadd.f32 %v6168, %v6388
    %v6390 = vpop.f32.mrf.mxu0
    %v6391 = vpop.f32.mrf.mxu0
    %v6392 = vadd.f32 %v6168, %v6391
    %v6393 = vpop.f32.mrf.mxu0
    %6394 = vmatprep.mubr.bf16.mxu0 %v6122
    %6395 = vmatmul.mubr.bf16.gmra.mxu0 %v6121
    %v6396 = vpop.f32.mrf.mxu0
    %v6397 = vadd.f32 %v6168, %v6396
    %v6398 = vpop.f32.mrf.mxu0
    %v6399 = vpop.f32.mrf.mxu0
    %v6400 = vadd.f32 %v6168, %v6399
    %v6401 = vpop.f32.mrf.mxu0
    %6402 = vmatprep.mubr.bf16.mxu0 %v6124
    %6403 = vmatmul.mubr.bf16.gmra.mxu0 %v6123
    %v6404 = vpop.f32.mrf.mxu0
    %v6405 = vadd.f32 %v6168, %v6404
    %v6406 = vpop.f32.mrf.mxu0
    %v6407 = vpop.f32.mrf.mxu0
    %v6408 = vadd.f32 %v6168, %v6407
    %v6409 = vpop.f32.mrf.mxu0
    %6410 = vmatprep.mubr.bf16.mxu0 %v6126
    %6411 = vmatmul.mubr.bf16.gmra.mxu0 %v6125
    %v6412 = vpop.f32.mrf.mxu0
    %v6413 = vadd.f32 %v6168, %v6412
    %v6414 = vpop.f32.mrf.mxu0
    %v6415 = vpop.f32.mrf.mxu0
    %v6416 = vadd.f32 %v6168, %v6415
    %v6417 = vpop.f32.mrf.mxu0
    %6418 = vmatprep.mubr.bf16.mxu0 %v6128
    %6419 = vmatmul.mubr.bf16.gmra.mxu0 %v6127
    %v6420 = vpop.f32.mrf.mxu0
    %v6421 = vadd.f32 %v6168, %v6420
    %v6422 = vpop.f32.mrf.mxu0
    %v6423 = vpop.f32.mrf.mxu0
    %v6424 = vadd.f32 %v6168, %v6423
    %v6425 = vpop.f32.mrf.mxu0
    %6426 = vdwg.mxu0
    %v6427 = vtanh.pop %v6365
    %v6428 = vtanh.pop %v6368
    %v6429 = vtanh.pop %v6373
    %v6430 = vtanh.pop %v6376
    %v6431 = vtanh.pop %v6381
    %v6432 = vtanh.pop %v6384
    %v6433 = vtanh.pop %v6389
    %v6434 = vtanh.pop %v6392
    %v6435 = vtanh.pop %v6397
    %v6436 = vtanh.pop %v6400
    %v6437 = vtanh.pop %v6405
    %v6438 = vtanh.pop %v6408
    %v6439 = vtanh.pop %v6413
    %v6440 = vtanh.pop %v6416
    %v6441 = vtanh.pop %v6421
    %v6442 = vtanh.pop %v6424
    %6443 = vst [vmem:[#allocation10] sm:$0xff] %v6427
    %6444 = vst [vmem:[#allocation10 + $0x18] sm:$0xff] %v6428
    %6445 = vst [vmem:[#allocation10 + $0x30] sm:$0xff] %v6429
    %6446 = vst [vmem:[#allocation10 + $0x48] sm:$0xff] %v6430
    %6447 = vst [vmem:[#allocation10 + $0x60] sm:$0xff] %v6431
    %6448 = vst [vmem:[#allocation10 + $0x78] sm:$0xff] %v6432
    %6449 = vst [vmem:[#allocation10 + $0x90] sm:$0xff] %v6433
    %6450 = vst [vmem:[#allocation10 + $0xa8] sm:$0xff] %v6434
    %6451 = vst [vmem:[#allocation10 + $0xc0] sm:$0xff] %v6435
    %6452 = vst [vmem:[#allocation10 + $0xd8] sm:$0xff] %v6436
    %6453 = vst [vmem:[#allocation10 + $0xf0] sm:$0xff] %v6437
    %6454 = vst [vmem:[#allocation10 + $0x108] sm:$0xff] %v6438
    %6455 = vst [vmem:[#allocation10 + $0x120] sm:$0xff] %v6439
    %6456 = vst [vmem:[#allocation10 + $0x138] sm:$0xff] %v6440
    %6457 = vst [vmem:[#allocation10 + $0x150] sm:$0xff] %v6441
    %6458 = vst [vmem:[#allocation10 + $0x168] sm:$0xff] %v6442
    %6459 = vst [vmem:[#allocation10 + $0x8] sm:$0xff] %v3153
    %6460 = vst [vmem:[#allocation10 + $0x10] sm:$0xff] %v3155
    %6461 = vst [vmem:[#allocation10 + $0x20] sm:$0xff] %v3157
    %6462 = vst [vmem:[#allocation10 + $0x28] sm:$0xff] %v3159
    %6463 = vst [vmem:[#allocation10 + $0x38] sm:$0xff] %v3163
    %6464 = vst [vmem:[#allocation10 + $0x40] sm:$0xff] %v3165
    %6465 = vst [vmem:[#allocation10 + $0x50] sm:$0xff] %v3167
    %6466 = vst [vmem:[#allocation10 + $0x58] sm:$0xff] %v3169
    %6467 = vst [vmem:[#allocation10 + $0x68] sm:$0xff] %v3173
    %6468 = vst [vmem:[#allocation10 + $0x70] sm:$0xff] %v3175
    %6469 = vst [vmem:[#allocation10 + $0x80] sm:$0xff] %v3177
    %6470 = vst [vmem:[#allocation10 + $0x88] sm:$0xff] %v3179
    %6471 = vst [vmem:[#allocation10 + $0x98] sm:$0xff] %v3183
    %6472 = vst [vmem:[#allocation10 + $0xa0] sm:$0xff] %v3185
    %6473 = vst [vmem:[#allocation10 + $0xb0] sm:$0xff] %v3187
    %6474 = vst [vmem:[#allocation10 + $0xb8] sm:$0xff] %v3189
    %6475 = vst [vmem:[#allocation10 + $0xc8] sm:$0xff] %v3193
    %6476 = vst [vmem:[#allocation10 + $0xd0] sm:$0xff] %v3195
    %6477 = vst [vmem:[#allocation10 + $0xe0] sm:$0xff] %v3197
    %6478 = vst [vmem:[#allocation10 + $0xe8] sm:$0xff] %v3199
    %6479 = vst [vmem:[#allocation10 + $0xf8] sm:$0xff] %v3203
    %6480 = vst [vmem:[#allocation10 + $0x100] sm:$0xff] %v3205
    %6481 = vst [vmem:[#allocation10 + $0x110] sm:$0xff] %v3207
    %6482 = vst [vmem:[#allocation10 + $0x118] sm:$0xff] %v3209
    %6483 = vst [vmem:[#allocation10 + $0x128] sm:$0xff] %v3213
    %6484 = vst [vmem:[#allocation10 + $0x130] sm:$0xff] %v3215
    %6485 = vst [vmem:[#allocation10 + $0x140] sm:$0xff] %v3217
    %6486 = vst [vmem:[#allocation10 + $0x148] sm:$0xff] %v3219
    %6487 = vst [vmem:[#allocation10 + $0x158] sm:$0xff] %v3223
    %6488 = vst [vmem:[#allocation10 + $0x160] sm:$0xff] %v3225
    %6489 = vst [vmem:[#allocation10 + $0x170] sm:$0xff] %v3227
    %6490 = vst [vmem:[#allocation10 + $0x178] sm:$0xff] %v3229
    // Predicated region
    $region34: #{tpu_custom_call.1} parent=1 // pred_check
      _
    $region35: #{tpu_custom_call.1} parent=1 // pred_check_branch
      %6492 = sbr.rel (0) target = $region37
    $region36: #{tpu_custom_call.1} parent=1 // pred_region
      %s6494 = ssub.s32 6144, 6144
      %6495 = vsyncadd [#allocation4], %s6494
      %s6496 = sshll.u32 [#allocation10], 4
      %s6497 = int_to_ptr.vmem [resolvable:$true] %s6496
      %6502 = dma.vmem_to_hbm [thread:$0]  %s6497, 6144, %s4, [#allocation4], 384, 384, 24
    $region37: #{tpu_custom_call.1} parent=1 // pred_fallthru
      _
    // Predicated region
    $region38: #{tpu_custom_call.1} parent=1 // pred_check
      _
    $region39: #{tpu_custom_call.1} parent=1 // pred_check_branch
      %6504 = sbr.rel (0) target = $region41
    $region40: #{tpu_custom_call.1} parent=1 // pred_region
      %6505 = dma.done [#allocation4], 6144
    $region41: #{tpu_custom_call.1} parent=1 // pred_fallthru
      _
    %6506 = vsyncpa [#allocation3], 1
    %6507 = vsyncpa [#allocation6], 1
    %6508 = vsyncpa [#allocation9], 1
    %6509 = vsyncpa [#allocation4], 1

</llo_original>
